<compile_context>
chip_gen: v7x
topology: tpu7x:2x2x1
jax: 0.10.0
libtpu: 0.0.40
codegen_flags: <defaults>
</compile_context>

<pallas_src>
import functools
import math

import jax
import jax.numpy as jnp
from jax.experimental import pallas as pl
from jax.experimental.pallas import tpu as pltpu

# ----------------------------- config (small DistilBERT) -----------------------------
VOCAB = 512
MAX_POS = 64
DIM = 128          # hidden size (stands in for 768)
N_HEADS = 4        # stands in for 12
HEAD_DIM = DIM // N_HEADS
FFN = 256          # stands in for 3072
N_LAYERS = 2       # stands in for 6
LN_EPS = 1e-12

BATCH = 2
SEQ = 16


# ----------------------------- tiling helpers -----------------------------
def _tile_m(M):
    """Row tile: multiple of 8, capped at 256, >=2 blocks when possible (megacore)."""
    for t in (256, 128, 64, 32, 16, 8):
        if t <= M and M % t == 0 and M // t >= 2:
            return t
    return M


def _tile_nk(dim):
    """Lane/contraction tile: biggest of 512/256/128 that divides dim, else the full dim."""
    for t in (512, 256, 128):
        if t <= dim and dim % t == 0:
            return t
    return dim


# ----------------------------- dense (tiled matmul + bias [+GELU]) -----------------------------
def _dense_kernel(x_ref, w_ref, b_ref, o_ref, acc_ref, *, activation):
    @pl.when(pl.program_id(2) == 0)
    def _():
        acc_ref[...] = jnp.zeros_like(acc_ref)

    acc_ref[...] += jnp.dot(x_ref[...], w_ref[...], preferred_element_type=jnp.float32)

    @pl.when(pl.program_id(2) == pl.num_programs(2) - 1)
    def _():
        acc = acc_ref[...] + b_ref[...].astype(jnp.float32)
        if activation == "gelu":
            # tanh-approx GELU: transcendental goes to the EUP slot (essentially free).
            acc = jax.nn.gelu(acc, approximate=True)
        o_ref[...] = acc.astype(o_ref.dtype)


def dense(x, w, b, activation=None, out_dtype=jnp.bfloat16):
    """out = x @ w + b (optional GELU). x:(M,K) bf16, w:(K,N) bf16, b:(N,) f32."""
    M, K = x.shape
    Kw, N = w.shape
    assert K == Kw
    tm, tn, tk = _tile_m(M), _tile_nk(N), _tile_nk(K)
    kernel = functools.partial(_dense_kernel, activation=activation)
    return pl.pallas_call(
        kernel,
        out_shape=jax.ShapeDtypeStruct((M, N), out_dtype),
        grid=(M // tm, N // tn, K // tk),
        in_specs=[
            pl.BlockSpec((tm, tk), lambda i, j, k: (i, k)),
            pl.BlockSpec((tk, tn), lambda i, j, k: (k, j)),
            pl.BlockSpec((1, tn), lambda i, j, k: (0, j)),
        ],
        out_specs=pl.BlockSpec((tm, tn), lambda i, j, k: (i, j)),
        scratch_shapes=[pltpu.VMEM((tm, tn), jnp.float32)],
        compiler_params=pltpu.CompilerParams(
            dimension_semantics=("parallel", "parallel", "arbitrary")),
    )(x, w, b.reshape(1, N))


# ----------------------------- (residual +) LayerNorm -----------------------------
def _ln_kernel(*refs, eps, has_residual):
    if has_residual:
        x_ref, r_ref, g_ref, b_ref, o_ref = refs
        x = x_ref[...].astype(jnp.float32) + r_ref[...].astype(jnp.float32)
    else:
        x_ref, g_ref, b_ref, o_ref = refs
        x = x_ref[...].astype(jnp.float32)
    mu = jnp.mean(x, axis=-1, keepdims=True)
    var = jnp.mean(jnp.square(x - mu), axis=-1, keepdims=True)
    y = (x - mu) * jax.lax.rsqrt(var + eps)
    o_ref[...] = (y * g_ref[...] + b_ref[...]).astype(o_ref.dtype)


def layernorm(x, gamma, beta, residual=None, eps=LN_EPS, out_dtype=jnp.bfloat16):
    """LayerNorm((x [+ residual])) * gamma + beta, f32 math, tiled over rows."""
    M, D = x.shape
    tm = _tile_m(M)
    has_res = residual is not None
    kernel = functools.partial(_ln_kernel, eps=eps, has_residual=has_res)

    in_specs = [pl.BlockSpec((tm, D), lambda i: (i, 0))]
    args = [x]
    if has_res:
        in_specs.append(pl.BlockSpec((tm, D), lambda i: (i, 0)))
        args.append(residual)
    in_specs += [pl.BlockSpec((1, D), lambda i: (0, 0)),
                 pl.BlockSpec((1, D), lambda i: (0, 0))]
    args += [gamma.reshape(1, D), beta.reshape(1, D)]

    return pl.pallas_call(
        kernel,
        out_shape=jax.ShapeDtypeStruct((M, D), out_dtype),
        grid=(M // tm,),
        in_specs=in_specs,
        out_specs=pl.BlockSpec((tm, D), lambda i: (i, 0)),
        compiler_params=pltpu.CompilerParams(dimension_semantics=("parallel",)),
    )(*args)


# ----------------------------- attention (all heads per batch element) -----------------------------
def _attn_kernel(m_ref, q_ref, k_ref, v_ref, o_ref, *, n_heads, head_dim, scale):
    bias = m_ref[0].astype(jnp.float32)            # (1, S) additive: 0 keep, -1e30 pad
    ctxs = []
    for h in range(n_heads):                       # static loop; heads are 32-lane slices of D
        lo, hi = h * head_dim, (h + 1) * head_dim
        q = q_ref[0, :, lo:hi].astype(jnp.float32)  # (S, dh)
        k = k_ref[0, :, lo:hi].astype(jnp.float32)
        v = v_ref[0, :, lo:hi].astype(jnp.float32)
        s = jnp.dot(q, k.T, preferred_element_type=jnp.float32) * scale + bias  # (S, S)
        mx = jnp.max(s, axis=-1, keepdims=True)
        p = jnp.exp(s - mx)
        p = p / jnp.sum(p, axis=-1, keepdims=True)
        ctxs.append(jnp.dot(p, v, preferred_element_type=jnp.float32))
    o_ref[0] = jnp.concatenate(ctxs, axis=-1).astype(o_ref.dtype)   # one lane-dense store


def attention(qkv, attn_bias):
    """qkv: (B, S, 3*D) fused projection output; attn_bias: (B, 1, S) additive mask."""
    B, S, D3 = qkv.shape
    D = D3 // 3
    kernel = functools.partial(
        _attn_kernel, n_heads=N_HEADS, head_dim=HEAD_DIM, scale=1.0 / math.sqrt(HEAD_DIM))
    return pl.pallas_call(
        kernel,
        out_shape=jax.ShapeDtypeStruct((B, S, D), qkv.dtype),
        grid=(B,),
        in_specs=[
            pl.BlockSpec((1, 1, S), lambda b: (b, 0, 0)),   # mask bias
            pl.BlockSpec((1, S, D), lambda b: (b, 0, 0)),   # q columns of the qkv slab
            pl.BlockSpec((1, S, D), lambda b: (b, 0, 1)),   # k columns
            pl.BlockSpec((1, S, D), lambda b: (b, 0, 2)),   # v columns
        ],
        out_specs=pl.BlockSpec((1, S, D), lambda b: (b, 0, 0)),
        compiler_params=pltpu.CompilerParams(dimension_semantics=("parallel",)),
    )(attn_bias, qkv, qkv, qkv)


# ----------------------------- parameter init -----------------------------
def init_params(key):
    def nrm(key, shape, scale=0.02):
        return (scale * jax.random.normal(key, shape)).astype(jnp.float32)

    keys = jax.random.split(key, 4 + N_LAYERS)
    params = {
        "word_emb": nrm(keys[0], (VOCAB, DIM)),
        "pos_emb": nrm(keys[1], (MAX_POS, DIM)),
        "emb_ln_g": jnp.ones((DIM,), jnp.float32),
        "emb_ln_b": jnp.zeros((DIM,), jnp.float32),
        "cls_w": nrm(keys[2], (DIM, 1)),
        "cls_b": jnp.zeros((1,), jnp.float32),
        "layers": [],
    }
    for li in range(N_LAYERS):
        lk = jax.random.split(keys[4 + li], 6)
        wq, wk, wv = nrm(lk[0], (DIM, DIM)), nrm(lk[1], (DIM, DIM)), nrm(lk[2], (DIM, DIM))
        params["layers"].append({
            # fused QKV projection weight; matmul weights stored in bf16
            "wqkv": jnp.concatenate([wq, wk, wv], axis=1).astype(jnp.bfloat16),  # (D, 3D)
            "bqkv": jnp.zeros((3 * DIM,), jnp.float32),
            "wo": nrm(lk[3], (DIM, DIM)).astype(jnp.bfloat16),
            "bo": jnp.zeros((DIM,), jnp.float32),
            "sa_ln_g": jnp.ones((DIM,), jnp.float32),
            "sa_ln_b": jnp.zeros((DIM,), jnp.float32),
            "w1": nrm(lk[4], (DIM, FFN)).astype(jnp.bfloat16),
            "b1": jnp.zeros((FFN,), jnp.float32),
            "w2": nrm(lk[5], (FFN, DIM)).astype(jnp.bfloat16),
            "b2": jnp.zeros((DIM,), jnp.float32),
            "out_ln_g": jnp.ones((DIM,), jnp.float32),
            "out_ln_b": jnp.zeros((DIM,), jnp.float32),
        })
    return params


# ----------------------------- forward pass -----------------------------
def distilbert_classifier(params, ids, mask):
    """ids: (B, S) int32, mask: (B, S) {0,1} -> logits (B, S, 1) like l3(l2(l1(ids, mask)[0]))."""
    B, S = ids.shape

    # Additive attention-mask bias: 0 where keep, -1e30 where pad (replaces compare+select).
    attn_bias = ((mask.astype(jnp.float32) - 1.0) * 1e30).reshape(B, 1, S)

    # Embeddings (gather is glue) + LayerNorm kernel (f32 in, bf16 out).
    we = jnp.take(params["word_emb"], ids, axis=0)              # (B, S, D)
    pe = params["pos_emb"][:S]                                  # (S, D)
    h = (we + pe[None, :, :]).reshape(B * S, DIM)
    h = layernorm(h, params["emb_ln_g"], params["emb_ln_b"])    # (B*S, D) bf16
    # TODO(synk): embedding dropout / dropout layers are inference-mode identities here.

    for lp in params["layers"]:
        # Fused Q/K/V projection: one matmul, output (B*S, 3D).
        qkv = dense(h, lp["wqkv"], lp["bqkv"])                  # bf16
        qkv = qkv.reshape(B, S, 3 * DIM)                        # free (leading-dim reshape)

        # All heads of one batch element per grid step; heads sliced on the lane axis.
        ctx = attention(qkv, attn_bias)                         # (B, S, D) bf16
        ctx = ctx.reshape(B * S, DIM)

        attn_out = dense(ctx, lp["wo"], lp["bo"])
        h = layernorm(attn_out, lp["sa_ln_g"], lp["sa_ln_b"], residual=h)

        # Feed-forward (tanh-GELU fused into first matmul epilogue), residual fused into LN.
        ff = dense(h, lp["w1"], lp["b1"], activation="gelu")
        ff = dense(ff, lp["w2"], lp["b2"])
        h = layernorm(ff, lp["out_ln_g"], lp["out_ln_b"], residual=h)

    # l2: Dropout(0.3) -> identity at inference; l3: Linear(DIM, 1) in plain JAX
    # (an N=1 Pallas output would force masked 1/128-lane stores).
    logits = jnp.dot(h.astype(jnp.float32), params["cls_w"]) + params["cls_b"]  # (B*S, 1)
    return logits.reshape(B, S, 1)


# ----------------------------- driver -----------------------------
if __name__ == "__main__":
    key = jax.random.PRNGKey(0)
    k_param, k_ids = jax.random.split(key)

    params = init_params(k_param)
    ids = jax.random.randint(k_ids, (BATCH, SEQ), 0, VOCAB, dtype=jnp.int32)
    # attention mask: last 4 tokens of the second example are padding
    mask = jnp.ones((BATCH, SEQ), dtype=jnp.int32)
    mask = mask.at[1, SEQ - 4:].set(0)

    out = jax.jit(distilbert_classifier)(params, ids, mask)
    out = jax.block_until_ready(out)
    assert out.shape == (BATCH, SEQ, 1) and out.dtype == jnp.float32
    assert bool(jnp.all(jnp.isfinite(out)))
    print("KERNEL_OK")
</pallas_src>

<mosaic_0001>
module attributes {stable_mosaic.version = 11 : i64} {
  func.func @_dense_kernel(%arg0: i32, %arg1: i32, %arg2: i32, %arg3: memref<16x128xbf16, #tpu.memory_space<vmem>>, %arg4: memref<128x128xbf16, #tpu.memory_space<vmem>>, %arg5: memref<1x128xf32, #tpu.memory_space<vmem>>, %arg6: memref<16x128xbf16, #tpu.memory_space<vmem>>, %arg7: memref<16x128xf32, #tpu.memory_space<vmem>>) attributes {dimension_semantics = [#tpu.dimension_semantics<parallel>, #tpu.dimension_semantics<parallel>, #tpu.dimension_semantics<arbitrary>], iteration_bounds = array<i64: 2, 3, 1>, scalar_prefetch = 0 : i64, scratch_operands = 1 : i64, tpu.core_type = #tpu.core_type<tc>, window_params = [{transform_indices = @transform_0, window_bounds = array<i64: 16, 128>}, {transform_indices = @transform_1, window_bounds = array<i64: 128, 128>}, {transform_indices = @transform_2, window_bounds = array<i64: 1, 128>}, {transform_indices = @transform_3, window_bounds = array<i64: 16, 128>}]} {
    %c0_i32 = arith.constant 0 : i32
    %0 = arith.cmpi eq, %arg2, %c0_i32 : i32
    %1 = arith.extui %0 : i1 to i32
    %c0_i32_0 = arith.constant 0 : i32
    %2 = arith.cmpi ne, %1, %c0_i32_0 : i32
    scf.if %2 {
      %cst_10 = arith.constant 0.000000e+00 : f32
      %12 = vector.broadcast %cst_10 : f32 to vector<16x128xf32>
      %c0_11 = arith.constant 0 : index
      %c0_12 = arith.constant 0 : index
      %13 = vector.load %arg7[%c0_11, %c0_12] : memref<16x128xf32, #tpu.memory_space<vmem>>, vector<16x128xf32>
      tpu.vector_store %arg7[%c0_11, %c0_12], %12 {strides = array<i32>} : memref<16x128xf32, #tpu.memory_space<vmem>>, vector<16x128xf32>,
    } else {
    }
    %c0 = arith.constant 0 : index
    %c0_1 = arith.constant 0 : index
    %3 = vector.load %arg7[%c0, %c0_1] : memref<16x128xf32, #tpu.memory_space<vmem>>, vector<16x128xf32>
    %c0_2 = arith.constant 0 : index
    %c0_3 = arith.constant 0 : index
    %4 = vector.load %arg3[%c0_2, %c0_3] : memref<16x128xbf16, #tpu.memory_space<vmem>>, vector<16x128xbf16>
    %c0_4 = arith.constant 0 : index
    %c0_5 = arith.constant 0 : index
    %5 = vector.load %arg4[%c0_4, %c0_5] : memref<128x128xbf16, #tpu.memory_space<vmem>>, vector<128x128xbf16>
    %cst = arith.constant dense<0.000000e+00> : vector<16x128xf32>
    %6 = tpu.matmul %4, %5, %cst {dimension_numbers = #tpu.dot_dimension_numbers<[1], [0], [0], [1], [0, 0, 1, 1], [], []>} : vector<16x128xbf16>, vector<128x128xbf16>, vector<16x128xf32> -> vector<16x128xf32>
    %7 = arith.addf %3, %6 : vector<16x128xf32>
    %c0_6 = arith.constant 0 : index
    %c0_7 = arith.constant 0 : index
    %8 = vector.load %arg7[%c0_6, %c0_7] : memref<16x128xf32, #tpu.memory_space<vmem>>, vector<16x128xf32>
    tpu.vector_store %arg7[%c0_6, %c0_7], %7 {strides = array<i32>} : memref<16x128xf32, #tpu.memory_space<vmem>>, vector<16x128xf32>,
    %c0_i32_8 = arith.constant 0 : i32
    %9 = arith.cmpi eq, %arg2, %c0_i32_8 : i32
    %10 = arith.extui %9 : i1 to i32
    %c0_i32_9 = arith.constant 0 : i32
    %11 = arith.cmpi ne, %10, %c0_i32_9 : i32
    scf.if %11 {
      %c0_10 = arith.constant 0 : index
      %c0_11 = arith.constant 0 : index
      %12 = vector.load %arg7[%c0_10, %c0_11] : memref<16x128xf32, #tpu.memory_space<vmem>>, vector<16x128xf32>
      %c0_12 = arith.constant 0 : index
      %c0_13 = arith.constant 0 : index
      %13 = vector.load %arg5[%c0_12, %c0_13] : memref<1x128xf32, #tpu.memory_space<vmem>>, vector<1x128xf32>
      %14 = vector.broadcast %13 : vector<1x128xf32> to vector<16x128xf32>
      %15 = arith.addf %12, %14 : vector<16x128xf32>
      %16 = arith.truncf %15 : vector<16x128xf32> to vector<16x128xbf16>
      %c0_14 = arith.constant 0 : index
      %c0_15 = arith.constant 0 : index
      %17 = vector.load %arg6[%c0_14, %c0_15] : memref<16x128xbf16, #tpu.memory_space<vmem>>, vector<16x128xbf16>
      tpu.vector_store %arg6[%c0_14, %c0_15], %16 {strides = array<i32>} : memref<16x128xbf16, #tpu.memory_space<vmem>>, vector<16x128xbf16>,
    } else {
    }
    return
  }
  func.func @transform_0(%arg0: i32, %arg1: i32, %arg2: i32) -> (i32, i32) {
    %c0_i32 = arith.constant 0 : i32
    return %arg0, %arg2 : i32, i32
  }
  func.func @transform_1(%arg0: i32, %arg1: i32, %arg2: i32) -> (i32, i32) {
    %c0_i32 = arith.constant 0 : i32
    return %arg2, %arg1 : i32, i32
  }
  func.func @transform_2(%arg0: i32, %arg1: i32, %arg2: i32) -> (i32, i32) {
    %c0_i32 = arith.constant 0 : i32
    %c0_i32_0 = arith.constant 0 : i32
    return %c0_i32, %arg1 : i32, i32
  }
  func.func @transform_3(%arg0: i32, %arg1: i32, %arg2: i32) -> (i32, i32) {
    %c0_i32 = arith.constant 0 : i32
    return %arg0, %arg1 : i32, i32
  }
}

module attributes {stable_mosaic.version = 11 : i64} {
  func.func @_ln_kernel(%arg0: i32, %arg1: memref<16x128xf32, #tpu.memory_space<vmem>>, %arg2: memref<1x128xf32, #tpu.memory_space<vmem>>, %arg3: memref<1x128xf32, #tpu.memory_space<vmem>>, %arg4: memref<16x128xbf16, #tpu.memory_space<vmem>>) attributes {dimension_semantics = [#tpu.dimension_semantics<parallel>], iteration_bounds = array<i64: 2>, scalar_prefetch = 0 : i64, scratch_operands = 0 : i64, tpu.core_type = #tpu.core_type<tc>, window_params = [{transform_indices = @transform_0, window_bounds = array<i64: 16, 128>}, {pipeline_mode = #tpu.pipeline_mode<synchronous>, transform_indices = @transform_1, window_bounds = array<i64: 1, 128>}, {pipeline_mode = #tpu.pipeline_mode<synchronous>, transform_indices = @transform_2, window_bounds = array<i64: 1, 128>}, {transform_indices = @transform_3, window_bounds = array<i64: 16, 128>}]} {
    %c0 = arith.constant 0 : index
    %c0_0 = arith.constant 0 : index
    %0 = vector.load %arg1[%c0, %c0_0] : memref<16x128xf32, #tpu.memory_space<vmem>>, vector<16x128xf32>
    %cst = arith.constant dense<0.000000e+00> : vector<16xf32>
    %1 = vector.multi_reduction <add>, %0, %cst [1] : vector<16x128xf32> to vector<16xf32>
    %2 = vector.shape_cast %1 : vector<16xf32> to vector<16x1xf32>
    %cst_1 = arith.constant 1.280000e+02 : f32
    %3 = vector.broadcast %cst_1 : f32 to vector<16x1xf32>
    %4 = arith.divf %2, %3 : vector<16x1xf32>
    %5 = vector.broadcast %4 : vector<16x1xf32> to vector<16x128xf32>
    %6 = arith.subf %0, %5 : vector<16x128xf32>
    %7 = arith.mulf %6, %6 : vector<16x128xf32>
    %cst_2 = arith.constant dense<0.000000e+00> : vector<16xf32>
    %8 = vector.multi_reduction <add>, %7, %cst_2 [1] : vector<16x128xf32> to vector<16xf32>
    %9 = vector.shape_cast %8 : vector<16xf32> to vector<16x1xf32>
    %cst_3 = arith.constant 1.280000e+02 : f32
    %10 = vector.broadcast %cst_3 : f32 to vector<16x1xf32>
    %11 = arith.divf %9, %10 : vector<16x1xf32>
    %12 = vector.broadcast %4 : vector<16x1xf32> to vector<16x128xf32>
    %13 = arith.subf %0, %12 : vector<16x128xf32>
    %cst_4 = arith.constant 9.99999996E-13 : f32
    %14 = vector.broadcast %cst_4 : f32 to vector<16x1xf32>
    %15 = arith.addf %11, %14 : vector<16x1xf32>
    %16 = math.rsqrt %15 : vector<16x1xf32>
    %17 = vector.broadcast %16 : vector<16x1xf32> to vector<16x128xf32>
    %18 = arith.mulf %13, %17 : vector<16x128xf32>
    %c0_5 = arith.constant 0 : index
    %c0_6 = arith.constant 0 : index
    %19 = vector.load %arg2[%c0_5, %c0_6] : memref<1x128xf32, #tpu.memory_space<vmem>>, vector<1x128xf32>
    %20 = vector.broadcast %19 : vector<1x128xf32> to vector<16x128xf32>
    %21 = arith.mulf %18, %20 : vector<16x128xf32>
    %c0_7 = arith.constant 0 : index
    %c0_8 = arith.constant 0 : index
    %22 = vector.load %arg3[%c0_7, %c0_8] : memref<1x128xf32, #tpu.memory_space<vmem>>, vector<1x128xf32>
    %23 = vector.broadcast %22 : vector<1x128xf32> to vector<16x128xf32>
    %24 = arith.addf %21, %23 : vector<16x128xf32>
    %25 = arith.truncf %24 : vector<16x128xf32> to vector<16x128xbf16>
    %c0_9 = arith.constant 0 : index
    %c0_10 = arith.constant 0 : index
    %26 = vector.load %arg4[%c0_9, %c0_10] : memref<16x128xbf16, #tpu.memory_space<vmem>>, vector<16x128xbf16>
    tpu.vector_store %arg4[%c0_9, %c0_10], %25 {strides = array<i32>} : memref<16x128xbf16, #tpu.memory_space<vmem>>, vector<16x128xbf16>,
    return
  }
  func.func @transform_0(%arg0: i32) -> (i32, i32) {
    %c0_i32 = arith.constant 0 : i32
    %c0_i32_0 = arith.constant 0 : i32
    return %arg0, %c0_i32 : i32, i32
  }
  func.func @transform_1(%arg0: i32) -> (i32, i32) {
    %c0_i32 = arith.constant 0 : i32
    %c0_i32_0 = arith.constant 0 : i32
    %c0_i32_1 = arith.constant 0 : i32
    return %c0_i32, %c0_i32_0 : i32, i32
  }
  func.func @transform_2(%arg0: i32) -> (i32, i32) {
    %c0_i32 = arith.constant 0 : i32
    %c0_i32_0 = arith.constant 0 : i32
    %c0_i32_1 = arith.constant 0 : i32
    return %c0_i32, %c0_i32_0 : i32, i32
  }
  func.func @transform_3(%arg0: i32) -> (i32, i32) {
    %c0_i32 = arith.constant 0 : i32
    %c0_i32_0 = arith.constant 0 : i32
    return %arg0, %c0_i32 : i32, i32
  }
}

module attributes {stable_mosaic.version = 11 : i64} {
  func.func @_dense_kernel(%arg0: i32, %arg1: i32, %arg2: i32, %arg3: memref<16x128xbf16, #tpu.memory_space<vmem>>, %arg4: memref<128x128xbf16, #tpu.memory_space<vmem>>, %arg5: memref<1x128xf32, #tpu.memory_space<vmem>>, %arg6: memref<16x128xbf16, #tpu.memory_space<vmem>>, %arg7: memref<16x128xf32, #tpu.memory_space<vmem>>) attributes {dimension_semantics = [#tpu.dimension_semantics<parallel>, #tpu.dimension_semantics<parallel>, #tpu.dimension_semantics<arbitrary>], iteration_bounds = array<i64: 2, 1, 1>, scalar_prefetch = 0 : i64, scratch_operands = 1 : i64, tpu.core_type = #tpu.core_type<tc>, window_params = [{transform_indices = @transform_0, window_bounds = array<i64: 16, 128>}, {transform_indices = @transform_1, window_bounds = array<i64: 128, 128>}, {transform_indices = @transform_2, window_bounds = array<i64: 1, 128>}, {transform_indices = @transform_3, window_bounds = array<i64: 16, 128>}]} {
    %c0_i32 = arith.constant 0 : i32
    %0 = arith.cmpi eq, %arg2, %c0_i32 : i32
    %1 = arith.extui %0 : i1 to i32
    %c0_i32_0 = arith.constant 0 : i32
    %2 = arith.cmpi ne, %1, %c0_i32_0 : i32
    scf.if %2 {
      %cst_10 = arith.constant 0.000000e+00 : f32
      %12 = vector.broadcast %cst_10 : f32 to vector<16x128xf32>
      %c0_11 = arith.constant 0 : index
      %c0_12 = arith.constant 0 : index
      %13 = vector.load %arg7[%c0_11, %c0_12] : memref<16x128xf32, #tpu.memory_space<vmem>>, vector<16x128xf32>
      tpu.vector_store %arg7[%c0_11, %c0_12], %12 {strides = array<i32>} : memref<16x128xf32, #tpu.memory_space<vmem>>, vector<16x128xf32>,
    } else {
    }
    %c0 = arith.constant 0 : index
    %c0_1 = arith.constant 0 : index
    %3 = vector.load %arg7[%c0, %c0_1] : memref<16x128xf32, #tpu.memory_space<vmem>>, vector<16x128xf32>
    %c0_2 = arith.constant 0 : index
    %c0_3 = arith.constant 0 : index
    %4 = vector.load %arg3[%c0_2, %c0_3] : memref<16x128xbf16, #tpu.memory_space<vmem>>, vector<16x128xbf16>
    %c0_4 = arith.constant 0 : index
    %c0_5 = arith.constant 0 : index
    %5 = vector.load %arg4[%c0_4, %c0_5] : memref<128x128xbf16, #tpu.memory_space<vmem>>, vector<128x128xbf16>
    %cst = arith.constant dense<0.000000e+00> : vector<16x128xf32>
    %6 = tpu.matmul %4, %5, %cst {dimension_numbers = #tpu.dot_dimension_numbers<[1], [0], [0], [1], [0, 0, 1, 1], [], []>} : vector<16x128xbf16>, vector<128x128xbf16>, vector<16x128xf32> -> vector<16x128xf32>
    %7 = arith.addf %3, %6 : vector<16x128xf32>
    %c0_6 = arith.constant 0 : index
    %c0_7 = arith.constant 0 : index
    %8 = vector.load %arg7[%c0_6, %c0_7] : memref<16x128xf32, #tpu.memory_space<vmem>>, vector<16x128xf32>
    tpu.vector_store %arg7[%c0_6, %c0_7], %7 {strides = array<i32>} : memref<16x128xf32, #tpu.memory_space<vmem>>, vector<16x128xf32>,
    %c0_i32_8 = arith.constant 0 : i32
    %9 = arith.cmpi eq, %arg2, %c0_i32_8 : i32
    %10 = arith.extui %9 : i1 to i32
    %c0_i32_9 = arith.constant 0 : i32
    %11 = arith.cmpi ne, %10, %c0_i32_9 : i32
    scf.if %11 {
      %c0_10 = arith.constant 0 : index
      %c0_11 = arith.constant 0 : index
      %12 = vector.load %arg7[%c0_10, %c0_11] : memref<16x128xf32, #tpu.memory_space<vmem>>, vector<16x128xf32>
      %c0_12 = arith.constant 0 : index
      %c0_13 = arith.constant 0 : index
      %13 = vector.load %arg5[%c0_12, %c0_13] : memref<1x128xf32, #tpu.memory_space<vmem>>, vector<1x128xf32>
      %14 = vector.broadcast %13 : vector<1x128xf32> to vector<16x128xf32>
      %15 = arith.addf %12, %14 : vector<16x128xf32>
      %16 = arith.truncf %15 : vector<16x128xf32> to vector<16x128xbf16>
      %c0_14 = arith.constant 0 : index
      %c0_15 = arith.constant 0 : index
      %17 = vector.load %arg6[%c0_14, %c0_15] : memref<16x128xbf16, #tpu.memory_space<vmem>>, vector<16x128xbf16>
      tpu.vector_store %arg6[%c0_14, %c0_15], %16 {strides = array<i32>} : memref<16x128xbf16, #tpu.memory_space<vmem>>, vector<16x128xbf16>,
    } else {
    }
    return
  }
  func.func @transform_0(%arg0: i32, %arg1: i32, %arg2: i32) -> (i32, i32) {
    %c0_i32 = arith.constant 0 : i32
    return %arg0, %arg2 : i32, i32
  }
  func.func @transform_1(%arg0: i32, %arg1: i32, %arg2: i32) -> (i32, i32) {
    %c0_i32 = arith.constant 0 : i32
    return %arg2, %arg1 : i32, i32
  }
  func.func @transform_2(%arg0: i32, %arg1: i32, %arg2: i32) -> (i32, i32) {
    %c0_i32 = arith.constant 0 : i32
    %c0_i32_0 = arith.constant 0 : i32
    return %c0_i32, %arg1 : i32, i32
  }
  func.func @transform_3(%arg0: i32, %arg1: i32, %arg2: i32) -> (i32, i32) {
    %c0_i32 = arith.constant 0 : i32
    return %arg0, %arg1 : i32, i32
  }
}

module attributes {stable_mosaic.version = 11 : i64} {
  func.func @_attn_kernel(%arg0: i32, %arg1: memref<1x1x16xf32, #tpu.memory_space<vmem>>, %arg2: memref<1x16x128xbf16, #tpu.memory_space<vmem>>, %arg3: memref<1x16x128xbf16, #tpu.memory_space<vmem>>, %arg4: memref<1x16x128xbf16, #tpu.memory_space<vmem>>, %arg5: memref<1x16x128xbf16, #tpu.memory_space<vmem>>) attributes {dimension_semantics = [#tpu.dimension_semantics<parallel>], iteration_bounds = array<i64: 2>, scalar_prefetch = 0 : i64, scratch_operands = 0 : i64, tpu.core_type = #tpu.core_type<tc>, window_params = [{transform_indices = @transform_0, window_bounds = array<i64: 1, 1, 16>}, {transform_indices = @transform_1, window_bounds = array<i64: 1, 16, 128>}, {transform_indices = @transform_2, window_bounds = array<i64: 1, 16, 128>}, {transform_indices = @transform_3, window_bounds = array<i64: 1, 16, 128>}, {transform_indices = @transform_4, window_bounds = array<i64: 1, 16, 128>}]} {
    %c0 = arith.constant 0 : index
    %c0_0 = arith.constant 0 : index
    %c0_1 = arith.constant 0 : index
    %0 = vector.load %arg1[%c0, %c0_0, %c0_1] : memref<1x1x16xf32, #tpu.memory_space<vmem>>, vector<1x1x16xf32>
    %1 = vector.shape_cast %0 : vector<1x1x16xf32> to vector<1x16xf32>
    %c0_2 = arith.constant 0 : index
    %c0_3 = arith.constant 0 : index
    %c0_4 = arith.constant 0 : index
    %2 = vector.load %arg2[%c0_2, %c0_3, %c0_4] : memref<1x16x128xbf16, #tpu.memory_space<vmem>>, vector<1x16x32xbf16>
    %3 = vector.shape_cast %2 : vector<1x16x32xbf16> to vector<16x32xbf16>
    %4 = arith.extf %3 : vector<16x32xbf16> to vector<16x32xf32>
    %c0_5 = arith.constant 0 : index
    %c0_6 = arith.constant 0 : index
    %c0_7 = arith.constant 0 : index
    %5 = vector.load %arg3[%c0_5, %c0_6, %c0_7] : memref<1x16x128xbf16, #tpu.memory_space<vmem>>, vector<1x16x32xbf16>
    %6 = vector.shape_cast %5 : vector<1x16x32xbf16> to vector<16x32xbf16>
    %7 = arith.extf %6 : vector<16x32xbf16> to vector<16x32xf32>
    %c0_8 = arith.constant 0 : index
    %c0_9 = arith.constant 0 : index
    %c0_10 = arith.constant 0 : index
    %8 = vector.load %arg4[%c0_8, %c0_9, %c0_10] : memref<1x16x128xbf16, #tpu.memory_space<vmem>>, vector<1x16x32xbf16>
    %9 = vector.shape_cast %8 : vector<1x16x32xbf16> to vector<16x32xbf16>
    %10 = arith.extf %9 : vector<16x32xbf16> to vector<16x32xf32>
    %11 = tpu.transpose %7, [1, 0] : vector<16x32xf32> -> vector<32x16xf32>
    %cst = arith.constant dense<0.000000e+00> : vector<16x16xf32>
    %12 = tpu.matmul %4, %11, %cst {dimension_numbers = #tpu.dot_dimension_numbers<[1], [0], [0], [1], [0, 0, 1, 1], [], []>} : vector<16x32xf32>, vector<32x16xf32>, vector<16x16xf32> -> vector<16x16xf32>
    %cst_11 = arith.constant 0.176776692 : f32
    %13 = vector.broadcast %cst_11 : f32 to vector<16x16xf32>
    %14 = arith.mulf %12, %13 : vector<16x16xf32>
    %15 = vector.broadcast %1 : vector<1x16xf32> to vector<16x16xf32>
    %16 = arith.addf %14, %15 : vector<16x16xf32>
    %cst_12 = arith.constant dense<0xFF800000> : vector<16xf32>
    %17 = vector.multi_reduction <maximumf>, %16, %cst_12 [1] : vector<16x16xf32> to vector<16xf32>
    %18 = vector.shape_cast %17 : vector<16xf32> to vector<16x1xf32>
    %19 = vector.broadcast %18 : vector<16x1xf32> to vector<16x16xf32>
    %20 = arith.subf %16, %19 : vector<16x16xf32>
    %21 = math.exp %20 : vector<16x16xf32>
    %cst_13 = arith.constant dense<0.000000e+00> : vector<16xf32>
    %22 = vector.multi_reduction <add>, %21, %cst_13 [1] : vector<16x16xf32> to vector<16xf32>
    %23 = vector.shape_cast %22 : vector<16xf32> to vector<16x1xf32>
    %24 = vector.broadcast %23 : vector<16x1xf32> to vector<16x16xf32>
    %25 = arith.divf %21, %24 : vector<16x16xf32>
    %cst_14 = arith.constant dense<0.000000e+00> : vector<16x32xf32>
    %26 = tpu.matmul %25, %10, %cst_14 {dimension_numbers = #tpu.dot_dimension_numbers<[1], [0], [0], [1], [0, 0, 1, 1], [], []>} : vector<16x16xf32>, vector<16x32xf32>, vector<16x32xf32> -> vector<16x32xf32>
    %c0_15 = arith.constant 0 : index
    %c0_16 = arith.constant 0 : index
    %c32 = arith.constant 32 : index
    %27 = vector.load %arg2[%c0_15, %c0_16, %c32] : memref<1x16x128xbf16, #tpu.memory_space<vmem>>, vector<1x16x32xbf16>
    %28 = vector.shape_cast %27 : vector<1x16x32xbf16> to vector<16x32xbf16>
    %29 = arith.extf %28 : vector<16x32xbf16> to vector<16x32xf32>
    %c0_17 = arith.constant 0 : index
    %c0_18 = arith.constant 0 : index
    %c32_19 = arith.constant 32 : index
    %30 = vector.load %arg3[%c0_17, %c0_18, %c32_19] : memref<1x16x128xbf16, #tpu.memory_space<vmem>>, vector<1x16x32xbf16>
    %31 = vector.shape_cast %30 : vector<1x16x32xbf16> to vector<16x32xbf16>
    %32 = arith.extf %31 : vector<16x32xbf16> to vector<16x32xf32>
    %c0_20 = arith.constant 0 : index
    %c0_21 = arith.constant 0 : index
    %c32_22 = arith.constant 32 : index
    %33 = vector.load %arg4[%c0_20, %c0_21, %c32_22] : memref<1x16x128xbf16, #tpu.memory_space<vmem>>, vector<1x16x32xbf16>
    %34 = vector.shape_cast %33 : vector<1x16x32xbf16> to vector<16x32xbf16>
    %35 = arith.extf %34 : vector<16x32xbf16> to vector<16x32xf32>
    %36 = tpu.transpose %32, [1, 0] : vector<16x32xf32> -> vector<32x16xf32>
    %cst_23 = arith.constant dense<0.000000e+00> : vector<16x16xf32>
    %37 = tpu.matmul %29, %36, %cst_23 {dimension_numbers = #tpu.dot_dimension_numbers<[1], [0], [0], [1], [0, 0, 1, 1], [], []>} : vector<16x32xf32>, vector<32x16xf32>, vector<16x16xf32> -> vector<16x16xf32>
    %cst_24 = arith.constant 0.176776692 : f32
    %38 = vector.broadcast %cst_24 : f32 to vector<16x16xf32>
    %39 = arith.mulf %37, %38 : vector<16x16xf32>
    %40 = vector.broadcast %1 : vector<1x16xf32> to vector<16x16xf32>
    %41 = arith.addf %39, %40 : vector<16x16xf32>
    %cst_25 = arith.constant dense<0xFF800000> : vector<16xf32>
    %42 = vector.multi_reduction <maximumf>, %41, %cst_25 [1] : vector<16x16xf32> to vector<16xf32>
    %43 = vector.shape_cast %42 : vector<16xf32> to vector<16x1xf32>
    %44 = vector.broadcast %43 : vector<16x1xf32> to vector<16x16xf32>
    %45 = arith.subf %41, %44 : vector<16x16xf32>
    %46 = math.exp %45 : vector<16x16xf32>
    %cst_26 = arith.constant dense<0.000000e+00> : vector<16xf32>
    %47 = vector.multi_reduction <add>, %46, %cst_26 [1] : vector<16x16xf32> to vector<16xf32>
    %48 = vector.shape_cast %47 : vector<16xf32> to vector<16x1xf32>
    %49 = vector.broadcast %48 : vector<16x1xf32> to vector<16x16xf32>
    %50 = arith.divf %46, %49 : vector<16x16xf32>
    %cst_27 = arith.constant dense<0.000000e+00> : vector<16x32xf32>
    %51 = tpu.matmul %50, %35, %cst_27 {dimension_numbers = #tpu.dot_dimension_numbers<[1], [0], [0], [1], [0, 0, 1, 1], [], []>} : vector<16x16xf32>, vector<16x32xf32>, vector<16x32xf32> -> vector<16x32xf32>
    %c0_28 = arith.constant 0 : index
    %c0_29 = arith.constant 0 : index
    %c64 = arith.constant 64 : index
    %52 = vector.load %arg2[%c0_28, %c0_29, %c64] : memref<1x16x128xbf16, #tpu.memory_space<vmem>>, vector<1x16x32xbf16>
    %53 = vector.shape_cast %52 : vector<1x16x32xbf16> to vector<16x32xbf16>
    %54 = arith.extf %53 : vector<16x32xbf16> to vector<16x32xf32>
    %c0_30 = arith.constant 0 : index
    %c0_31 = arith.constant 0 : index
    %c64_32 = arith.constant 64 : index
    %55 = vector.load %arg3[%c0_30, %c0_31, %c64_32] : memref<1x16x128xbf16, #tpu.memory_space<vmem>>, vector<1x16x32xbf16>
    %56 = vector.shape_cast %55 : vector<1x16x32xbf16> to vector<16x32xbf16>
    %57 = arith.extf %56 : vector<16x32xbf16> to vector<16x32xf32>
    %c0_33 = arith.constant 0 : index
    %c0_34 = arith.constant 0 : index
    %c64_35 = arith.constant 64 : index
    %58 = vector.load %arg4[%c0_33, %c0_34, %c64_35] : memref<1x16x128xbf16, #tpu.memory_space<vmem>>, vector<1x16x32xbf16>
    %59 = vector.shape_cast %58 : vector<1x16x32xbf16> to vector<16x32xbf16>
    %60 = arith.extf %59 : vector<16x32xbf16> to vector<16x32xf32>
    %61 = tpu.transpose %57, [1, 0] : vector<16x32xf32> -> vector<32x16xf32>
    %cst_36 = arith.constant dense<0.000000e+00> : vector<16x16xf32>
    %62 = tpu.matmul %54, %61, %cst_36 {dimension_numbers = #tpu.dot_dimension_numbers<[1], [0], [0], [1], [0, 0, 1, 1], [], []>} : vector<16x32xf32>, vector<32x16xf32>, vector<16x16xf32> -> vector<16x16xf32>
    %cst_37 = arith.constant 0.176776692 : f32
    %63 = vector.broadcast %cst_37 : f32 to vector<16x16xf32>
    %64 = arith.mulf %62, %63 : vector<16x16xf32>
    %65 = vector.broadcast %1 : vector<1x16xf32> to vector<16x16xf32>
    %66 = arith.addf %64, %65 : vector<16x16xf32>
    %cst_38 = arith.constant dense<0xFF800000> : vector<16xf32>
    %67 = vector.multi_reduction <maximumf>, %66, %cst_38 [1] : vector<16x16xf32> to vector<16xf32>
    %68 = vector.shape_cast %67 : vector<16xf32> to vector<16x1xf32>
    %69 = vector.broadcast %68 : vector<16x1xf32> to vector<16x16xf32>
    %70 = arith.subf %66, %69 : vector<16x16xf32>
    %71 = math.exp %70 : vector<16x16xf32>
    %cst_39 = arith.constant dense<0.000000e+00> : vector<16xf32>
    %72 = vector.multi_reduction <add>, %71, %cst_39 [1] : vector<16x16xf32> to vector<16xf32>
    %73 = vector.shape_cast %72 : vector<16xf32> to vector<16x1xf32>
    %74 = vector.broadcast %73 : vector<16x1xf32> to vector<16x16xf32>
    %75 = arith.divf %71, %74 : vector<16x16xf32>
    %cst_40 = arith.constant dense<0.000000e+00> : vector<16x32xf32>
    %76 = tpu.matmul %75, %60, %cst_40 {dimension_numbers = #tpu.dot_dimension_numbers<[1], [0], [0], [1], [0, 0, 1, 1], [], []>} : vector<16x16xf32>, vector<16x32xf32>, vector<16x32xf32> -> vector<16x32xf32>
    %c0_41 = arith.constant 0 : index
    %c0_42 = arith.constant 0 : index
    %c96 = arith.constant 96 : index
    %77 = vector.load %arg2[%c0_41, %c0_42, %c96] : memref<1x16x128xbf16, #tpu.memory_space<vmem>>, vector<1x16x32xbf16>
    %78 = vector.shape_cast %77 : vector<1x16x32xbf16> to vector<16x32xbf16>
    %79 = arith.extf %78 : vector<16x32xbf16> to vector<16x32xf32>
    %c0_43 = arith.constant 0 : index
    %c0_44 = arith.constant 0 : index
    %c96_45 = arith.constant 96 : index
    %80 = vector.load %arg3[%c0_43, %c0_44, %c96_45] : memref<1x16x128xbf16, #tpu.memory_space<vmem>>, vector<1x16x32xbf16>
    %81 = vector.shape_cast %80 : vector<1x16x32xbf16> to vector<16x32xbf16>
    %82 = arith.extf %81 : vector<16x32xbf16> to vector<16x32xf32>
    %c0_46 = arith.constant 0 : index
    %c0_47 = arith.constant 0 : index
    %c96_48 = arith.constant 96 : index
    %83 = vector.load %arg4[%c0_46, %c0_47, %c96_48] : memref<1x16x128xbf16, #tpu.memory_space<vmem>>, vector<1x16x32xbf16>
    %84 = vector.shape_cast %83 : vector<1x16x32xbf16> to vector<16x32xbf16>
    %85 = arith.extf %84 : vector<16x32xbf16> to vector<16x32xf32>
    %86 = tpu.transpose %82, [1, 0] : vector<16x32xf32> -> vector<32x16xf32>
    %cst_49 = arith.constant dense<0.000000e+00> : vector<16x16xf32>
    %87 = tpu.matmul %79, %86, %cst_49 {dimension_numbers = #tpu.dot_dimension_numbers<[1], [0], [0], [1], [0, 0, 1, 1], [], []>} : vector<16x32xf32>, vector<32x16xf32>, vector<16x16xf32> -> vector<16x16xf32>
    %cst_50 = arith.constant 0.176776692 : f32
    %88 = vector.broadcast %cst_50 : f32 to vector<16x16xf32>
    %89 = arith.mulf %87, %88 : vector<16x16xf32>
    %90 = vector.broadcast %1 : vector<1x16xf32> to vector<16x16xf32>
    %91 = arith.addf %89, %90 : vector<16x16xf32>
    %cst_51 = arith.constant dense<0xFF800000> : vector<16xf32>
    %92 = vector.multi_reduction <maximumf>, %91, %cst_51 [1] : vector<16x16xf32> to vector<16xf32>
    %93 = vector.shape_cast %92 : vector<16xf32> to vector<16x1xf32>
    %94 = vector.broadcast %93 : vector<16x1xf32> to vector<16x16xf32>
    %95 = arith.subf %91, %94 : vector<16x16xf32>
    %96 = math.exp %95 : vector<16x16xf32>
    %cst_52 = arith.constant dense<0.000000e+00> : vector<16xf32>
    %97 = vector.multi_reduction <add>, %96, %cst_52 [1] : vector<16x16xf32> to vector<16xf32>
    %98 = vector.shape_cast %97 : vector<16xf32> to vector<16x1xf32>
    %99 = vector.broadcast %98 : vector<16x1xf32> to vector<16x16xf32>
    %100 = arith.divf %96, %99 : vector<16x16xf32>
    %cst_53 = arith.constant dense<0.000000e+00> : vector<16x32xf32>
    %101 = tpu.matmul %100, %85, %cst_53 {dimension_numbers = #tpu.dot_dimension_numbers<[1], [0], [0], [1], [0, 0, 1, 1], [], []>} : vector<16x16xf32>, vector<16x32xf32>, vector<16x32xf32> -> vector<16x32xf32>
    %102 = tpu.concatenate %26, %51, %76, %101 in 1 : vector<16x32xf32>, vector<16x32xf32>, vector<16x32xf32>, vector<16x32xf32> -> vector<16x128xf32>
    %103 = arith.truncf %102 : vector<16x128xf32> to vector<16x128xbf16>
    %c0_54 = arith.constant 0 : index
    %c0_55 = arith.constant 0 : index
    %c0_56 = arith.constant 0 : index
    %104 = vector.load %arg5[%c0_54, %c0_55, %c0_56] : memref<1x16x128xbf16, #tpu.memory_space<vmem>>, vector<1x16x128xbf16>
    %105 = vector.shape_cast %104 : vector<1x16x128xbf16> to vector<16x128xbf16>
    %106 = vector.shape_cast %103 : vector<16x128xbf16> to vector<1x16x128xbf16>
    tpu.vector_store %arg5[%c0_54, %c0_55, %c0_56], %106 {strides = array<i32>} : memref<1x16x128xbf16, #tpu.memory_space<vmem>>, vector<1x16x128xbf16>,
    return
  }
  func.func @transform_0(%arg0: i32) -> (i32, i32, i32) {
    %c0_i32 = arith.constant 0 : i32
    %c0_i32_0 = arith.constant 0 : i32
    %c0_i32_1 = arith.constant 0 : i32
    return %arg0, %c0_i32, %c0_i32_0 : i32, i32, i32
  }
  func.func @transform_1(%arg0: i32) -> (i32, i32, i32) {
    %c0_i32 = arith.constant 0 : i32
    %c0_i32_0 = arith.constant 0 : i32
    %c0_i32_1 = arith.constant 0 : i32
    return %arg0, %c0_i32, %c0_i32_0 : i32, i32, i32
  }
  func.func @transform_2(%arg0: i32) -> (i32, i32, i32) {
    %c0_i32 = arith.constant 0 : i32
    %c1_i32 = arith.constant 1 : i32
    %c0_i32_0 = arith.constant 0 : i32
    return %arg0, %c0_i32, %c1_i32 : i32, i32, i32
  }
  func.func @transform_3(%arg0: i32) -> (i32, i32, i32) {
    %c0_i32 = arith.constant 0 : i32
    %c2_i32 = arith.constant 2 : i32
    %c0_i32_0 = arith.constant 0 : i32
    return %arg0, %c0_i32, %c2_i32 : i32, i32, i32
  }
  func.func @transform_4(%arg0: i32) -> (i32, i32, i32) {
    %c0_i32 = arith.constant 0 : i32
    %c0_i32_0 = arith.constant 0 : i32
    %c0_i32_1 = arith.constant 0 : i32
    return %arg0, %c0_i32, %c0_i32_0 : i32, i32, i32
  }
}

module attributes {stable_mosaic.version = 11 : i64} {
  func.func @_ln_kernel(%arg0: i32, %arg1: memref<16x128xbf16, #tpu.memory_space<vmem>>, %arg2: memref<16x128xbf16, #tpu.memory_space<vmem>>, %arg3: memref<1x128xf32, #tpu.memory_space<vmem>>, %arg4: memref<1x128xf32, #tpu.memory_space<vmem>>, %arg5: memref<16x128xbf16, #tpu.memory_space<vmem>>) attributes {dimension_semantics = [#tpu.dimension_semantics<parallel>], iteration_bounds = array<i64: 2>, scalar_prefetch = 0 : i64, scratch_operands = 0 : i64, tpu.core_type = #tpu.core_type<tc>, window_params = [{transform_indices = @transform_0, window_bounds = array<i64: 16, 128>}, {transform_indices = @transform_1, window_bounds = array<i64: 16, 128>}, {pipeline_mode = #tpu.pipeline_mode<synchronous>, transform_indices = @transform_2, window_bounds = array<i64: 1, 128>}, {pipeline_mode = #tpu.pipeline_mode<synchronous>, transform_indices = @transform_3, window_bounds = array<i64: 1, 128>}, {transform_indices = @transform_4, window_bounds = array<i64: 16, 128>}]} {
    %c0 = arith.constant 0 : index
    %c0_0 = arith.constant 0 : index
    %0 = vector.load %arg1[%c0, %c0_0] : memref<16x128xbf16, #tpu.memory_space<vmem>>, vector<16x128xbf16>
    %1 = arith.extf %0 : vector<16x128xbf16> to vector<16x128xf32>
    %c0_1 = arith.constant 0 : index
    %c0_2 = arith.constant 0 : index
    %2 = vector.load %arg2[%c0_1, %c0_2] : memref<16x128xbf16, #tpu.memory_space<vmem>>, vector<16x128xbf16>
    %3 = arith.extf %2 : vector<16x128xbf16> to vector<16x128xf32>
    %4 = arith.addf %1, %3 : vector<16x128xf32>
    %cst = arith.constant dense<0.000000e+00> : vector<16xf32>
    %5 = vector.multi_reduction <add>, %4, %cst [1] : vector<16x128xf32> to vector<16xf32>
    %6 = vector.shape_cast %5 : vector<16xf32> to vector<16x1xf32>
    %cst_3 = arith.constant 1.280000e+02 : f32
    %7 = vector.broadcast %cst_3 : f32 to vector<16x1xf32>
    %8 = arith.divf %6, %7 : vector<16x1xf32>
    %9 = vector.broadcast %8 : vector<16x1xf32> to vector<16x128xf32>
    %10 = arith.subf %4, %9 : vector<16x128xf32>
    %11 = arith.mulf %10, %10 : vector<16x128xf32>
    %cst_4 = arith.constant dense<0.000000e+00> : vector<16xf32>
    %12 = vector.multi_reduction <add>, %11, %cst_4 [1] : vector<16x128xf32> to vector<16xf32>
    %13 = vector.shape_cast %12 : vector<16xf32> to vector<16x1xf32>
    %cst_5 = arith.constant 1.280000e+02 : f32
    %14 = vector.broadcast %cst_5 : f32 to vector<16x1xf32>
    %15 = arith.divf %13, %14 : vector<16x1xf32>
    %16 = vector.broadcast %8 : vector<16x1xf32> to vector<16x128xf32>
    %17 = arith.subf %4, %16 : vector<16x128xf32>
    %cst_6 = arith.constant 9.99999996E-13 : f32
    %18 = vector.broadcast %cst_6 : f32 to vector<16x1xf32>
    %19 = arith.addf %15, %18 : vector<16x1xf32>
    %20 = math.rsqrt %19 : vector<16x1xf32>
    %21 = vector.broadcast %20 : vector<16x1xf32> to vector<16x128xf32>
    %22 = arith.mulf %17, %21 : vector<16x128xf32>
    %c0_7 = arith.constant 0 : index
    %c0_8 = arith.constant 0 : index
    %23 = vector.load %arg3[%c0_7, %c0_8] : memref<1x128xf32, #tpu.memory_space<vmem>>, vector<1x128xf32>
    %24 = vector.broadcast %23 : vector<1x128xf32> to vector<16x128xf32>
    %25 = arith.mulf %22, %24 : vector<16x128xf32>
    %c0_9 = arith.constant 0 : index
    %c0_10 = arith.constant 0 : index
    %26 = vector.load %arg4[%c0_9, %c0_10] : memref<1x128xf32, #tpu.memory_space<vmem>>, vector<1x128xf32>
    %27 = vector.broadcast %26 : vector<1x128xf32> to vector<16x128xf32>
    %28 = arith.addf %25, %27 : vector<16x128xf32>
    %29 = arith.truncf %28 : vector<16x128xf32> to vector<16x128xbf16>
    %c0_11 = arith.constant 0 : index
    %c0_12 = arith.constant 0 : index
    %30 = vector.load %arg5[%c0_11, %c0_12] : memref<16x128xbf16, #tpu.memory_space<vmem>>, vector<16x128xbf16>
    tpu.vector_store %arg5[%c0_11, %c0_12], %29 {strides = array<i32>} : memref<16x128xbf16, #tpu.memory_space<vmem>>, vector<16x128xbf16>,
    return
  }
  func.func @transform_0(%arg0: i32) -> (i32, i32) {
    %c0_i32 = arith.constant 0 : i32
    %c0_i32_0 = arith.constant 0 : i32
    return %arg0, %c0_i32 : i32, i32
  }
  func.func @transform_1(%arg0: i32) -> (i32, i32) {
    %c0_i32 = arith.constant 0 : i32
    %c0_i32_0 = arith.constant 0 : i32
    return %arg0, %c0_i32 : i32, i32
  }
  func.func @transform_2(%arg0: i32) -> (i32, i32) {
    %c0_i32 = arith.constant 0 : i32
    %c0_i32_0 = arith.constant 0 : i32
    %c0_i32_1 = arith.constant 0 : i32
    return %c0_i32, %c0_i32_0 : i32, i32
  }
  func.func @transform_3(%arg0: i32) -> (i32, i32) {
    %c0_i32 = arith.constant 0 : i32
    %c0_i32_0 = arith.constant 0 : i32
    %c0_i32_1 = arith.constant 0 : i32
    return %c0_i32, %c0_i32_0 : i32, i32
  }
  func.func @transform_4(%arg0: i32) -> (i32, i32) {
    %c0_i32 = arith.constant 0 : i32
    %c0_i32_0 = arith.constant 0 : i32
    return %arg0, %c0_i32 : i32, i32
  }
}

module attributes {stable_mosaic.version = 11 : i64} {
  func.func @_dense_kernel(%arg0: i32, %arg1: i32, %arg2: i32, %arg3: memref<16x128xbf16, #tpu.memory_space<vmem>>, %arg4: memref<128x256xbf16, #tpu.memory_space<vmem>>, %arg5: memref<1x256xf32, #tpu.memory_space<vmem>>, %arg6: memref<16x256xbf16, #tpu.memory_space<vmem>>, %arg7: memref<16x256xf32, #tpu.memory_space<vmem>>) attributes {dimension_semantics = [#tpu.dimension_semantics<parallel>, #tpu.dimension_semantics<parallel>, #tpu.dimension_semantics<arbitrary>], iteration_bounds = array<i64: 2, 1, 1>, scalar_prefetch = 0 : i64, scratch_operands = 1 : i64, tpu.core_type = #tpu.core_type<tc>, window_params = [{transform_indices = @transform_0, window_bounds = array<i64: 16, 128>}, {transform_indices = @transform_1, window_bounds = array<i64: 128, 256>}, {transform_indices = @transform_2, window_bounds = array<i64: 1, 256>}, {transform_indices = @transform_3, window_bounds = array<i64: 16, 256>}]} {
    %c0_i32 = arith.constant 0 : i32
    %0 = arith.cmpi eq, %arg2, %c0_i32 : i32
    %1 = arith.extui %0 : i1 to i32
    %c0_i32_0 = arith.constant 0 : i32
    %2 = arith.cmpi ne, %1, %c0_i32_0 : i32
    scf.if %2 {
      %cst_10 = arith.constant 0.000000e+00 : f32
      %12 = vector.broadcast %cst_10 : f32 to vector<16x256xf32>
      %c0_11 = arith.constant 0 : index
      %c0_12 = arith.constant 0 : index
      %13 = vector.load %arg7[%c0_11, %c0_12] : memref<16x256xf32, #tpu.memory_space<vmem>>, vector<16x256xf32>
      tpu.vector_store %arg7[%c0_11, %c0_12], %12 {strides = array<i32>} : memref<16x256xf32, #tpu.memory_space<vmem>>, vector<16x256xf32>,
    } else {
    }
    %c0 = arith.constant 0 : index
    %c0_1 = arith.constant 0 : index
    %3 = vector.load %arg7[%c0, %c0_1] : memref<16x256xf32, #tpu.memory_space<vmem>>, vector<16x256xf32>
    %c0_2 = arith.constant 0 : index
    %c0_3 = arith.constant 0 : index
    %4 = vector.load %arg3[%c0_2, %c0_3] : memref<16x128xbf16, #tpu.memory_space<vmem>>, vector<16x128xbf16>
    %c0_4 = arith.constant 0 : index
    %c0_5 = arith.constant 0 : index
    %5 = vector.load %arg4[%c0_4, %c0_5] : memref<128x256xbf16, #tpu.memory_space<vmem>>, vector<128x256xbf16>
    %cst = arith.constant dense<0.000000e+00> : vector<16x256xf32>
    %6 = tpu.matmul %4, %5, %cst {dimension_numbers = #tpu.dot_dimension_numbers<[1], [0], [0], [1], [0, 0, 1, 1], [], []>} : vector<16x128xbf16>, vector<128x256xbf16>, vector<16x256xf32> -> vector<16x256xf32>
    %7 = arith.addf %3, %6 : vector<16x256xf32>
    %c0_6 = arith.constant 0 : index
    %c0_7 = arith.constant 0 : index
    %8 = vector.load %arg7[%c0_6, %c0_7] : memref<16x256xf32, #tpu.memory_space<vmem>>, vector<16x256xf32>
    tpu.vector_store %arg7[%c0_6, %c0_7], %7 {strides = array<i32>} : memref<16x256xf32, #tpu.memory_space<vmem>>, vector<16x256xf32>,
    %c0_i32_8 = arith.constant 0 : i32
    %9 = arith.cmpi eq, %arg2, %c0_i32_8 : i32
    %10 = arith.extui %9 : i1 to i32
    %c0_i32_9 = arith.constant 0 : i32
    %11 = arith.cmpi ne, %10, %c0_i32_9 : i32
    scf.if %11 {
      %c0_10 = arith.constant 0 : index
      %c0_11 = arith.constant 0 : index
      %12 = vector.load %arg7[%c0_10, %c0_11] : memref<16x256xf32, #tpu.memory_space<vmem>>, vector<16x256xf32>
      %c0_12 = arith.constant 0 : index
      %c0_13 = arith.constant 0 : index
      %13 = vector.load %arg5[%c0_12, %c0_13] : memref<1x256xf32, #tpu.memory_space<vmem>>, vector<1x256xf32>
      %14 = vector.broadcast %13 : vector<1x256xf32> to vector<16x256xf32>
      %15 = arith.addf %12, %14 : vector<16x256xf32>
      %16 = arith.mulf %15, %15 : vector<16x256xf32>
      %17 = arith.mulf %15, %16 : vector<16x256xf32>
      %cst_14 = arith.constant 4.471500e-02 : f32
      %18 = vector.broadcast %cst_14 : f32 to vector<16x256xf32>
      %19 = arith.mulf %18, %17 : vector<16x256xf32>
      %20 = arith.addf %15, %19 : vector<16x256xf32>
      %cst_15 = arith.constant 0.797884583 : f32
      %21 = vector.broadcast %cst_15 : f32 to vector<16x256xf32>
      %22 = arith.mulf %21, %20 : vector<16x256xf32>
      %23 = math.tanh %22 : vector<16x256xf32>
      %cst_16 = arith.constant 1.000000e+00 : f32
      %24 = vector.broadcast %cst_16 : f32 to vector<16x256xf32>
      %25 = arith.addf %24, %23 : vector<16x256xf32>
      %cst_17 = arith.constant 5.000000e-01 : f32
      %26 = vector.broadcast %cst_17 : f32 to vector<16x256xf32>
      %27 = arith.mulf %26, %25 : vector<16x256xf32>
      %28 = arith.mulf %15, %27 : vector<16x256xf32>
      %29 = arith.truncf %28 : vector<16x256xf32> to vector<16x256xbf16>
      %c0_18 = arith.constant 0 : index
      %c0_19 = arith.constant 0 : index
      %30 = vector.load %arg6[%c0_18, %c0_19] : memref<16x256xbf16, #tpu.memory_space<vmem>>, vector<16x256xbf16>
      tpu.vector_store %arg6[%c0_18, %c0_19], %29 {strides = array<i32>} : memref<16x256xbf16, #tpu.memory_space<vmem>>, vector<16x256xbf16>,
    } else {
    }
    return
  }
  func.func @transform_0(%arg0: i32, %arg1: i32, %arg2: i32) -> (i32, i32) {
    %c0_i32 = arith.constant 0 : i32
    return %arg0, %arg2 : i32, i32
  }
  func.func @transform_1(%arg0: i32, %arg1: i32, %arg2: i32) -> (i32, i32) {
    %c0_i32 = arith.constant 0 : i32
    return %arg2, %arg1 : i32, i32
  }
  func.func @transform_2(%arg0: i32, %arg1: i32, %arg2: i32) -> (i32, i32) {
    %c0_i32 = arith.constant 0 : i32
    %c0_i32_0 = arith.constant 0 : i32
    return %c0_i32, %arg1 : i32, i32
  }
  func.func @transform_3(%arg0: i32, %arg1: i32, %arg2: i32) -> (i32, i32) {
    %c0_i32 = arith.constant 0 : i32
    return %arg0, %arg1 : i32, i32
  }
}

module attributes {stable_mosaic.version = 11 : i64} {
  func.func @_dense_kernel(%arg0: i32, %arg1: i32, %arg2: i32, %arg3: memref<16x256xbf16, #tpu.memory_space<vmem>>, %arg4: memref<256x128xbf16, #tpu.memory_space<vmem>>, %arg5: memref<1x128xf32, #tpu.memory_space<vmem>>, %arg6: memref<16x128xbf16, #tpu.memory_space<vmem>>, %arg7: memref<16x128xf32, #tpu.memory_space<vmem>>) attributes {dimension_semantics = [#tpu.dimension_semantics<parallel>, #tpu.dimension_semantics<parallel>, #tpu.dimension_semantics<arbitrary>], iteration_bounds = array<i64: 2, 1, 1>, scalar_prefetch = 0 : i64, scratch_operands = 1 : i64, tpu.core_type = #tpu.core_type<tc>, window_params = [{transform_indices = @transform_0, window_bounds = array<i64: 16, 256>}, {transform_indices = @transform_1, window_bounds = array<i64: 256, 128>}, {transform_indices = @transform_2, window_bounds = array<i64: 1, 128>}, {transform_indices = @transform_3, window_bounds = array<i64: 16, 128>}]} {
    %c0_i32 = arith.constant 0 : i32
    %0 = arith.cmpi eq, %arg2, %c0_i32 : i32
    %1 = arith.extui %0 : i1 to i32
    %c0_i32_0 = arith.constant 0 : i32
    %2 = arith.cmpi ne, %1, %c0_i32_0 : i32
    scf.if %2 {
      %cst_10 = arith.constant 0.000000e+00 : f32
      %12 = vector.broadcast %cst_10 : f32 to vector<16x128xf32>
      %c0_11 = arith.constant 0 : index
      %c0_12 = arith.constant 0 : index
      %13 = vector.load %arg7[%c0_11, %c0_12] : memref<16x128xf32, #tpu.memory_space<vmem>>, vector<16x128xf32>
      tpu.vector_store %arg7[%c0_11, %c0_12], %12 {strides = array<i32>} : memref<16x128xf32, #tpu.memory_space<vmem>>, vector<16x128xf32>,
    } else {
    }
    %c0 = arith.constant 0 : index
    %c0_1 = arith.constant 0 : index
    %3 = vector.load %arg7[%c0, %c0_1] : memref<16x128xf32, #tpu.memory_space<vmem>>, vector<16x128xf32>
    %c0_2 = arith.constant 0 : index
    %c0_3 = arith.constant 0 : index
    %4 = vector.load %arg3[%c0_2, %c0_3] : memref<16x256xbf16, #tpu.memory_space<vmem>>, vector<16x256xbf16>
    %c0_4 = arith.constant 0 : index
    %c0_5 = arith.constant 0 : index
    %5 = vector.load %arg4[%c0_4, %c0_5] : memref<256x128xbf16, #tpu.memory_space<vmem>>, vector<256x128xbf16>
    %cst = arith.constant dense<0.000000e+00> : vector<16x128xf32>
    %6 = tpu.matmul %4, %5, %cst {dimension_numbers = #tpu.dot_dimension_numbers<[1], [0], [0], [1], [0, 0, 1, 1], [], []>} : vector<16x256xbf16>, vector<256x128xbf16>, vector<16x128xf32> -> vector<16x128xf32>
    %7 = arith.addf %3, %6 : vector<16x128xf32>
    %c0_6 = arith.constant 0 : index
    %c0_7 = arith.constant 0 : index
    %8 = vector.load %arg7[%c0_6, %c0_7] : memref<16x128xf32, #tpu.memory_space<vmem>>, vector<16x128xf32>
    tpu.vector_store %arg7[%c0_6, %c0_7], %7 {strides = array<i32>} : memref<16x128xf32, #tpu.memory_space<vmem>>, vector<16x128xf32>,
    %c0_i32_8 = arith.constant 0 : i32
    %9 = arith.cmpi eq, %arg2, %c0_i32_8 : i32
    %10 = arith.extui %9 : i1 to i32
    %c0_i32_9 = arith.constant 0 : i32
    %11 = arith.cmpi ne, %10, %c0_i32_9 : i32
    scf.if %11 {
      %c0_10 = arith.constant 0 : index
      %c0_11 = arith.constant 0 : index
      %12 = vector.load %arg7[%c0_10, %c0_11] : memref<16x128xf32, #tpu.memory_space<vmem>>, vector<16x128xf32>
      %c0_12 = arith.constant 0 : index
      %c0_13 = arith.constant 0 : index
      %13 = vector.load %arg5[%c0_12, %c0_13] : memref<1x128xf32, #tpu.memory_space<vmem>>, vector<1x128xf32>
      %14 = vector.broadcast %13 : vector<1x128xf32> to vector<16x128xf32>
      %15 = arith.addf %12, %14 : vector<16x128xf32>
      %16 = arith.truncf %15 : vector<16x128xf32> to vector<16x128xbf16>
      %c0_14 = arith.constant 0 : index
      %c0_15 = arith.constant 0 : index
      %17 = vector.load %arg6[%c0_14, %c0_15] : memref<16x128xbf16, #tpu.memory_space<vmem>>, vector<16x128xbf16>
      tpu.vector_store %arg6[%c0_14, %c0_15], %16 {strides = array<i32>} : memref<16x128xbf16, #tpu.memory_space<vmem>>, vector<16x128xbf16>,
    } else {
    }
    return
  }
  func.func @transform_0(%arg0: i32, %arg1: i32, %arg2: i32) -> (i32, i32) {
    %c0_i32 = arith.constant 0 : i32
    return %arg0, %arg2 : i32, i32
  }
  func.func @transform_1(%arg0: i32, %arg1: i32, %arg2: i32) -> (i32, i32) {
    %c0_i32 = arith.constant 0 : i32
    return %arg2, %arg1 : i32, i32
  }
  func.func @transform_2(%arg0: i32, %arg1: i32, %arg2: i32) -> (i32, i32) {
    %c0_i32 = arith.constant 0 : i32
    %c0_i32_0 = arith.constant 0 : i32
    return %c0_i32, %arg1 : i32, i32
  }
  func.func @transform_3(%arg0: i32, %arg1: i32, %arg2: i32) -> (i32, i32) {
    %c0_i32 = arith.constant 0 : i32
    return %arg0, %arg1 : i32, i32
  }
}

</mosaic_0001>

<llo_original>
// kernel: distilbert_classifier.15
$region0: #{distilbert_classifier.15}
  #allocation0 [shape = 'u32[]', space=smem, size = 0x4, offset = 0x4, fixed_abs, tag = 'smem constant byte address 0x4 - core index']
  #allocation1 [shape = 'u32[144,128]{1,0:T(1,128)}', space=vmem, size = 0x12000, scoped, tag = 'internal scratch']
  %s0 = inlined_call_operand.vmem [shape: f32[32,128], index: 0, kind: input, shape index: {}]
  %s1 = inlined_call_operand.vmem [shape: f32[1,128], index: 1, kind: input, shape index: {}]
  %s2 = inlined_call_operand.vmem [shape: f32[1,128], index: 2, kind: input, shape index: {}]
  %s3 = inlined_call_operand.vmem [shape: bf16[32,128], index: 3, kind: output, shape index: {}]
  %s4 = sld [smem:[#allocation0]]
  $region45: #{distilbert_classifier.15} parent=0
    _
  %s6 = ssub.s32 1, %s4
  %s7 = scalar_select 0, %s6, %s4
  loop: start=0, step=1, limit=4
  $region2: #{distilbert_classifier.15} parent=0 // loop_pre_header
    _
  $region3: #{distilbert_classifier.15} parent=0 // loop_header
    %s9 = sphi 0, %s13
    %p10 = scmp.ge.s32.totalorder %s9, 4
    %s19 = sphi 0, %s21
    %s22 = sphi 0, %s19
    %s23 = sphi 0, %s22
    %s39 = sphi 0, %s23
    %s43 = sphi 0, %s43
    %s45 = sphi 0, %s43
    %s46 = sphi 0, %s45
    %s60 = sphi 0, %s46
    %s64 = sphi 0, %s64
    %s66 = sphi 0, %s64
    %s67 = sphi 0, %s66
    %s81 = sphi 0, %s67
    %s87 = sphi 0, %s89
    %s90 = sphi 0, %s87
    %s91 = sphi 0, %s90
    %s107 = sphi 0, %s91
  $region4: #{distilbert_classifier.15} parent=0 // loop_header_branch
    %12 = sbr.rel (%p10) target = $region8
  $region5: #{distilbert_classifier.15} parent=0 // loop_body
    %s14 = ssub.s32 %s9, 1
    %s15 = ssub.s32 %s9, 2
    %s16 = sadd.s32 %s9, 1
    %s17 = ssub.s32 %s9, %s16
    %p18 = scmp.eq.s32.totalorder %s17, 0
    %s20 = sadd.s32 %s19, 1
    %s21 = scalar_select %p18, %s19, %s20
    %p24 = pneg %p18
    %p25 = scmp.eq.s32.totalorder %s9, 1
    %p26 = por %p24, %p25
    %p27 = scmp.ne.s32.totalorder %s19, %s22
    %p28 = scmp.eq.s32.totalorder %s9, 0
    %p29 = por %p27, %p28
    %p30 = scmp.ne.s32.totalorder %s19, %s22
    %p31 = scmp.eq.s32.totalorder %s14, 1
    %p32 = por %p30, %p31
    %p33 = scmp.ne.s32.totalorder %s22, %s23
    %p34 = scmp.eq.s32.totalorder %s14, 0
    %p35 = por %p33, %p34
    %p36 = scmp.ne.s32.totalorder %s22, %s23
    %p37 = scmp.eq.s32.totalorder %s15, 1
    %p38 = por %p36, %p37
    %p40 = scmp.ne.s32.totalorder %s23, %s39
    %p41 = scmp.eq.s32.totalorder %s15, 0
    %p42 = por %p40, %p41
    %s44 = sadd.s32 %s43, 1
    %p47 = scmp.eq.s32.totalorder %s9, 1
    %p48 = scmp.ne.s32.totalorder %s43, %s45
    %p49 = scmp.eq.s32.totalorder %s9, 0
    %p50 = por %p48, %p49
    %p51 = scmp.ne.s32.totalorder %s43, %s45
    %p52 = scmp.eq.s32.totalorder %s14, 1
    %p53 = por %p51, %p52
    %p54 = scmp.ne.s32.totalorder %s45, %s46
    %p55 = scmp.eq.s32.totalorder %s14, 0
    %p56 = por %p54, %p55
    %p57 = scmp.ne.s32.totalorder %s45, %s46
    %p58 = scmp.eq.s32.totalorder %s15, 1
    %p59 = por %p57, %p58
    %p61 = scmp.ne.s32.totalorder %s46, %s60
    %p62 = scmp.eq.s32.totalorder %s15, 0
    %p63 = por %p61, %p62
    %s65 = sadd.s32 %s64, 1
    %p68 = scmp.eq.s32.totalorder %s9, 1
    %p69 = scmp.ne.s32.totalorder %s64, %s66
    %p70 = scmp.eq.s32.totalorder %s9, 0
    %p71 = por %p69, %p70
    %p72 = scmp.ne.s32.totalorder %s64, %s66
    %p73 = scmp.eq.s32.totalorder %s14, 1
    %p74 = por %p72, %p73
    %p75 = scmp.ne.s32.totalorder %s66, %s67
    %p76 = scmp.eq.s32.totalorder %s14, 0
    %p77 = por %p75, %p76
    %p78 = scmp.ne.s32.totalorder %s66, %s67
    %p79 = scmp.eq.s32.totalorder %s15, 1
    %p80 = por %p78, %p79
    %p82 = scmp.ne.s32.totalorder %s67, %s81
    %p83 = scmp.eq.s32.totalorder %s15, 0
    %p84 = por %p82, %p83
    %s85 = ssub.s32 %s9, %s16
    %p86 = scmp.eq.s32.totalorder %s85, 0
    %s88 = sadd.s32 %s87, 1
    %s89 = scalar_select %p86, %s87, %s88
    %p92 = pneg %p86
    %p93 = scmp.eq.s32.totalorder %s9, 1
    %p94 = por %p92, %p93
    %p95 = scmp.ne.s32.totalorder %s87, %s90
    %p96 = scmp.eq.s32.totalorder %s9, 0
    %p97 = por %p95, %p96
    %p98 = scmp.ne.s32.totalorder %s87, %s90
    %p99 = scmp.eq.s32.totalorder %s14, 1
    %p100 = por %p98, %p99
    %p101 = scmp.ne.s32.totalorder %s90, %s91
    %p102 = scmp.eq.s32.totalorder %s14, 0
    %p103 = por %p101, %p102
    %p104 = scmp.ne.s32.totalorder %s90, %s91
    %p105 = scmp.eq.s32.totalorder %s15, 1
    %p106 = por %p104, %p105
    %p108 = scmp.ne.s32.totalorder %s91, %s107
    %p109 = scmp.eq.s32.totalorder %s15, 0
    %p110 = por %p108, %p109
    %p111 = scmp.le.s32.totalorder 1, %s9
    %p112 = scmp.lt.s32.totalorder %s9, 3
    %p113 = pnand %p111, %p112
    %p114 = pneg %p113
    // Predicated region
    $region9: #{distilbert_classifier.15} parent=5 // pred_check
      _
    $region10: #{distilbert_classifier.15} parent=5 // pred_check_branch
      %116 = sbr.rel (%p113) target = $region12
    $region11: #{distilbert_classifier.15} parent=5 // pred_region
      %s117 = ssub.s32 %s9, 1
      // Predicated region
      $region13: #{distilbert_classifier.15} parent=11 // pred_check
        %p118 = pneg %p56
      $region14: #{distilbert_classifier.15} parent=11 // pred_check_branch
        %120 = sbr.rel (%p118) target = $region16
      $region15: #{distilbert_classifier.15} parent=11 // pred_region
        _
      $region16: #{distilbert_classifier.15} parent=11 // pred_fallthru
        _
      // Predicated region
      $region17: #{distilbert_classifier.15} parent=11 // pred_check
        %p121 = pneg %p77
      $region18: #{distilbert_classifier.15} parent=11 // pred_check_branch
        %123 = sbr.rel (%p121) target = $region20
      $region19: #{distilbert_classifier.15} parent=11 // pred_region
        _
      $region20: #{distilbert_classifier.15} parent=11 // pred_fallthru
        _
    $region12: #{distilbert_classifier.15} parent=5 // pred_fallthru
      _
    %p124 = scmp.lt.s32.totalorder %s9, 2
    // Predicated region
    $region21: #{distilbert_classifier.15} parent=5 // pred_check
      %p125 = pneg %p124
    $region22: #{distilbert_classifier.15} parent=5 // pred_check_branch
      %127 = sbr.rel (%p125) target = $region24
    $region23: #{distilbert_classifier.15} parent=5 // pred_region
      // Predicated region
      $region25: #{distilbert_classifier.15} parent=23 // pred_check
        %p128 = pneg %p29
      $region26: #{distilbert_classifier.15} parent=23 // pred_check_branch
        %130 = sbr.rel (%p128) target = $region28
      $region27: #{distilbert_classifier.15} parent=23 // pred_region
        %s131 = smul.u32 2, %s9
        %p132 = scmp.lt.s32.totalorder %s131, 3
        %s133 = scalar_select %p132, %s131, 3
        %s134 = smul.addr %s133, 8
        %s135 = scalar_lea.vmem %s0, %s134
        %s136 = smul.u32 2, %s9
      $region28: #{distilbert_classifier.15} parent=23 // pred_fallthru
        _
    $region24: #{distilbert_classifier.15} parent=5 // pred_fallthru
      _
    %p137 = scmp.le.s32.totalorder 1, %s9
    %p138 = scmp.lt.s32.totalorder %s9, 3
    %p139 = pnand %p137, %p138
    %p140 = pneg %p139
    // Predicated region
    $region29: #{distilbert_classifier.15} parent=5 // pred_check
      _
    $region30: #{distilbert_classifier.15} parent=5 // pred_check_branch
      %142 = sbr.rel (%p139) target = $region32
    $region31: #{distilbert_classifier.15} parent=5 // pred_region
      %s143 = ssub.s32 %s9, 1
      %s144 = smul.u32 2, %s14
      %p145 = scmp.lt.s32.totalorder %s144, 3
      %s146 = scalar_select %p145, %s144, 3
      %s147 = smul.addr %s146, 8
      %s148 = scalar_lea.vmem %s0, %s147
      %p149 = pneg %p35
      %p150 = pneg %p32
      %p151 = pneg %p56
      %p152 = pneg %p53
      %p153 = pneg %p77
      %p154 = pneg %p74
      %p155 = pneg %p103
      %p156 = pneg %p100
      %s157 = smul.u32 2, %s14
      %p158 = scmp.lt.s32.totalorder %s157, 3
      %s159 = scalar_select %p158, %s157, 3
      %s160 = smul.addr %s159, 4
      %s161 = scalar_lea.vmem %s3, %s160
      %s162 = smul.u32 2, %s14
      %p163 = scmp.lt.s32.totalorder %s162, 3
      %s164 = scalar_select %p163, %s162, 3
      %s165 = smul.addr %s164, 8
      %s166 = scalar_lea.vmem %s0, %s165
      %s167 = smul.u32 2, %s14
      %s168 = smul.u32 2, %s14
      %p169 = scmp.lt.s32.totalorder %s168, 3
      %s170 = scalar_select %p169, %s168, 3
      %s171 = smul.addr %s170, 4
      %s172 = scalar_lea.vmem %s3, %s171
      %s173 = smul.u32 2, %s14
      %v174 = vld [vmem:[%s166] sm:$0xff]
      %v175 = vld [vmem:[%s166 + $0x8] sm:$0xff]
      %176 = vadd.xlane.f32.xlu0 %v174
      %v177 = vpop.xlane.xlu0 %176
      %178 = vadd.xlane.f32.xlu0 %v175
      %v179 = vpop.xlane.xlu0 %178
      %v180 = vrcp.pop 128.0
      %v181 = vmul.f32 %v177, %v180
      %v182 = vmul.f32 %v179, %v180
      %v183 = vsub.f32 %v174, %v181
      %v184 = vsub.f32 %v175, %v182
      %v185 = vmul.f32 %v183, %v183
      %v186 = vmul.f32 %v184, %v184
      %187 = vadd.xlane.f32.xlu0 %v185
      %v188 = vpop.xlane.xlu0 %187
      %189 = vadd.xlane.f32.xlu0 %v186
      %v190 = vpop.xlane.xlu0 %189
      %v191 = vmul.f32 %v188, %v180
      %v192 = vmul.f32 %v190, %v180
      %v193 = vadd.f32 %v191, 1e-12
      %v194 = vadd.f32 %v192, 1e-12
      %v195 = vrsqrt.pop %v193
      %v196 = vrsqrt.pop %v194
      %v197 = vmul.f32 %v183, %v195
      %v198 = vmul.f32 %v184, %v196
      %v199 = vld [vmem:[%s1] sm:$0x1]
      %v201 = vlaneseq
      %v202 = vshrl.u32 %v201, 7
      %v203 = vsub.s32 0, %v202
      %v204 = vrot.slane %v199, %v203
      %v206 = vmul.f32 %v197, %v204
      %v207 = vmul.f32 %v198, %v204
      %v208 = vld [vmem:[%s2] sm:$0x1]
      %v210 = vlaneseq
      %v211 = vshrl.u32 %v210, 7
      %v212 = vsub.s32 0, %v211
      %v213 = vrot.slane %v208, %v212
      %v215 = vadd.f32 %v206, %v213
      %v216 = vadd.f32 %v207, %v213
      %v217 = vpack.c.bf16 %v216, %v215
      %v219 = vunpack.c.l.b16 %v217
      %v220 = vunpack.c.h.b16 %v217
      %v221 = vpack.c.b16 %v219, %v219
      %v222 = vpack.c.b16 %v220, %v220
      %225 = vst [vmem:[%s172] sm:$0xf] %v221
      %226 = vst [vmem:[%s172 + $0x4] sm:$0xf] %v222
      %s227 = smul.u32 2, %s14
      %p228 = scmp.lt.s32.totalorder %s227, 3
      %s229 = scalar_select %p228, %s227, 3
      %s230 = smul.addr %s229, 4
      %s231 = scalar_lea.vmem %s3, %s230
      // Predicated region
      $region33: #{distilbert_classifier.15} parent=31 // pred_check
        %p232 = pneg %p100
      $region34: #{distilbert_classifier.15} parent=31 // pred_check_branch
        %234 = sbr.rel (%p232) target = $region36
      $region35: #{distilbert_classifier.15} parent=31 // pred_region
        %s235 = smul.u32 2, %s14
      $region36: #{distilbert_classifier.15} parent=31 // pred_fallthru
        _
    $region32: #{distilbert_classifier.15} parent=5 // pred_fallthru
      _
    %p236 = scmp.le.s32.totalorder 2, %s9
    // Predicated region
    $region37: #{distilbert_classifier.15} parent=5 // pred_check
      %p237 = pneg %p236
    $region38: #{distilbert_classifier.15} parent=5 // pred_check_branch
      %239 = sbr.rel (%p237) target = $region40
    $region39: #{distilbert_classifier.15} parent=5 // pred_region
      %s240 = ssub.s32 %s9, 2
      // Predicated region
      $region41: #{distilbert_classifier.15} parent=39 // pred_check
        %p241 = pneg %p106
      $region42: #{distilbert_classifier.15} parent=39 // pred_check_branch
        %243 = sbr.rel (%p241) target = $region44
      $region43: #{distilbert_classifier.15} parent=39 // pred_region
        %s244 = smul.u32 2, %s15
        %p245 = scmp.lt.s32.totalorder %s244, 3
        %s246 = scalar_select %p245, %s244, 3
        %s247 = smul.addr %s246, 4
        %s248 = scalar_lea.vmem %s3, %s247
      $region44: #{distilbert_classifier.15} parent=39 // pred_fallthru
        _
    $region40: #{distilbert_classifier.15} parent=5 // pred_fallthru
      _
  $region6: #{distilbert_classifier.15} parent=0 // loop_footer
    %s13 = sadd.s32 1, %s9
  $region7: #{distilbert_classifier.15} parent=0 // loop_footer_branch
    %8 = sbr.rel target = $region3
  $region8: #{distilbert_classifier.15} parent=0 // loop_exit
    _

// kernel: distilbert_classifier.16
$region0: #{distilbert_classifier.16}
  #allocation0 [shape = 'u32[]', space=smem, size = 0x4, offset = 0x4, fixed_abs, tag = 'smem constant byte address 0x4 - core index']
  #allocation1 [shape = 'u32[144,128]{1,0:T(1,128)}', space=vmem, size = 0x12000, scoped, tag = 'internal scratch']
  #allocation2 [shape = 'f32[16,128]{1,0:T(8,128)}', space=vmem, size = 0x2000, scoped, tag = 'scratch operand']
  %s0 = inlined_call_operand.vmem [shape: bf16[32,128], index: 0, kind: input, shape index: {}]
  %s1 = inlined_call_operand.vmem [shape: bf16[128,384], index: 1, kind: input, shape index: {}]
  %s2 = inlined_call_operand.vmem [shape: f32[1,384], index: 2, kind: input, shape index: {}]
  %s3 = inlined_call_operand.vmem [shape: bf16[32,384], index: 3, kind: output, shape index: {}]
  %s4 = sld [smem:[#allocation0]]
  $region131: #{distilbert_classifier.16} parent=0
    _
  %s6 = ssub.s32 1, %s4
  %s7 = scalar_select 0, %s6, %s4
  $region1: #{distilbert_classifier.16} parent=0
    #allocation3 [shape = 'u8[65536]{0}', space=vmem, size = 0x10000, scoped, tag = 'input window, operand 1']
    #allocation4 [shape = 'u8[8192]{0}', space=vmem, size = 0x2000, scoped, tag = 'output window, operand 0']
    loop: start=0, step=1, limit=8
    $region2: #{distilbert_classifier.16} parent=1 // loop_pre_header
      _
    $region3: #{distilbert_classifier.16} parent=1 // loop_header
      %s9 = sphi 0, %s13
      %p10 = scmp.ge.s32.totalorder %s9, 8
      %s16 = sphi 0, %s35
      %s17 = sphi 0, %s31
      %s18 = sphi 0, %s27
      %s19 = sphi 0, %s16
      %s20 = sphi 0, %s17
      %s21 = sphi 0, %s18
      %s22 = sphi 0, %s19
      %s23 = sphi 0, %s20
      %s24 = sphi 0, %s21
      %s40 = sphi 0, %s42
      %s43 = sphi 0, %s40
      %s44 = sphi 0, %s43
      %s60 = sphi 0, %s44
      %s68 = sphi 0, %s70
      %s71 = sphi 0, %s68
      %s72 = sphi 0, %s71
      %s88 = sphi 0, %s72
      %s94 = sphi 0, %s96
      %s97 = sphi 0, %s94
      %s98 = sphi 0, %s97
      %s114 = sphi 0, %s98
      %s122 = sphi 0, %s124
      %s125 = sphi 0, %s122
      %s126 = sphi 0, %s125
      %s142 = sphi 0, %s126
    $region4: #{distilbert_classifier.16} parent=1 // loop_header_branch
      %12 = sbr.rel (%p10) target = $region8
    $region5: #{distilbert_classifier.16} parent=1 // loop_body
      %s14 = ssub.s32 %s9, 1
      %s15 = ssub.s32 %s9, 2
      %s25 = sadd.s32 1, %s18
      %p26 = scmp.ge.s32.totalorder %s25, 1
      %s27 = scalar_select %p26, 0, %s25
      %s28 = sadd.s32 1, %s17
      %s29 = scalar_select %p26, %s28, %s17
      %p30 = scmp.ge.s32.totalorder %s29, 3
      %s31 = scalar_select %p30, 0, %s29
      %s32 = sadd.s32 1, %s16
      %s33 = scalar_select %p30, %s32, %s16
      %p34 = scmp.ge.s32.totalorder %s33, 2
      %s35 = scalar_select %p34, 0, %s33
      %s36 = ssub.s32 %s16, %s35
      %s37 = ssub.s32 %s18, %s27
      %s38 = sor.u32 %s36, %s37
      %p39 = scmp.eq.s32.totalorder %s38, 0
      %s41 = sadd.s32 %s40, 1
      %s42 = scalar_select %p39, %s40, %s41
      %p45 = pneg %p39
      %p46 = scmp.eq.s32.totalorder %s9, 5
      %p47 = por %p45, %p46
      %p48 = scmp.ne.s32.totalorder %s40, %s43
      %p49 = scmp.eq.s32.totalorder %s9, 0
      %p50 = por %p48, %p49
      %p51 = scmp.ne.s32.totalorder %s40, %s43
      %p52 = scmp.eq.s32.totalorder %s14, 5
      %p53 = por %p51, %p52
      %p54 = scmp.ne.s32.totalorder %s43, %s44
      %p55 = scmp.eq.s32.totalorder %s14, 0
      %p56 = por %p54, %p55
      %p57 = scmp.ne.s32.totalorder %s43, %s44
      %p58 = scmp.eq.s32.totalorder %s15, 5
      %p59 = por %p57, %p58
      %p61 = scmp.ne.s32.totalorder %s44, %s60
      %p62 = scmp.eq.s32.totalorder %s15, 0
      %p63 = por %p61, %p62
      %s64 = ssub.s32 %s18, %s27
      %s65 = ssub.s32 %s17, %s31
      %s66 = sor.u32 %s64, %s65
      %p67 = scmp.eq.s32.totalorder %s66, 0
      %s69 = sadd.s32 %s68, 1
      %s70 = scalar_select %p67, %s68, %s69
      %p73 = pneg %p67
      %p74 = scmp.eq.s32.totalorder %s9, 5
      %p75 = por %p73, %p74
      %p76 = scmp.ne.s32.totalorder %s68, %s71
      %p77 = scmp.eq.s32.totalorder %s9, 0
      %p78 = por %p76, %p77
      %p79 = scmp.ne.s32.totalorder %s68, %s71
      %p80 = scmp.eq.s32.totalorder %s14, 5
      %p81 = por %p79, %p80
      %p82 = scmp.ne.s32.totalorder %s71, %s72
      %p83 = scmp.eq.s32.totalorder %s14, 0
      %p84 = por %p82, %p83
      %p85 = scmp.ne.s32.totalorder %s71, %s72
      %p86 = scmp.eq.s32.totalorder %s15, 5
      %p87 = por %p85, %p86
      %p89 = scmp.ne.s32.totalorder %s72, %s88
      %p90 = scmp.eq.s32.totalorder %s15, 0
      %p91 = por %p89, %p90
      %s92 = ssub.s32 %s17, %s31
      %p93 = scmp.eq.s32.totalorder %s92, 0
      %s95 = sadd.s32 %s94, 1
      %s96 = scalar_select %p93, %s94, %s95
      %p99 = pneg %p93
      %p100 = scmp.eq.s32.totalorder %s9, 5
      %p101 = por %p99, %p100
      %p102 = scmp.ne.s32.totalorder %s94, %s97
      %p103 = scmp.eq.s32.totalorder %s9, 0
      %p104 = por %p102, %p103
      %p105 = scmp.ne.s32.totalorder %s94, %s97
      %p106 = scmp.eq.s32.totalorder %s14, 5
      %p107 = por %p105, %p106
      %p108 = scmp.ne.s32.totalorder %s97, %s98
      %p109 = scmp.eq.s32.totalorder %s14, 0
      %p110 = por %p108, %p109
      %p111 = scmp.ne.s32.totalorder %s97, %s98
      %p112 = scmp.eq.s32.totalorder %s15, 5
      %p113 = por %p111, %p112
      %p115 = scmp.ne.s32.totalorder %s98, %s114
      %p116 = scmp.eq.s32.totalorder %s15, 0
      %p117 = por %p115, %p116
      %s118 = ssub.s32 %s16, %s35
      %s119 = ssub.s32 %s17, %s31
      %s120 = sor.u32 %s118, %s119
      %p121 = scmp.eq.s32.totalorder %s120, 0
      %s123 = sadd.s32 %s122, 1
      %s124 = scalar_select %p121, %s122, %s123
      %p127 = pneg %p121
      %p128 = scmp.eq.s32.totalorder %s9, 5
      %p129 = por %p127, %p128
      %p130 = scmp.ne.s32.totalorder %s122, %s125
      %p131 = scmp.eq.s32.totalorder %s9, 0
      %p132 = por %p130, %p131
      %p133 = scmp.ne.s32.totalorder %s122, %s125
      %p134 = scmp.eq.s32.totalorder %s14, 5
      %p135 = por %p133, %p134
      %p136 = scmp.ne.s32.totalorder %s125, %s126
      %p137 = scmp.eq.s32.totalorder %s14, 0
      %p138 = por %p136, %p137
      %p139 = scmp.ne.s32.totalorder %s125, %s126
      %p140 = scmp.eq.s32.totalorder %s15, 5
      %p141 = por %p139, %p140
      %p143 = scmp.ne.s32.totalorder %s126, %s142
      %p144 = scmp.eq.s32.totalorder %s15, 0
      %p145 = por %p143, %p144
      %p146 = scmp.le.s32.totalorder 1, %s9
      %p147 = scmp.lt.s32.totalorder %s9, 7
      %p148 = pnand %p146, %p147
      %p149 = pneg %p148
      // Predicated region
      $region9: #{distilbert_classifier.16} parent=5 // pred_check
        _
      $region10: #{distilbert_classifier.16} parent=5 // pred_check_branch
        %151 = sbr.rel (%p148) target = $region12
      $region11: #{distilbert_classifier.16} parent=5 // pred_region
        %s152 = ssub.s32 %s9, 1
      $region12: #{distilbert_classifier.16} parent=5 // pred_fallthru
        _
      %p153 = scmp.lt.s32.totalorder %s9, 6
      // Predicated region
      $region13: #{distilbert_classifier.16} parent=5 // pred_check
        %p154 = pneg %p153
      $region14: #{distilbert_classifier.16} parent=5 // pred_check_branch
        %156 = sbr.rel (%p154) target = $region16
      $region15: #{distilbert_classifier.16} parent=5 // pred_region
        // Predicated region
        $region17: #{distilbert_classifier.16} parent=15 // pred_check
          %p157 = pneg %p50
        $region18: #{distilbert_classifier.16} parent=15 // pred_check_branch
          %159 = sbr.rel (%p157) target = $region20
        $region19: #{distilbert_classifier.16} parent=15 // pred_region
          %s160 = smul.u32 2, %s16
          %p161 = scmp.lt.s32.totalorder %s160, 3
          %s162 = scalar_select %p161, %s160, 3
          %p163 = scmp.lt.s32.totalorder %s18, 0
          %s164 = scalar_select %p163, %s18, 0
          %s165 = sadd.s32 %s164, %s162
          %s166 = smul.addr %s165, 4
          %s167 = scalar_lea.vmem %s0, %s166
          %s168 = smul.u32 2, %s16
        $region20: #{distilbert_classifier.16} parent=15 // pred_fallthru
          _
        // Predicated region
        $region21: #{distilbert_classifier.16} parent=15 // pred_check
          %p169 = pneg %p78
        $region22: #{distilbert_classifier.16} parent=15 // pred_check_branch
          %171 = sbr.rel (%p169) target = $region24
        $region23: #{distilbert_classifier.16} parent=15 // pred_region
          %s172 = sand.u32 %s68, 1
          %s173 = sand.u32 %s68, 1
          %s174 = smul.addr %s173, 64
          %s175 = scalar_lea.vmem [#allocation3], %s174
          %s176 = smul.u32 16, %s18
          %s177 = smul.addr %s176, 3
          %s178 = sadd.s32 %s17, %s177
          %s179 = smul.addr %s178, 4
          %s180 = scalar_lea.vmem %s1, %s179
          // Predicated region
          $region25: #{distilbert_classifier.16} parent=23 // pred_check
            _
          $region26: #{distilbert_classifier.16} parent=23 // pred_check_branch
            %182 = sbr.rel (0) target = $region28
          $region27: #{distilbert_classifier.16} parent=23 // pred_region
            // Predicated region
            $region29: #{distilbert_classifier.16} parent=27 // pred_check
              _
            $region30: #{distilbert_classifier.16} parent=27 // pred_check_branch
              %184 = sbr.rel target = $region32
            $region31: #{distilbert_classifier.16} parent=27 // pred_region
              // Predicated region
              $region44: #{distilbert_classifier.16} parent=31 // pred_check
                _
              $region45: #{distilbert_classifier.16} parent=31 // pred_check_branch
                %229 = sbr.rel (0) target = $region47
              $region46: #{distilbert_classifier.16} parent=31 // pred_region
                loop: start=0, step=1, limit=1
                $region48: #{distilbert_classifier.16} parent=46 // loop_pre_header
                  _
                $region49: #{distilbert_classifier.16} parent=46 // loop_header
                  %s231 = sphi 0, %s235
                  %p232 = scmp.ge.s32.totalorder %s231, 1
                  %s236 = sphi %s180, %s180
                  %s237 = sphi %s175, %s175
                $region50: #{distilbert_classifier.16} parent=46 // loop_header_branch
                  %234 = sbr.rel (%p232) target = $region54
                $region51: #{distilbert_classifier.16} parent=46 // loop_body
                  _
                $region52: #{distilbert_classifier.16} parent=46 // loop_footer
                  %s235 = sadd.s32 1, %s231
                $region53: #{distilbert_classifier.16} parent=46 // loop_footer_branch
                  %230 = sbr.rel target = $region49
                $region54: #{distilbert_classifier.16} parent=46 // loop_exit
                  _
                loop: start=0, step=1, limit=1
                $region55: #{distilbert_classifier.16} parent=46 // loop_pre_header
                  _
                $region56: #{distilbert_classifier.16} parent=46 // loop_header
                  %s240 = sphi 0, %s244
                  %p241 = scmp.ge.s32.totalorder %s240, 1
                  %s245 = sphi %s180, %s180
                  %s246 = sphi %s175, %s175
                $region57: #{distilbert_classifier.16} parent=46 // loop_header_branch
                  %243 = sbr.rel (%p241) target = $region61
                $region58: #{distilbert_classifier.16} parent=46 // loop_body
                  %v247 = vld [vmem:[%s245] sm:$0xf]
                  %248 = vst [vmem:[%s246] sm:$0xf] %v247
                  %v249 = vld [vmem:[%s245 + $0xc] sm:$0xf]
                  %250 = vst [vmem:[%s246 + $0x4] sm:$0xf] %v249
                  %v251 = vld [vmem:[%s245 + $0x18] sm:$0xf]
                  %252 = vst [vmem:[%s246 + $0x8] sm:$0xf] %v251
                  %v253 = vld [vmem:[%s245 + $0x24] sm:$0xf]
                  %254 = vst [vmem:[%s246 + $0xc] sm:$0xf] %v253
                  %v255 = vld [vmem:[%s245 + $0x30] sm:$0xf]
                  %256 = vst [vmem:[%s246 + $0x10] sm:$0xf] %v255
                  %v257 = vld [vmem:[%s245 + $0x3c] sm:$0xf]
                  %258 = vst [vmem:[%s246 + $0x14] sm:$0xf] %v257
                  %v259 = vld [vmem:[%s245 + $0x48] sm:$0xf]
                  %260 = vst [vmem:[%s246 + $0x18] sm:$0xf] %v259
                  %v261 = vld [vmem:[%s245 + $0x54] sm:$0xf]
                  %262 = vst [vmem:[%s246 + $0x1c] sm:$0xf] %v261
                  %v263 = vld [vmem:[%s245 + $0x60] sm:$0xf]
                  %264 = vst [vmem:[%s246 + $0x20] sm:$0xf] %v263
                  %v265 = vld [vmem:[%s245 + $0x6c] sm:$0xf]
                  %266 = vst [vmem:[%s246 + $0x24] sm:$0xf] %v265
                  %v267 = vld [vmem:[%s245 + $0x78] sm:$0xf]
                  %268 = vst [vmem:[%s246 + $0x28] sm:$0xf] %v267
                  %v269 = vld [vmem:[%s245 + $0x84] sm:$0xf]
                  %270 = vst [vmem:[%s246 + $0x2c] sm:$0xf] %v269
                  %v271 = vld [vmem:[%s245 + $0x90] sm:$0xf]
                  %272 = vst [vmem:[%s246 + $0x30] sm:$0xf] %v271
                  %v273 = vld [vmem:[%s245 + $0x9c] sm:$0xf]
                  %274 = vst [vmem:[%s246 + $0x34] sm:$0xf] %v273
                  %v275 = vld [vmem:[%s245 + $0xa8] sm:$0xf]
                  %276 = vst [vmem:[%s246 + $0x38] sm:$0xf] %v275
                  %v277 = vld [vmem:[%s245 + $0xb4] sm:$0xf]
                  %278 = vst [vmem:[%s246 + $0x3c] sm:$0xf] %v277
                $region59: #{distilbert_classifier.16} parent=46 // loop_footer
                  %s244 = sadd.s32 1, %s240
                $region60: #{distilbert_classifier.16} parent=46 // loop_footer_branch
                  %239 = sbr.rel target = $region56
                $region61: #{distilbert_classifier.16} parent=46 // loop_exit
                  _
              $region47: #{distilbert_classifier.16} parent=31 // pred_fallthru
                _
            $region32: #{distilbert_classifier.16} parent=27 // pred_fallthru
              _
            // Predicated region
            $region33: #{distilbert_classifier.16} parent=27 // pred_check
              _
            $region34: #{distilbert_classifier.16} parent=27 // pred_check_branch
              %186 = sbr.rel (0) target = $region36
            $region35: #{distilbert_classifier.16} parent=27 // pred_region
              loop: start=0, step=1, limit=1
              $region37: #{distilbert_classifier.16} parent=35 // loop_pre_header
                _
              $region38: #{distilbert_classifier.16} parent=35 // loop_header
                %s189 = sphi 0, %s193
                %p190 = scmp.ge.s32.totalorder %s189, 1
                %s194 = sphi %s180, %s180
                %s195 = sphi %s175, %s175
              $region39: #{distilbert_classifier.16} parent=35 // loop_header_branch
                %192 = sbr.rel (%p190) target = $region43
              $region40: #{distilbert_classifier.16} parent=35 // loop_body
                %v196 = vld [vmem:[%s194] sm:$0xf]
                %197 = vst [vmem:[%s195] sm:$0xf] %v196
                %v198 = vld [vmem:[%s194 + $0xc] sm:$0xf]
                %199 = vst [vmem:[%s195 + $0x4] sm:$0xf] %v198
                %v200 = vld [vmem:[%s194 + $0x18] sm:$0xf]
                %201 = vst [vmem:[%s195 + $0x8] sm:$0xf] %v200
                %v202 = vld [vmem:[%s194 + $0x24] sm:$0xf]
                %203 = vst [vmem:[%s195 + $0xc] sm:$0xf] %v202
                %v204 = vld [vmem:[%s194 + $0x30] sm:$0xf]
                %205 = vst [vmem:[%s195 + $0x10] sm:$0xf] %v204
                %v206 = vld [vmem:[%s194 + $0x3c] sm:$0xf]
                %207 = vst [vmem:[%s195 + $0x14] sm:$0xf] %v206
                %v208 = vld [vmem:[%s194 + $0x48] sm:$0xf]
                %209 = vst [vmem:[%s195 + $0x18] sm:$0xf] %v208
                %v210 = vld [vmem:[%s194 + $0x54] sm:$0xf]
                %211 = vst [vmem:[%s195 + $0x1c] sm:$0xf] %v210
                %v212 = vld [vmem:[%s194 + $0x60] sm:$0xf]
                %213 = vst [vmem:[%s195 + $0x20] sm:$0xf] %v212
                %v214 = vld [vmem:[%s194 + $0x6c] sm:$0xf]
                %215 = vst [vmem:[%s195 + $0x24] sm:$0xf] %v214
                %v216 = vld [vmem:[%s194 + $0x78] sm:$0xf]
                %217 = vst [vmem:[%s195 + $0x28] sm:$0xf] %v216
                %v218 = vld [vmem:[%s194 + $0x84] sm:$0xf]
                %219 = vst [vmem:[%s195 + $0x2c] sm:$0xf] %v218
                %v220 = vld [vmem:[%s194 + $0x90] sm:$0xf]
                %221 = vst [vmem:[%s195 + $0x30] sm:$0xf] %v220
                %v222 = vld [vmem:[%s194 + $0x9c] sm:$0xf]
                %223 = vst [vmem:[%s195 + $0x34] sm:$0xf] %v222
                %v224 = vld [vmem:[%s194 + $0xa8] sm:$0xf]
                %225 = vst [vmem:[%s195 + $0x38] sm:$0xf] %v224
                %v226 = vld [vmem:[%s194 + $0xb4] sm:$0xf]
                %227 = vst [vmem:[%s195 + $0x3c] sm:$0xf] %v226
              $region41: #{distilbert_classifier.16} parent=35 // loop_footer
                %s193 = sadd.s32 1, %s189
              $region42: #{distilbert_classifier.16} parent=35 // loop_footer_branch
                %188 = sbr.rel target = $region38
              $region43: #{distilbert_classifier.16} parent=35 // loop_exit
                _
            $region36: #{distilbert_classifier.16} parent=27 // pred_fallthru
              _
          $region28: #{distilbert_classifier.16} parent=23 // pred_fallthru
            _
          %279 = vnop
        $region24: #{distilbert_classifier.16} parent=15 // pred_fallthru
          _
        // Predicated region
        $region62: #{distilbert_classifier.16} parent=15 // pred_check
          %p280 = pneg %p104
        $region63: #{distilbert_classifier.16} parent=15 // pred_check_branch
          %282 = sbr.rel (%p280) target = $region65
        $region64: #{distilbert_classifier.16} parent=15 // pred_region
          %p283 = scmp.lt.s32.totalorder %s17, 2
          %s284 = scalar_select %p283, %s17, 2
          %s285 = scalar_lea.vmem %s2, %s284
        $region65: #{distilbert_classifier.16} parent=15 // pred_fallthru
          _
      $region16: #{distilbert_classifier.16} parent=5 // pred_fallthru
        _
      %p286 = scmp.le.s32.totalorder 1, %s9
      %p287 = scmp.lt.s32.totalorder %s9, 7
      %p288 = pnand %p286, %p287
      %p289 = pneg %p288
      // Predicated region
      $region66: #{distilbert_classifier.16} parent=5 // pred_check
        _
      $region67: #{distilbert_classifier.16} parent=5 // pred_check_branch
        %291 = sbr.rel (%p288) target = $region69
      $region68: #{distilbert_classifier.16} parent=5 // pred_region
        %s292 = ssub.s32 %s9, 1
        %s293 = sand.u32 %s71, 1
        %s294 = sand.u32 %s71, 1
        %s295 = smul.addr %s294, 64
        %s296 = scalar_lea.vmem [#allocation3], %s295
        // Predicated region
        $region70: #{distilbert_classifier.16} parent=68 // pred_check
          %p297 = pneg %p84
        $region71: #{distilbert_classifier.16} parent=68 // pred_check_branch
          %299 = sbr.rel (%p297) target = $region73
        $region72: #{distilbert_classifier.16} parent=68 // pred_region
          _
        $region73: #{distilbert_classifier.16} parent=68 // pred_fallthru
          _
        %s300 = smul.u32 2, %s19
        %p301 = scmp.lt.s32.totalorder %s300, 3
        %s302 = scalar_select %p301, %s300, 3
        %p303 = scmp.lt.s32.totalorder %s21, 0
        %s304 = scalar_select %p303, %s21, 0
        %s305 = sadd.s32 %s304, %s302
        %s306 = smul.addr %s305, 4
        %s307 = scalar_lea.vmem %s0, %s306
        %p308 = pneg %p56
        %p309 = pneg %p53
        %s310 = sand.u32 %s71, 1
        %s311 = sand.u32 %s71, 1
        %s312 = smul.addr %s311, 64
        %s313 = scalar_lea.vmem [#allocation3], %s312
        %p314 = pneg %p84
        %p315 = pneg %p81
        %p316 = scmp.lt.s32.totalorder %s20, 2
        %s317 = scalar_select %p316, %s20, 2
        %s318 = scalar_lea.vmem %s2, %s317
        %p319 = pneg %p110
        %p320 = pneg %p107
        %p321 = pneg %p138
        %p322 = pneg %p135
        %s323 = sand.u32 %s125, 1
        %s324 = sand.u32 %s125, 1
        %s325 = smul.addr %s324, 8
        %s326 = scalar_lea.vmem [#allocation4], %s325
        %s327 = smul.u32 2, %s19
        %p328 = scmp.lt.s32.totalorder %s327, 3
        %s329 = scalar_select %p328, %s327, 3
        %p330 = scmp.lt.s32.totalorder %s21, 0
        %s331 = scalar_select %p330, %s21, 0
        %s332 = sadd.s32 %s331, %s329
        %s333 = smul.addr %s332, 4
        %s334 = scalar_lea.vmem %s0, %s333
        %s335 = smul.u32 2, %s19
        %s336 = smul.u32 16, %s21
        %p337 = scmp.lt.s32.totalorder %s20, 2
        %s338 = scalar_select %p337, %s20, 2
        %s339 = scalar_lea.vmem %s2, %s338
        %s340 = smul.u32 2, %s19
        %p342 = scmp.eq.s32.totalorder %s21, 0
        // Predicated region
        $region74: #{distilbert_classifier.16} parent=68 // pred_check
          %p343 = pneg %p342
        $region75: #{distilbert_classifier.16} parent=68 // pred_check_branch
          %345 = sbr.rel (%p343) target = $region77
        $region76: #{distilbert_classifier.16} parent=68 // pred_region
          %346 = vst [vmem:[#allocation2] sm:$0xff] 0.0
          %347 = vst [vmem:[#allocation2 + $0x8] sm:$0xff] 0.0
        $region77: #{distilbert_classifier.16} parent=68 // pred_fallthru
          _
        %v348 = vld [vmem:[#allocation2] sm:$0xff]
        %v349 = vld [vmem:[#allocation2 + $0x8] sm:$0xff]
        %v350 = vld [vmem:[%s334] sm:$0xf]
        %v351 = vld [vmem:[%s334 + $0x4] sm:$0xf]
        %v352 = vld [vmem:[%s296] sm:$0xf]
        %v353 = vld [vmem:[%s296 + $0x4] sm:$0xf]
        %v354 = vld [vmem:[%s296 + $0x8] sm:$0xf]
        %v355 = vld [vmem:[%s296 + $0xc] sm:$0xf]
        %v356 = vld [vmem:[%s296 + $0x10] sm:$0xf]
        %v357 = vld [vmem:[%s296 + $0x14] sm:$0xf]
        %v358 = vld [vmem:[%s296 + $0x18] sm:$0xf]
        %v359 = vld [vmem:[%s296 + $0x1c] sm:$0xf]
        %v360 = vld [vmem:[%s296 + $0x20] sm:$0xf]
        %v361 = vld [vmem:[%s296 + $0x24] sm:$0xf]
        %v362 = vld [vmem:[%s296 + $0x28] sm:$0xf]
        %v363 = vld [vmem:[%s296 + $0x2c] sm:$0xf]
        %v364 = vld [vmem:[%s296 + $0x30] sm:$0xf]
        %v365 = vld [vmem:[%s296 + $0x34] sm:$0xf]
        %v366 = vld [vmem:[%s296 + $0x38] sm:$0xf]
        %v367 = vld [vmem:[%s296 + $0x3c] sm:$0xf]
        %v370 = vunpack.c.l.b16 %v350
        %v371 = vunpack.c.l.b16 %v351
        %v372 = vpack.c.b16 %v371, %v370
        %v390 = vunpack.c.l.b16 %v352
        %v391 = vunpack.c.l.b16 %v353
        %v392 = vunpack.c.l.b16 %v354
        %v393 = vunpack.c.l.b16 %v355
        %v394 = vunpack.c.l.b16 %v356
        %v395 = vunpack.c.l.b16 %v357
        %v396 = vunpack.c.l.b16 %v358
        %v397 = vunpack.c.l.b16 %v359
        %v398 = vunpack.c.l.b16 %v360
        %v399 = vunpack.c.l.b16 %v361
        %v400 = vunpack.c.l.b16 %v362
        %v401 = vunpack.c.l.b16 %v363
        %v402 = vunpack.c.l.b16 %v364
        %v403 = vunpack.c.l.b16 %v365
        %v404 = vunpack.c.l.b16 %v366
        %v405 = vunpack.c.l.b16 %v367
        %v406 = vpack.c.b16 %v391, %v390
        %v407 = vpack.c.b16 %v393, %v392
        %v408 = vpack.c.b16 %v395, %v394
        %v409 = vpack.c.b16 %v397, %v396
        %v410 = vpack.c.b16 %v399, %v398
        %v411 = vpack.c.b16 %v401, %v400
        %v412 = vpack.c.b16 %v403, %v402
        %v413 = vpack.c.b16 %v405, %v404
        %422 = vmatprep.subr.bf16.mxu0 0
        %423 = vmatpush1.bf16.msra.mxu0 %v406
        %424 = vmatprep.subr.bf16.mxu0 0
        %425 = vmatpush1.bf16.msra.mxu0 %v407
        %426 = vmatprep.subr.bf16.mxu0 0
        %427 = vmatpush1.bf16.msra.mxu0 %v408
        %428 = vmatprep.subr.bf16.mxu0 0
        %429 = vmatpush1.bf16.msra.mxu0 %v409
        %430 = vmatprep.subr.bf16.mxu0 0
        %431 = vmatpush1.bf16.msra.mxu0 %v410
        %432 = vmatprep.subr.bf16.mxu0 0
        %433 = vmatpush1.bf16.msra.mxu0 %v411
        %434 = vmatprep.subr.bf16.mxu0 0
        %435 = vmatpush1.bf16.msra.mxu0 %v412
        %436 = vmatprep.subr.bf16.mxu0 0
        %437 = vmatpush1.bf16.msra.mxu0 %v413
        %438 = vmatprep.subr.bf16.mxu0 0
        %439 = vmatpush1.bf16.msra.mxu0 0
        %440 = vmatprep.subr.bf16.mxu0 0
        %441 = vmatpush1.bf16.msra.mxu0 0
        %442 = vmatprep.subr.bf16.mxu0 0
        %443 = vmatpush1.bf16.msra.mxu0 0
        %444 = vmatprep.subr.bf16.mxu0 0
        %445 = vmatpush1.bf16.msra.mxu0 0
        %446 = vmatprep.subr.bf16.mxu0 0
        %447 = vmatpush1.bf16.msra.mxu0 0
        %448 = vmatprep.subr.bf16.mxu0 0
        %449 = vmatpush1.bf16.msra.mxu0 0
        %450 = vmatprep.subr.bf16.mxu0 0
        %451 = vmatpush1.bf16.msra.mxu0 0
        %452 = vmatprep.subr.bf16.mxu0 0
        %453 = vmatpush1.bf16.msra.mxu0 0
        %454 = vmatprep.mubr.bf16.mxu0 0
        %455 = vmatmul.mubr.bf16.gmra.mrb[0].mxu0 %v372
        %v456 = vpop.f32.mrb[0].mxu0
        %v457 = vadd.f32 0.0, %v456
        %v458 = vpop.f32.mrb[0].mxu0
        %v459 = vpop.f32.mrb[0].mxu0
        %v460 = vadd.f32 0.0, %v459
        %v461 = vpop.f32.mrb[0].mxu0
        %462 = vdwg.mxu0
        %v463 = vadd.f32 %v348, %v457
        %v464 = vadd.f32 %v349, %v460
        %465 = vst [vmem:[#allocation2] sm:$0xff] %v463
        %466 = vst [vmem:[#allocation2 + $0x8] sm:$0xff] %v464
        // Predicated region
        $region78: #{distilbert_classifier.16} parent=68 // pred_check
          %p467 = pneg %p342
        $region79: #{distilbert_classifier.16} parent=68 // pred_check_branch
          %469 = sbr.rel (%p467) target = $region81
        $region80: #{distilbert_classifier.16} parent=68 // pred_region
          %v470 = vld [vmem:[#allocation2] sm:$0xff]
          %v471 = vld [vmem:[#allocation2 + $0x8] sm:$0xff]
          %v472 = vld [vmem:[%s339] sm:$0x1]
          %v474 = vlaneseq
          %v475 = vshrl.u32 %v474, 7
          %v476 = vsub.s32 0, %v475
          %v477 = vrot.slane %v472, %v476
          %v479 = vadd.f32 %v470, %v477
          %v480 = vadd.f32 %v471, %v477
          %v481 = vpack.c.bf16 %v480, %v479
          %v483 = vunpack.c.l.b16 %v481
          %v484 = vunpack.c.h.b16 %v481
          %v485 = vpack.c.b16 %v483, %v483
          %v486 = vpack.c.b16 %v484, %v484
          %489 = vst [vmem:[%s326] sm:$0xf] %v485
          %490 = vst [vmem:[%s326 + $0x4] sm:$0xf] %v486
        $region81: #{distilbert_classifier.16} parent=68 // pred_fallthru
          _
        %s491 = sand.u32 %s125, 1
        %s492 = sand.u32 %s125, 1
        %s493 = smul.addr %s492, 8
        %s494 = scalar_lea.vmem [#allocation4], %s493
        // Predicated region
        $region82: #{distilbert_classifier.16} parent=68 // pred_check
          %p495 = pneg %p135
        $region83: #{distilbert_classifier.16} parent=68 // pred_check_branch
          %497 = sbr.rel (%p495) target = $region85
        $region84: #{distilbert_classifier.16} parent=68 // pred_region
          %s498 = smul.u32 2, %s19
          %s499 = smul.addr %s498, 3
          %s500 = sadd.s32 %s20, %s499
          %s501 = smul.addr %s500, 4
          %s502 = scalar_lea.vmem %s3, %s501
          // Predicated region
          $region86: #{distilbert_classifier.16} parent=84 // pred_check
            _
          $region87: #{distilbert_classifier.16} parent=84 // pred_check_branch
            %504 = sbr.rel (0) target = $region89
          $region88: #{distilbert_classifier.16} parent=84 // pred_region
            // Predicated region
            $region90: #{distilbert_classifier.16} parent=88 // pred_check
              _
            $region91: #{distilbert_classifier.16} parent=88 // pred_check_branch
              %506 = sbr.rel target = $region93
            $region92: #{distilbert_classifier.16} parent=88 // pred_region
              // Predicated region
              $region105: #{distilbert_classifier.16} parent=92 // pred_check
                _
              $region106: #{distilbert_classifier.16} parent=92 // pred_check_branch
                %523 = sbr.rel (0) target = $region108
              $region107: #{distilbert_classifier.16} parent=92 // pred_region
                loop: start=0, step=1, limit=1
                $region109: #{distilbert_classifier.16} parent=107 // loop_pre_header
                  _
                $region110: #{distilbert_classifier.16} parent=107 // loop_header
                  %s525 = sphi 0, %s529
                  %p526 = scmp.ge.s32.totalorder %s525, 1
                  %s530 = sphi %s494, %s494
                  %s531 = sphi %s502, %s502
                $region111: #{distilbert_classifier.16} parent=107 // loop_header_branch
                  %528 = sbr.rel (%p526) target = $region115
                $region112: #{distilbert_classifier.16} parent=107 // loop_body
                  _
                $region113: #{distilbert_classifier.16} parent=107 // loop_footer
                  %s529 = sadd.s32 1, %s525
                $region114: #{distilbert_classifier.16} parent=107 // loop_footer_branch
                  %524 = sbr.rel target = $region110
                $region115: #{distilbert_classifier.16} parent=107 // loop_exit
                  _
                loop: start=0, step=1, limit=1
                $region116: #{distilbert_classifier.16} parent=107 // loop_pre_header
                  _
                $region117: #{distilbert_classifier.16} parent=107 // loop_header
                  %s534 = sphi 0, %s538
                  %p535 = scmp.ge.s32.totalorder %s534, 1
                  %s539 = sphi %s494, %s494
                  %s540 = sphi %s502, %s502
                $region118: #{distilbert_classifier.16} parent=107 // loop_header_branch
                  %537 = sbr.rel (%p535) target = $region122
                $region119: #{distilbert_classifier.16} parent=107 // loop_body
                  %v541 = vld [vmem:[%s539] sm:$0xf]
                  %542 = vst [vmem:[%s540] sm:$0xf] %v541
                  %v543 = vld [vmem:[%s539 + $0x4] sm:$0xf]
                  %544 = vst [vmem:[%s540 + $0xc] sm:$0xf] %v543
                $region120: #{distilbert_classifier.16} parent=107 // loop_footer
                  %s538 = sadd.s32 1, %s534
                $region121: #{distilbert_classifier.16} parent=107 // loop_footer_branch
                  %533 = sbr.rel target = $region117
                $region122: #{distilbert_classifier.16} parent=107 // loop_exit
                  _
              $region108: #{distilbert_classifier.16} parent=92 // pred_fallthru
                _
            $region93: #{distilbert_classifier.16} parent=88 // pred_fallthru
              _
            // Predicated region
            $region94: #{distilbert_classifier.16} parent=88 // pred_check
              _
            $region95: #{distilbert_classifier.16} parent=88 // pred_check_branch
              %508 = sbr.rel (0) target = $region97
            $region96: #{distilbert_classifier.16} parent=88 // pred_region
              loop: start=0, step=1, limit=1
              $region98: #{distilbert_classifier.16} parent=96 // loop_pre_header
                _
              $region99: #{distilbert_classifier.16} parent=96 // loop_header
                %s511 = sphi 0, %s515
                %p512 = scmp.ge.s32.totalorder %s511, 1
                %s516 = sphi %s494, %s494
                %s517 = sphi %s502, %s502
              $region100: #{distilbert_classifier.16} parent=96 // loop_header_branch
                %514 = sbr.rel (%p512) target = $region104
              $region101: #{distilbert_classifier.16} parent=96 // loop_body
                %v518 = vld [vmem:[%s516] sm:$0xf]
                %519 = vst [vmem:[%s517] sm:$0xf] %v518
                %v520 = vld [vmem:[%s516 + $0x4] sm:$0xf]
                %521 = vst [vmem:[%s517 + $0xc] sm:$0xf] %v520
              $region102: #{distilbert_classifier.16} parent=96 // loop_footer
                %s515 = sadd.s32 1, %s511
              $region103: #{distilbert_classifier.16} parent=96 // loop_footer_branch
                %510 = sbr.rel target = $region99
              $region104: #{distilbert_classifier.16} parent=96 // loop_exit
                _
            $region97: #{distilbert_classifier.16} parent=88 // pred_fallthru
              _
          $region89: #{distilbert_classifier.16} parent=84 // pred_fallthru
            _
          %545 = vnop
        $region85: #{distilbert_classifier.16} parent=68 // pred_fallthru
          _
      $region69: #{distilbert_classifier.16} parent=5 // pred_fallthru
        _
      %p546 = scmp.le.s32.totalorder 2, %s9
      // Predicated region
      $region123: #{distilbert_classifier.16} parent=5 // pred_check
        %p547 = pneg %p546
      $region124: #{distilbert_classifier.16} parent=5 // pred_check_branch
        %549 = sbr.rel (%p547) target = $region126
      $region125: #{distilbert_classifier.16} parent=5 // pred_region
        %s550 = ssub.s32 %s9, 2
        // Predicated region
        $region127: #{distilbert_classifier.16} parent=125 // pred_check
          %p551 = pneg %p141
        $region128: #{distilbert_classifier.16} parent=125 // pred_check_branch
          %553 = sbr.rel (%p551) target = $region130
        $region129: #{distilbert_classifier.16} parent=125 // pred_region
          %s554 = sand.u32 %s126, 1
          %s555 = sand.u32 %s126, 1
          %s556 = smul.addr %s555, 8
          %s557 = scalar_lea.vmem [#allocation4], %s556
        $region130: #{distilbert_classifier.16} parent=125 // pred_fallthru
          _
      $region126: #{distilbert_classifier.16} parent=5 // pred_fallthru
        _
    $region6: #{distilbert_classifier.16} parent=1 // loop_footer
      %s13 = sadd.s32 1, %s9
    $region7: #{distilbert_classifier.16} parent=1 // loop_footer_branch
      %8 = sbr.rel target = $region3
    $region8: #{distilbert_classifier.16} parent=1 // loop_exit
      _

// kernel: distilbert_classifier.18
$region0: #{distilbert_classifier.18}
  #allocation0 [shape = 'u32[]', space=smem, size = 0x4, offset = 0x4, fixed_abs, tag = 'smem constant byte address 0x4 - core index']
  #allocation1 [shape = 'u32[144,128]{1,0:T(1,128)}', space=vmem, size = 0x12000, scoped, tag = 'internal scratch']
  #allocation2 [shape = 'f32[16,128]{1,0:T(8,128)}', space=vmem, size = 0x2000, scoped, tag = 'scratch operand']
  %s0 = inlined_call_operand.vmem [shape: bf16[32,128], index: 0, kind: input, shape index: {}]
  %s1 = inlined_call_operand.vmem [shape: bf16[128,128], index: 1, kind: input, shape index: {}]
  %s2 = inlined_call_operand.vmem [shape: f32[1,128], index: 2, kind: input, shape index: {}]
  %s3 = inlined_call_operand.vmem [shape: bf16[32,128], index: 3, kind: output, shape index: {}]
  %s4 = sld [smem:[#allocation0]]
  $region53: #{distilbert_classifier.18} parent=0
    _
  %s6 = ssub.s32 1, %s4
  %s7 = scalar_select 0, %s6, %s4
  loop: start=0, step=1, limit=4
  $region2: #{distilbert_classifier.18} parent=0 // loop_pre_header
    _
  $region3: #{distilbert_classifier.18} parent=0 // loop_header
    %s9 = sphi 0, %s13
    %p10 = scmp.ge.s32.totalorder %s9, 4
    %s16 = sphi 0, %s35
    %s17 = sphi 0, %s31
    %s18 = sphi 0, %s27
    %s19 = sphi 0, %s16
    %s20 = sphi 0, %s17
    %s21 = sphi 0, %s18
    %s22 = sphi 0, %s19
    %s23 = sphi 0, %s20
    %s24 = sphi 0, %s21
    %s40 = sphi 0, %s42
    %s43 = sphi 0, %s40
    %s44 = sphi 0, %s43
    %s60 = sphi 0, %s44
    %s68 = sphi 0, %s70
    %s71 = sphi 0, %s68
    %s72 = sphi 0, %s71
    %s88 = sphi 0, %s72
    %s94 = sphi 0, %s96
    %s97 = sphi 0, %s94
    %s98 = sphi 0, %s97
    %s114 = sphi 0, %s98
    %s122 = sphi 0, %s124
    %s125 = sphi 0, %s122
    %s126 = sphi 0, %s125
    %s142 = sphi 0, %s126
  $region4: #{distilbert_classifier.18} parent=0 // loop_header_branch
    %12 = sbr.rel (%p10) target = $region8
  $region5: #{distilbert_classifier.18} parent=0 // loop_body
    %s14 = ssub.s32 %s9, 1
    %s15 = ssub.s32 %s9, 2
    %s25 = sadd.s32 1, %s18
    %p26 = scmp.ge.s32.totalorder %s25, 1
    %s27 = scalar_select %p26, 0, %s25
    %s28 = sadd.s32 1, %s17
    %s29 = scalar_select %p26, %s28, %s17
    %p30 = scmp.ge.s32.totalorder %s29, 1
    %s31 = scalar_select %p30, 0, %s29
    %s32 = sadd.s32 1, %s16
    %s33 = scalar_select %p30, %s32, %s16
    %p34 = scmp.ge.s32.totalorder %s33, 2
    %s35 = scalar_select %p34, 0, %s33
    %s36 = ssub.s32 %s16, %s35
    %s37 = ssub.s32 %s18, %s27
    %s38 = sor.u32 %s36, %s37
    %p39 = scmp.eq.s32.totalorder %s38, 0
    %s41 = sadd.s32 %s40, 1
    %s42 = scalar_select %p39, %s40, %s41
    %p45 = pneg %p39
    %p46 = scmp.eq.s32.totalorder %s9, 1
    %p47 = por %p45, %p46
    %p48 = scmp.ne.s32.totalorder %s40, %s43
    %p49 = scmp.eq.s32.totalorder %s9, 0
    %p50 = por %p48, %p49
    %p51 = scmp.ne.s32.totalorder %s40, %s43
    %p52 = scmp.eq.s32.totalorder %s14, 1
    %p53 = por %p51, %p52
    %p54 = scmp.ne.s32.totalorder %s43, %s44
    %p55 = scmp.eq.s32.totalorder %s14, 0
    %p56 = por %p54, %p55
    %p57 = scmp.ne.s32.totalorder %s43, %s44
    %p58 = scmp.eq.s32.totalorder %s15, 1
    %p59 = por %p57, %p58
    %p61 = scmp.ne.s32.totalorder %s44, %s60
    %p62 = scmp.eq.s32.totalorder %s15, 0
    %p63 = por %p61, %p62
    %s64 = ssub.s32 %s18, %s27
    %s65 = ssub.s32 %s17, %s31
    %s66 = sor.u32 %s64, %s65
    %p67 = scmp.eq.s32.totalorder %s66, 0
    %s69 = sadd.s32 %s68, 1
    %s70 = scalar_select %p67, %s68, %s69
    %p73 = pneg %p67
    %p74 = scmp.eq.s32.totalorder %s9, 1
    %p75 = por %p73, %p74
    %p76 = scmp.ne.s32.totalorder %s68, %s71
    %p77 = scmp.eq.s32.totalorder %s9, 0
    %p78 = por %p76, %p77
    %p79 = scmp.ne.s32.totalorder %s68, %s71
    %p80 = scmp.eq.s32.totalorder %s14, 1
    %p81 = por %p79, %p80
    %p82 = scmp.ne.s32.totalorder %s71, %s72
    %p83 = scmp.eq.s32.totalorder %s14, 0
    %p84 = por %p82, %p83
    %p85 = scmp.ne.s32.totalorder %s71, %s72
    %p86 = scmp.eq.s32.totalorder %s15, 1
    %p87 = por %p85, %p86
    %p89 = scmp.ne.s32.totalorder %s72, %s88
    %p90 = scmp.eq.s32.totalorder %s15, 0
    %p91 = por %p89, %p90
    %s92 = ssub.s32 %s17, %s31
    %p93 = scmp.eq.s32.totalorder %s92, 0
    %s95 = sadd.s32 %s94, 1
    %s96 = scalar_select %p93, %s94, %s95
    %p99 = pneg %p93
    %p100 = scmp.eq.s32.totalorder %s9, 1
    %p101 = por %p99, %p100
    %p102 = scmp.ne.s32.totalorder %s94, %s97
    %p103 = scmp.eq.s32.totalorder %s9, 0
    %p104 = por %p102, %p103
    %p105 = scmp.ne.s32.totalorder %s94, %s97
    %p106 = scmp.eq.s32.totalorder %s14, 1
    %p107 = por %p105, %p106
    %p108 = scmp.ne.s32.totalorder %s97, %s98
    %p109 = scmp.eq.s32.totalorder %s14, 0
    %p110 = por %p108, %p109
    %p111 = scmp.ne.s32.totalorder %s97, %s98
    %p112 = scmp.eq.s32.totalorder %s15, 1
    %p113 = por %p111, %p112
    %p115 = scmp.ne.s32.totalorder %s98, %s114
    %p116 = scmp.eq.s32.totalorder %s15, 0
    %p117 = por %p115, %p116
    %s118 = ssub.s32 %s16, %s35
    %s119 = ssub.s32 %s17, %s31
    %s120 = sor.u32 %s118, %s119
    %p121 = scmp.eq.s32.totalorder %s120, 0
    %s123 = sadd.s32 %s122, 1
    %s124 = scalar_select %p121, %s122, %s123
    %p127 = pneg %p121
    %p128 = scmp.eq.s32.totalorder %s9, 1
    %p129 = por %p127, %p128
    %p130 = scmp.ne.s32.totalorder %s122, %s125
    %p131 = scmp.eq.s32.totalorder %s9, 0
    %p132 = por %p130, %p131
    %p133 = scmp.ne.s32.totalorder %s122, %s125
    %p134 = scmp.eq.s32.totalorder %s14, 1
    %p135 = por %p133, %p134
    %p136 = scmp.ne.s32.totalorder %s125, %s126
    %p137 = scmp.eq.s32.totalorder %s14, 0
    %p138 = por %p136, %p137
    %p139 = scmp.ne.s32.totalorder %s125, %s126
    %p140 = scmp.eq.s32.totalorder %s15, 1
    %p141 = por %p139, %p140
    %p143 = scmp.ne.s32.totalorder %s126, %s142
    %p144 = scmp.eq.s32.totalorder %s15, 0
    %p145 = por %p143, %p144
    %p146 = scmp.le.s32.totalorder 1, %s9
    %p147 = scmp.lt.s32.totalorder %s9, 3
    %p148 = pnand %p146, %p147
    %p149 = pneg %p148
    // Predicated region
    $region9: #{distilbert_classifier.18} parent=5 // pred_check
      _
    $region10: #{distilbert_classifier.18} parent=5 // pred_check_branch
      %151 = sbr.rel (%p148) target = $region12
    $region11: #{distilbert_classifier.18} parent=5 // pred_region
      %s152 = ssub.s32 %s9, 1
      // Predicated region
      $region13: #{distilbert_classifier.18} parent=11 // pred_check
        %p153 = pneg %p84
      $region14: #{distilbert_classifier.18} parent=11 // pred_check_branch
        %155 = sbr.rel (%p153) target = $region16
      $region15: #{distilbert_classifier.18} parent=11 // pred_region
        %s156 = smul.u32 16, %s21
        %p157 = scmp.lt.s32.totalorder %s156, 15
        %s158 = scalar_select %p157, %s156, 15
        %p159 = scmp.lt.s32.totalorder %s20, 0
        %s160 = scalar_select %p159, %s20, 0
        %s161 = sadd.s32 %s160, %s158
        %s162 = smul.addr %s161, 4
        %s163 = scalar_lea.vmem %s1, %s162
        %s164 = smul.u32 16, %s21
      $region16: #{distilbert_classifier.18} parent=11 // pred_fallthru
        _
      // Predicated region
      $region17: #{distilbert_classifier.18} parent=11 // pred_check
        %p165 = pneg %p110
      $region18: #{distilbert_classifier.18} parent=11 // pred_check_branch
        %167 = sbr.rel (%p165) target = $region20
      $region19: #{distilbert_classifier.18} parent=11 // pred_region
        %p168 = scmp.lt.s32.totalorder %s20, 0
        %s169 = scalar_select %p168, %s20, 0
        %s170 = scalar_lea.vmem %s2, %s169
      $region20: #{distilbert_classifier.18} parent=11 // pred_fallthru
        _
    $region12: #{distilbert_classifier.18} parent=5 // pred_fallthru
      _
    %p171 = scmp.lt.s32.totalorder %s9, 2
    // Predicated region
    $region21: #{distilbert_classifier.18} parent=5 // pred_check
      %p172 = pneg %p171
    $region22: #{distilbert_classifier.18} parent=5 // pred_check_branch
      %174 = sbr.rel (%p172) target = $region24
    $region23: #{distilbert_classifier.18} parent=5 // pred_region
      // Predicated region
      $region25: #{distilbert_classifier.18} parent=23 // pred_check
        %p175 = pneg %p50
      $region26: #{distilbert_classifier.18} parent=23 // pred_check_branch
        %177 = sbr.rel (%p175) target = $region28
      $region27: #{distilbert_classifier.18} parent=23 // pred_region
        %s178 = smul.u32 2, %s16
        %p179 = scmp.lt.s32.totalorder %s178, 3
        %s180 = scalar_select %p179, %s178, 3
        %p181 = scmp.lt.s32.totalorder %s18, 0
        %s182 = scalar_select %p181, %s18, 0
        %s183 = sadd.s32 %s182, %s180
        %s184 = smul.addr %s183, 4
        %s185 = scalar_lea.vmem %s0, %s184
        %s186 = smul.u32 2, %s16
      $region28: #{distilbert_classifier.18} parent=23 // pred_fallthru
        _
    $region24: #{distilbert_classifier.18} parent=5 // pred_fallthru
      _
    %p187 = scmp.le.s32.totalorder 1, %s9
    %p188 = scmp.lt.s32.totalorder %s9, 3
    %p189 = pnand %p187, %p188
    %p190 = pneg %p189
    // Predicated region
    $region29: #{distilbert_classifier.18} parent=5 // pred_check
      _
    $region30: #{distilbert_classifier.18} parent=5 // pred_check_branch
      %192 = sbr.rel (%p189) target = $region32
    $region31: #{distilbert_classifier.18} parent=5 // pred_region
      %s193 = ssub.s32 %s9, 1
      %s194 = smul.u32 2, %s19
      %p195 = scmp.lt.s32.totalorder %s194, 3
      %s196 = scalar_select %p195, %s194, 3
      %p197 = scmp.lt.s32.totalorder %s21, 0
      %s198 = scalar_select %p197, %s21, 0
      %s199 = sadd.s32 %s198, %s196
      %s200 = smul.addr %s199, 4
      %s201 = scalar_lea.vmem %s0, %s200
      %p202 = pneg %p56
      %p203 = pneg %p53
      %s204 = smul.u32 16, %s21
      %p205 = scmp.lt.s32.totalorder %s204, 15
      %s206 = scalar_select %p205, %s204, 15
      %p207 = scmp.lt.s32.totalorder %s20, 0
      %s208 = scalar_select %p207, %s20, 0
      %s209 = sadd.s32 %s208, %s206
      %s210 = smul.addr %s209, 4
      %s211 = scalar_lea.vmem %s1, %s210
      %p212 = pneg %p84
      %p213 = pneg %p81
      %p214 = scmp.lt.s32.totalorder %s20, 0
      %s215 = scalar_select %p214, %s20, 0
      %s216 = scalar_lea.vmem %s2, %s215
      %p217 = pneg %p110
      %p218 = pneg %p107
      %p219 = pneg %p138
      %p220 = pneg %p135
      %s221 = smul.u32 2, %s19
      %p222 = scmp.lt.s32.totalorder %s221, 3
      %s223 = scalar_select %p222, %s221, 3
      %p224 = scmp.lt.s32.totalorder %s20, 0
      %s225 = scalar_select %p224, %s20, 0
      %s226 = sadd.s32 %s225, %s223
      %s227 = smul.addr %s226, 4
      %s228 = scalar_lea.vmem %s3, %s227
      %s229 = smul.u32 2, %s19
      %p230 = scmp.lt.s32.totalorder %s229, 3
      %s231 = scalar_select %p230, %s229, 3
      %p232 = scmp.lt.s32.totalorder %s21, 0
      %s233 = scalar_select %p232, %s21, 0
      %s234 = sadd.s32 %s233, %s231
      %s235 = smul.addr %s234, 4
      %s236 = scalar_lea.vmem %s0, %s235
      %s237 = smul.u32 2, %s19
      %s238 = smul.u32 16, %s21
      %p239 = scmp.lt.s32.totalorder %s238, 15
      %s240 = scalar_select %p239, %s238, 15
      %p241 = scmp.lt.s32.totalorder %s20, 0
      %s242 = scalar_select %p241, %s20, 0
      %s243 = sadd.s32 %s242, %s240
      %s244 = smul.addr %s243, 4
      %s245 = scalar_lea.vmem %s1, %s244
      %s246 = smul.u32 16, %s21
      %p247 = scmp.lt.s32.totalorder %s20, 0
      %s248 = scalar_select %p247, %s20, 0
      %s249 = scalar_lea.vmem %s2, %s248
      %s250 = smul.u32 2, %s19
      %p251 = scmp.lt.s32.totalorder %s250, 3
      %s252 = scalar_select %p251, %s250, 3
      %p253 = scmp.lt.s32.totalorder %s20, 0
      %s254 = scalar_select %p253, %s20, 0
      %s255 = sadd.s32 %s254, %s252
      %s256 = smul.addr %s255, 4
      %s257 = scalar_lea.vmem %s3, %s256
      %s258 = smul.u32 2, %s19
      %p260 = scmp.eq.s32.totalorder %s21, 0
      // Predicated region
      $region33: #{distilbert_classifier.18} parent=31 // pred_check
        %p261 = pneg %p260
      $region34: #{distilbert_classifier.18} parent=31 // pred_check_branch
        %263 = sbr.rel (%p261) target = $region36
      $region35: #{distilbert_classifier.18} parent=31 // pred_region
        %264 = vst [vmem:[#allocation2] sm:$0xff] 0.0
        %265 = vst [vmem:[#allocation2 + $0x8] sm:$0xff] 0.0
      $region36: #{distilbert_classifier.18} parent=31 // pred_fallthru
        _
      %v266 = vld [vmem:[#allocation2] sm:$0xff]
      %v267 = vld [vmem:[#allocation2 + $0x8] sm:$0xff]
      %v268 = vld [vmem:[%s236] sm:$0xf]
      %v269 = vld [vmem:[%s236 + $0x4] sm:$0xf]
      %v270 = vld [vmem:[%s245] sm:$0xf]
      %v271 = vld [vmem:[%s245 + $0x4] sm:$0xf]
      %v272 = vld [vmem:[%s245 + $0x8] sm:$0xf]
      %v273 = vld [vmem:[%s245 + $0xc] sm:$0xf]
      %v274 = vld [vmem:[%s245 + $0x10] sm:$0xf]
      %v275 = vld [vmem:[%s245 + $0x14] sm:$0xf]
      %v276 = vld [vmem:[%s245 + $0x18] sm:$0xf]
      %v277 = vld [vmem:[%s245 + $0x1c] sm:$0xf]
      %v278 = vld [vmem:[%s245 + $0x20] sm:$0xf]
      %v279 = vld [vmem:[%s245 + $0x24] sm:$0xf]
      %v280 = vld [vmem:[%s245 + $0x28] sm:$0xf]
      %v281 = vld [vmem:[%s245 + $0x2c] sm:$0xf]
      %v282 = vld [vmem:[%s245 + $0x30] sm:$0xf]
      %v283 = vld [vmem:[%s245 + $0x34] sm:$0xf]
      %v284 = vld [vmem:[%s245 + $0x38] sm:$0xf]
      %v285 = vld [vmem:[%s245 + $0x3c] sm:$0xf]
      %v288 = vunpack.c.l.b16 %v268
      %v289 = vunpack.c.l.b16 %v269
      %v290 = vpack.c.b16 %v289, %v288
      %v308 = vunpack.c.l.b16 %v270
      %v309 = vunpack.c.l.b16 %v271
      %v310 = vunpack.c.l.b16 %v272
      %v311 = vunpack.c.l.b16 %v273
      %v312 = vunpack.c.l.b16 %v274
      %v313 = vunpack.c.l.b16 %v275
      %v314 = vunpack.c.l.b16 %v276
      %v315 = vunpack.c.l.b16 %v277
      %v316 = vunpack.c.l.b16 %v278
      %v317 = vunpack.c.l.b16 %v279
      %v318 = vunpack.c.l.b16 %v280
      %v319 = vunpack.c.l.b16 %v281
      %v320 = vunpack.c.l.b16 %v282
      %v321 = vunpack.c.l.b16 %v283
      %v322 = vunpack.c.l.b16 %v284
      %v323 = vunpack.c.l.b16 %v285
      %v324 = vpack.c.b16 %v309, %v308
      %v325 = vpack.c.b16 %v311, %v310
      %v326 = vpack.c.b16 %v313, %v312
      %v327 = vpack.c.b16 %v315, %v314
      %v328 = vpack.c.b16 %v317, %v316
      %v329 = vpack.c.b16 %v319, %v318
      %v330 = vpack.c.b16 %v321, %v320
      %v331 = vpack.c.b16 %v323, %v322
      %340 = vmatprep.subr.bf16.mxu0 0
      %341 = vmatpush1.bf16.msra.mxu0 %v324
      %342 = vmatprep.subr.bf16.mxu0 0
      %343 = vmatpush1.bf16.msra.mxu0 %v325
      %344 = vmatprep.subr.bf16.mxu0 0
      %345 = vmatpush1.bf16.msra.mxu0 %v326
      %346 = vmatprep.subr.bf16.mxu0 0
      %347 = vmatpush1.bf16.msra.mxu0 %v327
      %348 = vmatprep.subr.bf16.mxu0 0
      %349 = vmatpush1.bf16.msra.mxu0 %v328
      %350 = vmatprep.subr.bf16.mxu0 0
      %351 = vmatpush1.bf16.msra.mxu0 %v329
      %352 = vmatprep.subr.bf16.mxu0 0
      %353 = vmatpush1.bf16.msra.mxu0 %v330
      %354 = vmatprep.subr.bf16.mxu0 0
      %355 = vmatpush1.bf16.msra.mxu0 %v331
      %356 = vmatprep.subr.bf16.mxu0 0
      %357 = vmatpush1.bf16.msra.mxu0 0
      %358 = vmatprep.subr.bf16.mxu0 0
      %359 = vmatpush1.bf16.msra.mxu0 0
      %360 = vmatprep.subr.bf16.mxu0 0
      %361 = vmatpush1.bf16.msra.mxu0 0
      %362 = vmatprep.subr.bf16.mxu0 0
      %363 = vmatpush1.bf16.msra.mxu0 0
      %364 = vmatprep.subr.bf16.mxu0 0
      %365 = vmatpush1.bf16.msra.mxu0 0
      %366 = vmatprep.subr.bf16.mxu0 0
      %367 = vmatpush1.bf16.msra.mxu0 0
      %368 = vmatprep.subr.bf16.mxu0 0
      %369 = vmatpush1.bf16.msra.mxu0 0
      %370 = vmatprep.subr.bf16.mxu0 0
      %371 = vmatpush1.bf16.msra.mxu0 0
      %372 = vmatprep.mubr.bf16.mxu0 0
      %373 = vmatmul.mubr.bf16.gmra.mrb[0].mxu0 %v290
      %v374 = vpop.f32.mrb[0].mxu0
      %v375 = vadd.f32 0.0, %v374
      %v376 = vpop.f32.mrb[0].mxu0
      %v377 = vpop.f32.mrb[0].mxu0
      %v378 = vadd.f32 0.0, %v377
      %v379 = vpop.f32.mrb[0].mxu0
      %380 = vdwg.mxu0
      %v381 = vadd.f32 %v266, %v375
      %v382 = vadd.f32 %v267, %v378
      %383 = vst [vmem:[#allocation2] sm:$0xff] %v381
      %384 = vst [vmem:[#allocation2 + $0x8] sm:$0xff] %v382
      // Predicated region
      $region37: #{distilbert_classifier.18} parent=31 // pred_check
        %p385 = pneg %p260
      $region38: #{distilbert_classifier.18} parent=31 // pred_check_branch
        %387 = sbr.rel (%p385) target = $region40
      $region39: #{distilbert_classifier.18} parent=31 // pred_region
        %v388 = vld [vmem:[#allocation2] sm:$0xff]
        %v389 = vld [vmem:[#allocation2 + $0x8] sm:$0xff]
        %v390 = vld [vmem:[%s249] sm:$0x1]
        %v392 = vlaneseq
        %v393 = vshrl.u32 %v392, 7
        %v394 = vsub.s32 0, %v393
        %v395 = vrot.slane %v390, %v394
        %v397 = vadd.f32 %v388, %v395
        %v398 = vadd.f32 %v389, %v395
        %v399 = vpack.c.bf16 %v398, %v397
        %v401 = vunpack.c.l.b16 %v399
        %v402 = vunpack.c.h.b16 %v399
        %v403 = vpack.c.b16 %v401, %v401
        %v404 = vpack.c.b16 %v402, %v402
        %407 = vst [vmem:[%s257] sm:$0xf] %v403
        %408 = vst [vmem:[%s257 + $0x4] sm:$0xf] %v404
      $region40: #{distilbert_classifier.18} parent=31 // pred_fallthru
        _
      %s409 = smul.u32 2, %s19
      %p410 = scmp.lt.s32.totalorder %s409, 3
      %s411 = scalar_select %p410, %s409, 3
      %p412 = scmp.lt.s32.totalorder %s20, 0
      %s413 = scalar_select %p412, %s20, 0
      %s414 = sadd.s32 %s413, %s411
      %s415 = smul.addr %s414, 4
      %s416 = scalar_lea.vmem %s3, %s415
      // Predicated region
      $region41: #{distilbert_classifier.18} parent=31 // pred_check
        %p417 = pneg %p135
      $region42: #{distilbert_classifier.18} parent=31 // pred_check_branch
        %419 = sbr.rel (%p417) target = $region44
      $region43: #{distilbert_classifier.18} parent=31 // pred_region
        %s420 = smul.u32 2, %s19
      $region44: #{distilbert_classifier.18} parent=31 // pred_fallthru
        _
    $region32: #{distilbert_classifier.18} parent=5 // pred_fallthru
      _
    %p421 = scmp.le.s32.totalorder 2, %s9
    // Predicated region
    $region45: #{distilbert_classifier.18} parent=5 // pred_check
      %p422 = pneg %p421
    $region46: #{distilbert_classifier.18} parent=5 // pred_check_branch
      %424 = sbr.rel (%p422) target = $region48
    $region47: #{distilbert_classifier.18} parent=5 // pred_region
      %s425 = ssub.s32 %s9, 2
      // Predicated region
      $region49: #{distilbert_classifier.18} parent=47 // pred_check
        %p426 = pneg %p141
      $region50: #{distilbert_classifier.18} parent=47 // pred_check_branch
        %428 = sbr.rel (%p426) target = $region52
      $region51: #{distilbert_classifier.18} parent=47 // pred_region
        %s429 = smul.u32 2, %s22
        %p430 = scmp.lt.s32.totalorder %s429, 3
        %s431 = scalar_select %p430, %s429, 3
        %p432 = scmp.lt.s32.totalorder %s23, 0
        %s433 = scalar_select %p432, %s23, 0
        %s434 = sadd.s32 %s433, %s431
        %s435 = smul.addr %s434, 4
        %s436 = scalar_lea.vmem %s3, %s435
      $region52: #{distilbert_classifier.18} parent=47 // pred_fallthru
        _
    $region48: #{distilbert_classifier.18} parent=5 // pred_fallthru
      _
  $region6: #{distilbert_classifier.18} parent=0 // loop_footer
    %s13 = sadd.s32 1, %s9
  $region7: #{distilbert_classifier.18} parent=0 // loop_footer_branch
    %8 = sbr.rel target = $region3
  $region8: #{distilbert_classifier.18} parent=0 // loop_exit
    _

// kernel: distilbert_classifier.17
$region0: #{distilbert_classifier.17}
  #allocation0 [shape = 'u32[]', space=smem, size = 0x4, offset = 0x4, fixed_abs, tag = 'smem constant byte address 0x4 - core index']
  #allocation1 [shape = 'u32[144,128]{1,0:T(1,128)}', space=vmem, size = 0x12000, scoped, tag = 'internal scratch']
  %s0 = inlined_call_operand.vmem [shape: f32[2,1,16], index: 0, kind: input, shape index: {}]
  %s1 = inlined_call_operand.vmem [shape: bf16[2,16,384], index: 1, kind: input, shape index: {}, may-alias: {1,2,3}]
  %s2 = inlined_call_operand.vmem [shape: bf16[2,16,384], index: 2, kind: input, shape index: {}, may-alias: {1,2,3}]
  %s3 = inlined_call_operand.vmem [shape: bf16[2,16,384], index: 3, kind: input, shape index: {}, may-alias: {1,2,3}]
  %s4 = inlined_call_operand.vmem [shape: bf16[2,16,128], index: 4, kind: output, shape index: {}]
  %s5 = sld [smem:[#allocation0]]
  $region172: #{distilbert_classifier.17} parent=0
    _
  %s7 = ssub.s32 1, %s5
  %s8 = scalar_select 0, %s7, %s5
  $region1: #{distilbert_classifier.17} parent=0
    #allocation2 [shape = 'u8[8192]{0}', space=vmem, size = 0x2000, scoped, tag = 'input window, operand 1']
    #allocation3 [shape = 'u8[8192]{0}', space=vmem, size = 0x2000, scoped, tag = 'input window, operand 2']
    #allocation4 [shape = 'u8[8192]{0}', space=vmem, size = 0x2000, scoped, tag = 'input window, operand 3']
    loop: start=0, step=1, limit=4
    $region2: #{distilbert_classifier.17} parent=1 // loop_pre_header
      _
    $region3: #{distilbert_classifier.17} parent=1 // loop_header
      %s10 = sphi 0, %s14
      %p11 = scmp.ge.s32.totalorder %s10, 4
      %s20 = sphi 0, %s22
      %s23 = sphi 0, %s20
      %s24 = sphi 0, %s23
      %s40 = sphi 0, %s24
      %s46 = sphi 0, %s48
      %s49 = sphi 0, %s46
      %s50 = sphi 0, %s49
      %s66 = sphi 0, %s50
      %s72 = sphi 0, %s74
      %s75 = sphi 0, %s72
      %s76 = sphi 0, %s75
      %s92 = sphi 0, %s76
      %s98 = sphi 0, %s100
      %s101 = sphi 0, %s98
      %s102 = sphi 0, %s101
      %s118 = sphi 0, %s102
      %s124 = sphi 0, %s126
      %s127 = sphi 0, %s124
      %s128 = sphi 0, %s127
      %s144 = sphi 0, %s128
    $region4: #{distilbert_classifier.17} parent=1 // loop_header_branch
      %13 = sbr.rel (%p11) target = $region8
    $region5: #{distilbert_classifier.17} parent=1 // loop_body
      %s15 = ssub.s32 %s10, 1
      %s16 = ssub.s32 %s10, 2
      %s17 = sadd.s32 %s10, 1
      %s18 = ssub.s32 %s10, %s17
      %p19 = scmp.eq.s32.totalorder %s18, 0
      %s21 = sadd.s32 %s20, 1
      %s22 = scalar_select %p19, %s20, %s21
      %p25 = pneg %p19
      %p26 = scmp.eq.s32.totalorder %s10, 1
      %p27 = por %p25, %p26
      %p28 = scmp.ne.s32.totalorder %s20, %s23
      %p29 = scmp.eq.s32.totalorder %s10, 0
      %p30 = por %p28, %p29
      %p31 = scmp.ne.s32.totalorder %s20, %s23
      %p32 = scmp.eq.s32.totalorder %s15, 1
      %p33 = por %p31, %p32
      %p34 = scmp.ne.s32.totalorder %s23, %s24
      %p35 = scmp.eq.s32.totalorder %s15, 0
      %p36 = por %p34, %p35
      %p37 = scmp.ne.s32.totalorder %s23, %s24
      %p38 = scmp.eq.s32.totalorder %s16, 1
      %p39 = por %p37, %p38
      %p41 = scmp.ne.s32.totalorder %s24, %s40
      %p42 = scmp.eq.s32.totalorder %s16, 0
      %p43 = por %p41, %p42
      %s44 = ssub.s32 %s10, %s17
      %p45 = scmp.eq.s32.totalorder %s44, 0
      %s47 = sadd.s32 %s46, 1
      %s48 = scalar_select %p45, %s46, %s47
      %p51 = pneg %p45
      %p52 = scmp.eq.s32.totalorder %s10, 1
      %p53 = por %p51, %p52
      %p54 = scmp.ne.s32.totalorder %s46, %s49
      %p55 = scmp.eq.s32.totalorder %s10, 0
      %p56 = por %p54, %p55
      %p57 = scmp.ne.s32.totalorder %s46, %s49
      %p58 = scmp.eq.s32.totalorder %s15, 1
      %p59 = por %p57, %p58
      %p60 = scmp.ne.s32.totalorder %s49, %s50
      %p61 = scmp.eq.s32.totalorder %s15, 0
      %p62 = por %p60, %p61
      %p63 = scmp.ne.s32.totalorder %s49, %s50
      %p64 = scmp.eq.s32.totalorder %s16, 1
      %p65 = por %p63, %p64
      %p67 = scmp.ne.s32.totalorder %s50, %s66
      %p68 = scmp.eq.s32.totalorder %s16, 0
      %p69 = por %p67, %p68
      %s70 = ssub.s32 %s10, %s17
      %p71 = scmp.eq.s32.totalorder %s70, 0
      %s73 = sadd.s32 %s72, 1
      %s74 = scalar_select %p71, %s72, %s73
      %p77 = pneg %p71
      %p78 = scmp.eq.s32.totalorder %s10, 1
      %p79 = por %p77, %p78
      %p80 = scmp.ne.s32.totalorder %s72, %s75
      %p81 = scmp.eq.s32.totalorder %s10, 0
      %p82 = por %p80, %p81
      %p83 = scmp.ne.s32.totalorder %s72, %s75
      %p84 = scmp.eq.s32.totalorder %s15, 1
      %p85 = por %p83, %p84
      %p86 = scmp.ne.s32.totalorder %s75, %s76
      %p87 = scmp.eq.s32.totalorder %s15, 0
      %p88 = por %p86, %p87
      %p89 = scmp.ne.s32.totalorder %s75, %s76
      %p90 = scmp.eq.s32.totalorder %s16, 1
      %p91 = por %p89, %p90
      %p93 = scmp.ne.s32.totalorder %s76, %s92
      %p94 = scmp.eq.s32.totalorder %s16, 0
      %p95 = por %p93, %p94
      %s96 = ssub.s32 %s10, %s17
      %p97 = scmp.eq.s32.totalorder %s96, 0
      %s99 = sadd.s32 %s98, 1
      %s100 = scalar_select %p97, %s98, %s99
      %p103 = pneg %p97
      %p104 = scmp.eq.s32.totalorder %s10, 1
      %p105 = por %p103, %p104
      %p106 = scmp.ne.s32.totalorder %s98, %s101
      %p107 = scmp.eq.s32.totalorder %s10, 0
      %p108 = por %p106, %p107
      %p109 = scmp.ne.s32.totalorder %s98, %s101
      %p110 = scmp.eq.s32.totalorder %s15, 1
      %p111 = por %p109, %p110
      %p112 = scmp.ne.s32.totalorder %s101, %s102
      %p113 = scmp.eq.s32.totalorder %s15, 0
      %p114 = por %p112, %p113
      %p115 = scmp.ne.s32.totalorder %s101, %s102
      %p116 = scmp.eq.s32.totalorder %s16, 1
      %p117 = por %p115, %p116
      %p119 = scmp.ne.s32.totalorder %s102, %s118
      %p120 = scmp.eq.s32.totalorder %s16, 0
      %p121 = por %p119, %p120
      %s122 = ssub.s32 %s10, %s17
      %p123 = scmp.eq.s32.totalorder %s122, 0
      %s125 = sadd.s32 %s124, 1
      %s126 = scalar_select %p123, %s124, %s125
      %p129 = pneg %p123
      %p130 = scmp.eq.s32.totalorder %s10, 1
      %p131 = por %p129, %p130
      %p132 = scmp.ne.s32.totalorder %s124, %s127
      %p133 = scmp.eq.s32.totalorder %s10, 0
      %p134 = por %p132, %p133
      %p135 = scmp.ne.s32.totalorder %s124, %s127
      %p136 = scmp.eq.s32.totalorder %s15, 1
      %p137 = por %p135, %p136
      %p138 = scmp.ne.s32.totalorder %s127, %s128
      %p139 = scmp.eq.s32.totalorder %s15, 0
      %p140 = por %p138, %p139
      %p141 = scmp.ne.s32.totalorder %s127, %s128
      %p142 = scmp.eq.s32.totalorder %s16, 1
      %p143 = por %p141, %p142
      %p145 = scmp.ne.s32.totalorder %s128, %s144
      %p146 = scmp.eq.s32.totalorder %s16, 0
      %p147 = por %p145, %p146
      %p148 = scmp.le.s32.totalorder 1, %s10
      %p149 = scmp.lt.s32.totalorder %s10, 3
      %p150 = pnand %p148, %p149
      %p151 = pneg %p150
      // Predicated region
      $region9: #{distilbert_classifier.17} parent=5 // pred_check
        _
      $region10: #{distilbert_classifier.17} parent=5 // pred_check_branch
        %153 = sbr.rel (%p150) target = $region12
      $region11: #{distilbert_classifier.17} parent=5 // pred_region
        %s154 = ssub.s32 %s10, 1
      $region12: #{distilbert_classifier.17} parent=5 // pred_fallthru
        _
      %p155 = scmp.lt.s32.totalorder %s10, 2
      // Predicated region
      $region13: #{distilbert_classifier.17} parent=5 // pred_check
        %p156 = pneg %p155
      $region14: #{distilbert_classifier.17} parent=5 // pred_check_branch
        %158 = sbr.rel (%p156) target = $region16
      $region15: #{distilbert_classifier.17} parent=5 // pred_region
        // Predicated region
        $region17: #{distilbert_classifier.17} parent=15 // pred_check
          %p159 = pneg %p30
        $region18: #{distilbert_classifier.17} parent=15 // pred_check_branch
          %161 = sbr.rel (%p159) target = $region20
        $region19: #{distilbert_classifier.17} parent=15 // pred_region
          %p162 = scmp.lt.s32.totalorder %s10, 1
          %s163 = scalar_select %p162, %s10, 1
          %s164 = scalar_lea.vmem %s0, %s163
        $region20: #{distilbert_classifier.17} parent=15 // pred_fallthru
          _
        // Predicated region
        $region21: #{distilbert_classifier.17} parent=15 // pred_check
          %p165 = pneg %p56
        $region22: #{distilbert_classifier.17} parent=15 // pred_check_branch
          %167 = sbr.rel (%p165) target = $region24
        $region23: #{distilbert_classifier.17} parent=15 // pred_region
          %s168 = sand.u32 %s46, 1
          %s169 = sand.u32 %s46, 1
          %s170 = smul.addr %s169, 8
          %s171 = scalar_lea.vmem [#allocation2], %s170
          %s172 = smul.addr %s10, 6
          %s173 = smul.addr %s172, 4
          %s174 = scalar_lea.vmem %s1, %s173
          // Predicated region
          $region25: #{distilbert_classifier.17} parent=23 // pred_check
            _
          $region26: #{distilbert_classifier.17} parent=23 // pred_check_branch
            %176 = sbr.rel (0) target = $region28
          $region27: #{distilbert_classifier.17} parent=23 // pred_region
            // Predicated region
            $region29: #{distilbert_classifier.17} parent=27 // pred_check
              _
            $region30: #{distilbert_classifier.17} parent=27 // pred_check_branch
              %178 = sbr.rel target = $region32
            $region31: #{distilbert_classifier.17} parent=27 // pred_region
              // Predicated region
              $region44: #{distilbert_classifier.17} parent=31 // pred_check
                _
              $region45: #{distilbert_classifier.17} parent=31 // pred_check_branch
                %195 = sbr.rel (0) target = $region47
              $region46: #{distilbert_classifier.17} parent=31 // pred_region
                loop: start=0, step=1, limit=1
                $region48: #{distilbert_classifier.17} parent=46 // loop_pre_header
                  _
                $region49: #{distilbert_classifier.17} parent=46 // loop_header
                  %s197 = sphi 0, %s201
                  %p198 = scmp.ge.s32.totalorder %s197, 1
                  %s202 = sphi %s174, %s174
                  %s203 = sphi %s171, %s171
                $region50: #{distilbert_classifier.17} parent=46 // loop_header_branch
                  %200 = sbr.rel (%p198) target = $region54
                $region51: #{distilbert_classifier.17} parent=46 // loop_body
                  _
                $region52: #{distilbert_classifier.17} parent=46 // loop_footer
                  %s201 = sadd.s32 1, %s197
                $region53: #{distilbert_classifier.17} parent=46 // loop_footer_branch
                  %196 = sbr.rel target = $region49
                $region54: #{distilbert_classifier.17} parent=46 // loop_exit
                  _
                loop: start=0, step=1, limit=1
                $region55: #{distilbert_classifier.17} parent=46 // loop_pre_header
                  _
                $region56: #{distilbert_classifier.17} parent=46 // loop_header
                  %s206 = sphi 0, %s210
                  %p207 = scmp.ge.s32.totalorder %s206, 1
                  %s211 = sphi %s174, %s174
                  %s212 = sphi %s171, %s171
                $region57: #{distilbert_classifier.17} parent=46 // loop_header_branch
                  %209 = sbr.rel (%p207) target = $region61
                $region58: #{distilbert_classifier.17} parent=46 // loop_body
                  %v213 = vld [vmem:[%s211] sm:$0xf]
                  %214 = vst [vmem:[%s212] sm:$0xf] %v213
                  %v215 = vld [vmem:[%s211 + $0xc] sm:$0xf]
                  %216 = vst [vmem:[%s212 + $0x4] sm:$0xf] %v215
                $region59: #{distilbert_classifier.17} parent=46 // loop_footer
                  %s210 = sadd.s32 1, %s206
                $region60: #{distilbert_classifier.17} parent=46 // loop_footer_branch
                  %205 = sbr.rel target = $region56
                $region61: #{distilbert_classifier.17} parent=46 // loop_exit
                  _
              $region47: #{distilbert_classifier.17} parent=31 // pred_fallthru
                _
            $region32: #{distilbert_classifier.17} parent=27 // pred_fallthru
              _
            // Predicated region
            $region33: #{distilbert_classifier.17} parent=27 // pred_check
              _
            $region34: #{distilbert_classifier.17} parent=27 // pred_check_branch
              %180 = sbr.rel (0) target = $region36
            $region35: #{distilbert_classifier.17} parent=27 // pred_region
              loop: start=0, step=1, limit=1
              $region37: #{distilbert_classifier.17} parent=35 // loop_pre_header
                _
              $region38: #{distilbert_classifier.17} parent=35 // loop_header
                %s183 = sphi 0, %s187
                %p184 = scmp.ge.s32.totalorder %s183, 1
                %s188 = sphi %s174, %s174
                %s189 = sphi %s171, %s171
              $region39: #{distilbert_classifier.17} parent=35 // loop_header_branch
                %186 = sbr.rel (%p184) target = $region43
              $region40: #{distilbert_classifier.17} parent=35 // loop_body
                %v190 = vld [vmem:[%s188] sm:$0xf]
                %191 = vst [vmem:[%s189] sm:$0xf] %v190
                %v192 = vld [vmem:[%s188 + $0xc] sm:$0xf]
                %193 = vst [vmem:[%s189 + $0x4] sm:$0xf] %v192
              $region41: #{distilbert_classifier.17} parent=35 // loop_footer
                %s187 = sadd.s32 1, %s183
              $region42: #{distilbert_classifier.17} parent=35 // loop_footer_branch
                %182 = sbr.rel target = $region38
              $region43: #{distilbert_classifier.17} parent=35 // loop_exit
                _
            $region36: #{distilbert_classifier.17} parent=27 // pred_fallthru
              _
          $region28: #{distilbert_classifier.17} parent=23 // pred_fallthru
            _
          %217 = vnop
        $region24: #{distilbert_classifier.17} parent=15 // pred_fallthru
          _
        // Predicated region
        $region62: #{distilbert_classifier.17} parent=15 // pred_check
          %p218 = pneg %p82
        $region63: #{distilbert_classifier.17} parent=15 // pred_check_branch
          %220 = sbr.rel (%p218) target = $region65
        $region64: #{distilbert_classifier.17} parent=15 // pred_region
          %s221 = sand.u32 %s72, 1
          %s222 = sand.u32 %s72, 1
          %s223 = smul.addr %s222, 8
          %s224 = scalar_lea.vmem [#allocation3], %s223
          %s225 = smul.addr %s10, 6
          %s226 = sadd.s32 1, %s225
          %s227 = smul.addr %s226, 4
          %s228 = scalar_lea.vmem %s2, %s227
          // Predicated region
          $region66: #{distilbert_classifier.17} parent=64 // pred_check
            _
          $region67: #{distilbert_classifier.17} parent=64 // pred_check_branch
            %230 = sbr.rel (0) target = $region69
          $region68: #{distilbert_classifier.17} parent=64 // pred_region
            // Predicated region
            $region70: #{distilbert_classifier.17} parent=68 // pred_check
              _
            $region71: #{distilbert_classifier.17} parent=68 // pred_check_branch
              %232 = sbr.rel target = $region73
            $region72: #{distilbert_classifier.17} parent=68 // pred_region
              // Predicated region
              $region85: #{distilbert_classifier.17} parent=72 // pred_check
                _
              $region86: #{distilbert_classifier.17} parent=72 // pred_check_branch
                %249 = sbr.rel (0) target = $region88
              $region87: #{distilbert_classifier.17} parent=72 // pred_region
                loop: start=0, step=1, limit=1
                $region89: #{distilbert_classifier.17} parent=87 // loop_pre_header
                  _
                $region90: #{distilbert_classifier.17} parent=87 // loop_header
                  %s251 = sphi 0, %s255
                  %p252 = scmp.ge.s32.totalorder %s251, 1
                  %s256 = sphi %s228, %s228
                  %s257 = sphi %s224, %s224
                $region91: #{distilbert_classifier.17} parent=87 // loop_header_branch
                  %254 = sbr.rel (%p252) target = $region95
                $region92: #{distilbert_classifier.17} parent=87 // loop_body
                  _
                $region93: #{distilbert_classifier.17} parent=87 // loop_footer
                  %s255 = sadd.s32 1, %s251
                $region94: #{distilbert_classifier.17} parent=87 // loop_footer_branch
                  %250 = sbr.rel target = $region90
                $region95: #{distilbert_classifier.17} parent=87 // loop_exit
                  _
                loop: start=0, step=1, limit=1
                $region96: #{distilbert_classifier.17} parent=87 // loop_pre_header
                  _
                $region97: #{distilbert_classifier.17} parent=87 // loop_header
                  %s260 = sphi 0, %s264
                  %p261 = scmp.ge.s32.totalorder %s260, 1
                  %s265 = sphi %s228, %s228
                  %s266 = sphi %s224, %s224
                $region98: #{distilbert_classifier.17} parent=87 // loop_header_branch
                  %263 = sbr.rel (%p261) target = $region102
                $region99: #{distilbert_classifier.17} parent=87 // loop_body
                  %v267 = vld [vmem:[%s265] sm:$0xf]
                  %268 = vst [vmem:[%s266] sm:$0xf] %v267
                  %v269 = vld [vmem:[%s265 + $0xc] sm:$0xf]
                  %270 = vst [vmem:[%s266 + $0x4] sm:$0xf] %v269
                $region100: #{distilbert_classifier.17} parent=87 // loop_footer
                  %s264 = sadd.s32 1, %s260
                $region101: #{distilbert_classifier.17} parent=87 // loop_footer_branch
                  %259 = sbr.rel target = $region97
                $region102: #{distilbert_classifier.17} parent=87 // loop_exit
                  _
              $region88: #{distilbert_classifier.17} parent=72 // pred_fallthru
                _
            $region73: #{distilbert_classifier.17} parent=68 // pred_fallthru
              _
            // Predicated region
            $region74: #{distilbert_classifier.17} parent=68 // pred_check
              _
            $region75: #{distilbert_classifier.17} parent=68 // pred_check_branch
              %234 = sbr.rel (0) target = $region77
            $region76: #{distilbert_classifier.17} parent=68 // pred_region
              loop: start=0, step=1, limit=1
              $region78: #{distilbert_classifier.17} parent=76 // loop_pre_header
                _
              $region79: #{distilbert_classifier.17} parent=76 // loop_header
                %s237 = sphi 0, %s241
                %p238 = scmp.ge.s32.totalorder %s237, 1
                %s242 = sphi %s228, %s228
                %s243 = sphi %s224, %s224
              $region80: #{distilbert_classifier.17} parent=76 // loop_header_branch
                %240 = sbr.rel (%p238) target = $region84
              $region81: #{distilbert_classifier.17} parent=76 // loop_body
                %v244 = vld [vmem:[%s242] sm:$0xf]
                %245 = vst [vmem:[%s243] sm:$0xf] %v244
                %v246 = vld [vmem:[%s242 + $0xc] sm:$0xf]
                %247 = vst [vmem:[%s243 + $0x4] sm:$0xf] %v246
              $region82: #{distilbert_classifier.17} parent=76 // loop_footer
                %s241 = sadd.s32 1, %s237
              $region83: #{distilbert_classifier.17} parent=76 // loop_footer_branch
                %236 = sbr.rel target = $region79
              $region84: #{distilbert_classifier.17} parent=76 // loop_exit
                _
            $region77: #{distilbert_classifier.17} parent=68 // pred_fallthru
              _
          $region69: #{distilbert_classifier.17} parent=64 // pred_fallthru
            _
          %271 = vnop
        $region65: #{distilbert_classifier.17} parent=15 // pred_fallthru
          _
        // Predicated region
        $region103: #{distilbert_classifier.17} parent=15 // pred_check
          %p272 = pneg %p108
        $region104: #{distilbert_classifier.17} parent=15 // pred_check_branch
          %274 = sbr.rel (%p272) target = $region106
        $region105: #{distilbert_classifier.17} parent=15 // pred_region
          %s275 = sand.u32 %s98, 1
          %s276 = sand.u32 %s98, 1
          %s277 = smul.addr %s276, 8
          %s278 = scalar_lea.vmem [#allocation4], %s277
          %s279 = smul.addr %s10, 6
          %s280 = sadd.s32 2, %s279
          %s281 = smul.addr %s280, 4
          %s282 = scalar_lea.vmem %s3, %s281
          // Predicated region
          $region107: #{distilbert_classifier.17} parent=105 // pred_check
            _
          $region108: #{distilbert_classifier.17} parent=105 // pred_check_branch
            %284 = sbr.rel (0) target = $region110
          $region109: #{distilbert_classifier.17} parent=105 // pred_region
            // Predicated region
            $region111: #{distilbert_classifier.17} parent=109 // pred_check
              _
            $region112: #{distilbert_classifier.17} parent=109 // pred_check_branch
              %286 = sbr.rel target = $region114
            $region113: #{distilbert_classifier.17} parent=109 // pred_region
              // Predicated region
              $region126: #{distilbert_classifier.17} parent=113 // pred_check
                _
              $region127: #{distilbert_classifier.17} parent=113 // pred_check_branch
                %303 = sbr.rel (0) target = $region129
              $region128: #{distilbert_classifier.17} parent=113 // pred_region
                loop: start=0, step=1, limit=1
                $region130: #{distilbert_classifier.17} parent=128 // loop_pre_header
                  _
                $region131: #{distilbert_classifier.17} parent=128 // loop_header
                  %s305 = sphi 0, %s309
                  %p306 = scmp.ge.s32.totalorder %s305, 1
                  %s310 = sphi %s282, %s282
                  %s311 = sphi %s278, %s278
                $region132: #{distilbert_classifier.17} parent=128 // loop_header_branch
                  %308 = sbr.rel (%p306) target = $region136
                $region133: #{distilbert_classifier.17} parent=128 // loop_body
                  _
                $region134: #{distilbert_classifier.17} parent=128 // loop_footer
                  %s309 = sadd.s32 1, %s305
                $region135: #{distilbert_classifier.17} parent=128 // loop_footer_branch
                  %304 = sbr.rel target = $region131
                $region136: #{distilbert_classifier.17} parent=128 // loop_exit
                  _
                loop: start=0, step=1, limit=1
                $region137: #{distilbert_classifier.17} parent=128 // loop_pre_header
                  _
                $region138: #{distilbert_classifier.17} parent=128 // loop_header
                  %s314 = sphi 0, %s318
                  %p315 = scmp.ge.s32.totalorder %s314, 1
                  %s319 = sphi %s282, %s282
                  %s320 = sphi %s278, %s278
                $region139: #{distilbert_classifier.17} parent=128 // loop_header_branch
                  %317 = sbr.rel (%p315) target = $region143
                $region140: #{distilbert_classifier.17} parent=128 // loop_body
                  %v321 = vld [vmem:[%s319] sm:$0xf]
                  %322 = vst [vmem:[%s320] sm:$0xf] %v321
                  %v323 = vld [vmem:[%s319 + $0xc] sm:$0xf]
                  %324 = vst [vmem:[%s320 + $0x4] sm:$0xf] %v323
                $region141: #{distilbert_classifier.17} parent=128 // loop_footer
                  %s318 = sadd.s32 1, %s314
                $region142: #{distilbert_classifier.17} parent=128 // loop_footer_branch
                  %313 = sbr.rel target = $region138
                $region143: #{distilbert_classifier.17} parent=128 // loop_exit
                  _
              $region129: #{distilbert_classifier.17} parent=113 // pred_fallthru
                _
            $region114: #{distilbert_classifier.17} parent=109 // pred_fallthru
              _
            // Predicated region
            $region115: #{distilbert_classifier.17} parent=109 // pred_check
              _
            $region116: #{distilbert_classifier.17} parent=109 // pred_check_branch
              %288 = sbr.rel (0) target = $region118
            $region117: #{distilbert_classifier.17} parent=109 // pred_region
              loop: start=0, step=1, limit=1
              $region119: #{distilbert_classifier.17} parent=117 // loop_pre_header
                _
              $region120: #{distilbert_classifier.17} parent=117 // loop_header
                %s291 = sphi 0, %s295
                %p292 = scmp.ge.s32.totalorder %s291, 1
                %s296 = sphi %s282, %s282
                %s297 = sphi %s278, %s278
              $region121: #{distilbert_classifier.17} parent=117 // loop_header_branch
                %294 = sbr.rel (%p292) target = $region125
              $region122: #{distilbert_classifier.17} parent=117 // loop_body
                %v298 = vld [vmem:[%s296] sm:$0xf]
                %299 = vst [vmem:[%s297] sm:$0xf] %v298
                %v300 = vld [vmem:[%s296 + $0xc] sm:$0xf]
                %301 = vst [vmem:[%s297 + $0x4] sm:$0xf] %v300
              $region123: #{distilbert_classifier.17} parent=117 // loop_footer
                %s295 = sadd.s32 1, %s291
              $region124: #{distilbert_classifier.17} parent=117 // loop_footer_branch
                %290 = sbr.rel target = $region120
              $region125: #{distilbert_classifier.17} parent=117 // loop_exit
                _
            $region118: #{distilbert_classifier.17} parent=109 // pred_fallthru
              _
          $region110: #{distilbert_classifier.17} parent=105 // pred_fallthru
            _
          %325 = vnop
        $region106: #{distilbert_classifier.17} parent=15 // pred_fallthru
          _
      $region16: #{distilbert_classifier.17} parent=5 // pred_fallthru
        _
      %p326 = scmp.le.s32.totalorder 1, %s10
      %p327 = scmp.lt.s32.totalorder %s10, 3
      %p328 = pnand %p326, %p327
      %p329 = pneg %p328
      // Predicated region
      $region144: #{distilbert_classifier.17} parent=5 // pred_check
        _
      $region145: #{distilbert_classifier.17} parent=5 // pred_check_branch
        %331 = sbr.rel (%p328) target = $region147
      $region146: #{distilbert_classifier.17} parent=5 // pred_region
        %s332 = ssub.s32 %s10, 1
        %s333 = sand.u32 %s49, 1
        %s334 = sand.u32 %s49, 1
        %s335 = smul.addr %s334, 8
        %s336 = scalar_lea.vmem [#allocation2], %s335
        // Predicated region
        $region148: #{distilbert_classifier.17} parent=146 // pred_check
          %p337 = pneg %p62
        $region149: #{distilbert_classifier.17} parent=146 // pred_check_branch
          %339 = sbr.rel (%p337) target = $region151
        $region150: #{distilbert_classifier.17} parent=146 // pred_region
          _
        $region151: #{distilbert_classifier.17} parent=146 // pred_fallthru
          _
        %s340 = sand.u32 %s75, 1
        %s341 = sand.u32 %s75, 1
        %s342 = smul.addr %s341, 8
        %s343 = scalar_lea.vmem [#allocation3], %s342
        // Predicated region
        $region152: #{distilbert_classifier.17} parent=146 // pred_check
          %p344 = pneg %p88
        $region153: #{distilbert_classifier.17} parent=146 // pred_check_branch
          %346 = sbr.rel (%p344) target = $region155
        $region154: #{distilbert_classifier.17} parent=146 // pred_region
          _
        $region155: #{distilbert_classifier.17} parent=146 // pred_fallthru
          _
        %s347 = sand.u32 %s101, 1
        %s348 = sand.u32 %s101, 1
        %s349 = smul.addr %s348, 8
        %s350 = scalar_lea.vmem [#allocation4], %s349
        // Predicated region
        $region156: #{distilbert_classifier.17} parent=146 // pred_check
          %p351 = pneg %p114
        $region157: #{distilbert_classifier.17} parent=146 // pred_check_branch
          %353 = sbr.rel (%p351) target = $region159
        $region158: #{distilbert_classifier.17} parent=146 // pred_region
          _
        $region159: #{distilbert_classifier.17} parent=146 // pred_fallthru
          _
        %p354 = scmp.lt.s32.totalorder %s15, 1
        %s355 = scalar_select %p354, %s15, 1
        %s356 = scalar_lea.vmem %s0, %s355
        %p357 = pneg %p36
        %p358 = pneg %p33
        %s359 = sand.u32 %s49, 1
        %s360 = sand.u32 %s49, 1
        %s361 = smul.addr %s360, 8
        %s362 = scalar_lea.vmem [#allocation2], %s361
        %p363 = pneg %p62
        %p364 = pneg %p59
        %s365 = sand.u32 %s75, 1
        %s366 = sand.u32 %s75, 1
        %s367 = smul.addr %s366, 8
        %s368 = scalar_lea.vmem [#allocation3], %s367
        %p369 = pneg %p88
        %p370 = pneg %p85
        %s371 = sand.u32 %s101, 1
        %s372 = sand.u32 %s101, 1
        %s373 = smul.addr %s372, 8
        %s374 = scalar_lea.vmem [#allocation4], %s373
        %p375 = pneg %p114
        %p376 = pneg %p111
        %p377 = pneg %p140
        %p378 = pneg %p137
        %p379 = scmp.lt.s32.totalorder %s15, 1
        %s380 = scalar_select %p379, %s15, 1
        %s381 = smul.addr %s380, 2
        %s382 = smul.addr %s381, 4
        %s383 = scalar_lea.vmem %s4, %s382
        %p384 = scmp.lt.s32.totalorder %s15, 1
        %s385 = scalar_select %p384, %s15, 1
        %s386 = scalar_lea.vmem %s0, %s385
        %p387 = scmp.lt.s32.totalorder %s15, 1
        %s388 = scalar_select %p387, %s15, 1
        %s389 = smul.addr %s388, 2
        %s390 = smul.addr %s389, 4
        %s391 = scalar_lea.vmem %s4, %s390
        %v392 = vld [vmem:[%s386] sm:$0x1]
        %v393 = vld [vmem:[%s336] sm:$0xf]
        %v394 = vld [vmem:[%s336 + $0x4] sm:$0xf]
        %v395 = vunpack.c.l.bf16 %v393
        %v396 = vunpack.c.l.bf16 %v394
        %v397 = vld [vmem:[%s343] sm:$0xf]
        %v398 = vld [vmem:[%s343 + $0x4] sm:$0xf]
        %v399 = vunpack.c.l.bf16 %v397
        %v400 = vunpack.c.l.bf16 %v398
        %v401 = vld [vmem:[%s350] sm:$0xf]
        %v402 = vld [vmem:[%s350 + $0x4] sm:$0xf]
        %v403 = vunpack.c.l.bf16 %v401
        %v404 = vunpack.c.l.bf16 %v402
        %vm405 = vcmask 261120
        %v407 = vsel %vm405, %v395, 0
        %v410 = vsel %vm405, %v396, 0
        %v413 = vsel %vm405, %v399, 0
        %v416 = vsel %vm405, %v400, 0
        %418 = vmatprep.subr.mxu0 0.0
        %419 = vmatpush1.xpose.msra.mxu0 %v413
        %420 = vmatprep.subr.mxu0 0.0
        %421 = vmatpush1.xpose.msra.mxu0 %v416
        %422 = vmatprep.subr.mxu0 0.0
        %423 = vmatpush1.xpose.msra.mxu0 0.0
        %424 = vmatprep.subr.mxu0 0.0
        %425 = vmatpush1.xpose.msra.mxu0 0.0
        %426 = vmatprep.subr.mxu0 0.0
        %427 = vmatpush1.xpose.msra.mxu0 0.0
        %428 = vmatprep.subr.mxu0 0.0
        %429 = vmatpush1.xpose.msra.mxu0 0.0
        %430 = vmatprep.subr.mxu0 0.0
        %431 = vmatpush1.xpose.msra.mxu0 0.0
        %432 = vmatprep.subr.mxu0 0.0
        %433 = vmatpush1.xpose.msra.mxu0 0.0
        %434 = vmatprep.subr.mxu0 0.0
        %435 = vmatpush1.xpose.msra.mxu0 0.0
        %436 = vmatprep.subr.mxu0 0.0
        %437 = vmatpush1.xpose.msra.mxu0 0.0
        %438 = vmatprep.subr.mxu0 0.0
        %439 = vmatpush1.xpose.msra.mxu0 0.0
        %440 = vmatprep.subr.mxu0 0.0
        %441 = vmatpush1.xpose.msra.mxu0 0.0
        %442 = vmatprep.subr.mxu0 0.0
        %443 = vmatpush1.xpose.msra.mxu0 0.0
        %444 = vmatprep.subr.mxu0 0.0
        %445 = vmatpush1.xpose.msra.mxu0 0.0
        %446 = vmatprep.subr.mxu0 0.0
        %447 = vmatpush1.xpose.msra.mxu0 0.0
        %448 = vmatprep.subr.mxu0 0.0
        %449 = vmatpush1.xpose.msra.mxu0 0.0
        %450 = vmatprep.subr.mxu0 0.0
        %451 = vmatpush1.xpose.msra.mxu0 0.0
        %452 = vmatprep.subr.mxu0 0.0
        %453 = vmatpush1.xpose.msra.mxu0 0.0
        %454 = vmatprep.subr.mxu0 0.0
        %455 = vmatpush1.xpose.msra.mxu0 0.0
        %456 = vmatprep.subr.mxu0 0.0
        %457 = vmatpush1.xpose.msra.mxu0 0.0
        %458 = vmatprep.subr.mxu0 0.0
        %459 = vmatpush1.xpose.msra.mxu0 0.0
        %460 = vmatprep.subr.mxu0 0.0
        %461 = vmatpush1.xpose.msra.mxu0 0.0
        %462 = vmatprep.subr.mxu0 0.0
        %463 = vmatpush1.xpose.msra.mxu0 0.0
        %464 = vmatprep.subr.mxu0 0.0
        %465 = vmatpush1.xpose.msra.mxu0 0.0
        %466 = vmatprep.subr.mxu0 0.0
        %467 = vmatpush1.xpose.msra.mxu0 0.0
        %468 = vmatprep.subr.mxu0 0.0
        %469 = vmatpush1.xpose.msra.mxu0 0.0
        %470 = vmatprep.subr.mxu0 0.0
        %471 = vmatpush1.xpose.msra.mxu0 0.0
        %472 = vmatprep.subr.mxu0 0.0
        %473 = vmatpush1.xpose.msra.mxu0 0.0
        %474 = vmatprep.subr.mxu0 0.0
        %475 = vmatpush1.xpose.msra.mxu0 0.0
        %476 = vmatprep.subr.mxu0 0.0
        %477 = vmatpush1.xpose.msra.mxu0 0.0
        %478 = vmatprep.subr.mxu0 0.0
        %479 = vmatpush1.xpose.msra.mxu0 0.0
        %480 = vmatprep.subr.mxu0 0.0
        %481 = vmatpush1.xpose.msra.mxu0 0.0
        %482 = vmatprep.mubr.f32.mxu0 0.0
        %483 = vmatmul.mubr.f32.gmra.mrb[0].mxu0 %v407
        %v484 = vpop.f32.mrb[0].mxu0
        %v485 = vadd.f32 0.0, %v484
        %v486 = vpop.f32.mrb[0].mxu0
        %487 = vmatprep.mubr.f32.mxu0 0.0
        %488 = vmatmul.mubr.f32.gmra.mrb[0].mxu0 %v410
        %v489 = vpop.f32.mrb[0].mxu0
        %v490 = vadd.f32 0.0, %v489
        %v491 = vpop.f32.mrb[0].mxu0
        %492 = vdwg.mxu0
        %v493 = vmul.f32 %v485, 0.17677669
        %v494 = vmul.f32 %v490, 0.17677669
        %v496 = vlaneseq
        %v497 = vshrl.u32 %v496, 7
        %v498 = vsub.s32 0, %v497
        %v499 = vrot.slane %v392, %v498
        %v501 = vadd.f32 %v493, %v499
        %v502 = vadd.f32 %v494, %v499
        %vm503 = vcmask 130048
        %v504 = vsel %vm503, %v501, -inf
        %505 = vmax.xlane.f32.xlu0 %v504
        %v506 = vpop.xlane.xlu0 %505
        %v507 = vsel %vm503, %v502, -inf
        %508 = vmax.xlane.f32.xlu0 %v507
        %v509 = vpop.xlane.xlu0 %508
        %v510 = vsub.f32 %v501, %v506
        %v511 = vsub.f32 %v502, %v509
        %v512 = vmul.f32 %v510, 1.442695
        %v513 = vpow.pop %v512
        %v514 = vmul.f32 %v511, 1.442695
        %v515 = vpow.pop %v514
        %v516 = vsel %vm503, %v513, 0.0
        %517 = vadd.xlane.f32.xlu0 %v516
        %v518 = vpop.xlane.xlu0 %517
        %v519 = vsel %vm503, %v515, 0.0
        %520 = vadd.xlane.f32.xlu0 %v519
        %v521 = vpop.xlane.xlu0 %520
        %v522 = vrcp.pop %v518
        %v523 = vmul.f32 %v513, %v522
        %v524 = vrcp.pop %v521
        %v525 = vmul.f32 %v515, %v524
        %v527 = vsel %vm503, %v523, 0
        %v530 = vsel %vm503, %v525, 0
        %532 = vmatprep.subr.mxu0 0.0
        %533 = vmatpush1.msra.mxu0 %v403
        %534 = vmatprep.subr.mxu0 0.0
        %535 = vmatpush1.msra.mxu0 %v404
        %536 = vmatprep.subr.mxu0 0.0
        %537 = vmatpush1.msra.mxu0 0.0
        %538 = vmatprep.subr.mxu0 0.0
        %539 = vmatpush1.msra.mxu0 0.0
        %540 = vmatprep.subr.mxu0 0.0
        %541 = vmatpush1.msra.mxu0 0.0
        %542 = vmatprep.subr.mxu0 0.0
        %543 = vmatpush1.msra.mxu0 0.0
        %544 = vmatprep.subr.mxu0 0.0
        %545 = vmatpush1.msra.mxu0 0.0
        %546 = vmatprep.subr.mxu0 0.0
        %547 = vmatpush1.msra.mxu0 0.0
        %548 = vmatprep.subr.mxu0 0.0
        %549 = vmatpush1.msra.mxu0 0.0
        %550 = vmatprep.subr.mxu0 0.0
        %551 = vmatpush1.msra.mxu0 0.0
        %552 = vmatprep.subr.mxu0 0.0
        %553 = vmatpush1.msra.mxu0 0.0
        %554 = vmatprep.subr.mxu0 0.0
        %555 = vmatpush1.msra.mxu0 0.0
        %556 = vmatprep.subr.mxu0 0.0
        %557 = vmatpush1.msra.mxu0 0.0
        %558 = vmatprep.subr.mxu0 0.0
        %559 = vmatpush1.msra.mxu0 0.0
        %560 = vmatprep.subr.mxu0 0.0
        %561 = vmatpush1.msra.mxu0 0.0
        %562 = vmatprep.subr.mxu0 0.0
        %563 = vmatpush1.msra.mxu0 0.0
        %564 = vmatprep.subr.mxu0 0.0
        %565 = vmatpush1.msra.mxu0 0.0
        %566 = vmatprep.subr.mxu0 0.0
        %567 = vmatpush1.msra.mxu0 0.0
        %568 = vmatprep.subr.mxu0 0.0
        %569 = vmatpush1.msra.mxu0 0.0
        %570 = vmatprep.subr.mxu0 0.0
        %571 = vmatpush1.msra.mxu0 0.0
        %572 = vmatprep.subr.mxu0 0.0
        %573 = vmatpush1.msra.mxu0 0.0
        %574 = vmatprep.subr.mxu0 0.0
        %575 = vmatpush1.msra.mxu0 0.0
        %576 = vmatprep.subr.mxu0 0.0
        %577 = vmatpush1.msra.mxu0 0.0
        %578 = vmatprep.subr.mxu0 0.0
        %579 = vmatpush1.msra.mxu0 0.0
        %580 = vmatprep.subr.mxu0 0.0
        %581 = vmatpush1.msra.mxu0 0.0
        %582 = vmatprep.subr.mxu0 0.0
        %583 = vmatpush1.msra.mxu0 0.0
        %584 = vmatprep.subr.mxu0 0.0
        %585 = vmatpush1.msra.mxu0 0.0
        %586 = vmatprep.subr.mxu0 0.0
        %587 = vmatpush1.msra.mxu0 0.0
        %588 = vmatprep.subr.mxu0 0.0
        %589 = vmatpush1.msra.mxu0 0.0
        %590 = vmatprep.subr.mxu0 0.0
        %591 = vmatpush1.msra.mxu0 0.0
        %592 = vmatprep.subr.mxu0 0.0
        %593 = vmatpush1.msra.mxu0 0.0
        %594 = vmatprep.subr.mxu0 0.0
        %595 = vmatpush1.msra.mxu0 0.0
        %596 = vmatprep.mubr.f32.mxu0 0.0
        %597 = vmatmul.mubr.f32.gmra.mrb[0].mxu0 %v527
        %v598 = vpop.f32.mrb[0].mxu0
        %v599 = vadd.f32 0.0, %v598
        %v600 = vpop.f32.mrb[0].mxu0
        %601 = vmatprep.mubr.f32.mxu0 0.0
        %602 = vmatmul.mubr.f32.gmra.mrb[0].mxu0 %v530
        %v603 = vpop.f32.mrb[0].mxu0
        %v604 = vadd.f32 0.0, %v603
        %v605 = vpop.f32.mrb[0].mxu0
        %606 = vdwg.mxu0
        %607 = vrot.lane.b32.xlu0 %v395, 96
        %v608 = vpop.permute.xlu0 %607
        %609 = vrot.lane.b32.xlu0 %v396, 96
        %v610 = vpop.permute.xlu0 %609
        %611 = vrot.lane.b32.xlu0 %v399, 96
        %v612 = vpop.permute.xlu0 %611
        %613 = vrot.lane.b32.xlu0 %v400, 96
        %v614 = vpop.permute.xlu0 %613
        %v615 = vsel %vm405, %v608, 0
        %v617 = vsel %vm405, %v610, 0
        %v619 = vsel %vm405, %v612, 0
        %v621 = vsel %vm405, %v614, 0
        %623 = vmatprep.subr.mxu0 0.0
        %624 = vmatpush1.xpose.msra.mxu0 %v619
        %625 = vmatprep.subr.mxu0 0.0
        %626 = vmatpush1.xpose.msra.mxu0 %v621
        %627 = vmatprep.subr.mxu0 0.0
        %628 = vmatpush1.xpose.msra.mxu0 0.0
        %629 = vmatprep.subr.mxu0 0.0
        %630 = vmatpush1.xpose.msra.mxu0 0.0
        %631 = vmatprep.subr.mxu0 0.0
        %632 = vmatpush1.xpose.msra.mxu0 0.0
        %633 = vmatprep.subr.mxu0 0.0
        %634 = vmatpush1.xpose.msra.mxu0 0.0
        %635 = vmatprep.subr.mxu0 0.0
        %636 = vmatpush1.xpose.msra.mxu0 0.0
        %637 = vmatprep.subr.mxu0 0.0
        %638 = vmatpush1.xpose.msra.mxu0 0.0
        %639 = vmatprep.subr.mxu0 0.0
        %640 = vmatpush1.xpose.msra.mxu0 0.0
        %641 = vmatprep.subr.mxu0 0.0
        %642 = vmatpush1.xpose.msra.mxu0 0.0
        %643 = vmatprep.subr.mxu0 0.0
        %644 = vmatpush1.xpose.msra.mxu0 0.0
        %645 = vmatprep.subr.mxu0 0.0
        %646 = vmatpush1.xpose.msra.mxu0 0.0
        %647 = vmatprep.subr.mxu0 0.0
        %648 = vmatpush1.xpose.msra.mxu0 0.0
        %649 = vmatprep.subr.mxu0 0.0
        %650 = vmatpush1.xpose.msra.mxu0 0.0
        %651 = vmatprep.subr.mxu0 0.0
        %652 = vmatpush1.xpose.msra.mxu0 0.0
        %653 = vmatprep.subr.mxu0 0.0
        %654 = vmatpush1.xpose.msra.mxu0 0.0
        %655 = vmatprep.subr.mxu0 0.0
        %656 = vmatpush1.xpose.msra.mxu0 0.0
        %657 = vmatprep.subr.mxu0 0.0
        %658 = vmatpush1.xpose.msra.mxu0 0.0
        %659 = vmatprep.subr.mxu0 0.0
        %660 = vmatpush1.xpose.msra.mxu0 0.0
        %661 = vmatprep.subr.mxu0 0.0
        %662 = vmatpush1.xpose.msra.mxu0 0.0
        %663 = vmatprep.subr.mxu0 0.0
        %664 = vmatpush1.xpose.msra.mxu0 0.0
        %665 = vmatprep.subr.mxu0 0.0
        %666 = vmatpush1.xpose.msra.mxu0 0.0
        %667 = vmatprep.subr.mxu0 0.0
        %668 = vmatpush1.xpose.msra.mxu0 0.0
        %669 = vmatprep.subr.mxu0 0.0
        %670 = vmatpush1.xpose.msra.mxu0 0.0
        %671 = vmatprep.subr.mxu0 0.0
        %672 = vmatpush1.xpose.msra.mxu0 0.0
        %673 = vmatprep.subr.mxu0 0.0
        %674 = vmatpush1.xpose.msra.mxu0 0.0
        %675 = vmatprep.subr.mxu0 0.0
        %676 = vmatpush1.xpose.msra.mxu0 0.0
        %677 = vmatprep.subr.mxu0 0.0
        %678 = vmatpush1.xpose.msra.mxu0 0.0
        %679 = vmatprep.subr.mxu0 0.0
        %680 = vmatpush1.xpose.msra.mxu0 0.0
        %681 = vmatprep.subr.mxu0 0.0
        %682 = vmatpush1.xpose.msra.mxu0 0.0
        %683 = vmatprep.subr.mxu0 0.0
        %684 = vmatpush1.xpose.msra.mxu0 0.0
        %685 = vmatprep.subr.mxu0 0.0
        %686 = vmatpush1.xpose.msra.mxu0 0.0
        %687 = vmatprep.mubr.f32.mxu0 0.0
        %688 = vmatmul.mubr.f32.gmra.mrb[0].mxu0 %v615
        %v689 = vpop.f32.mrb[0].mxu0
        %v690 = vadd.f32 0.0, %v689
        %v691 = vpop.f32.mrb[0].mxu0
        %692 = vmatprep.mubr.f32.mxu0 0.0
        %693 = vmatmul.mubr.f32.gmra.mrb[0].mxu0 %v617
        %v694 = vpop.f32.mrb[0].mxu0
        %v695 = vadd.f32 0.0, %v694
        %v696 = vpop.f32.mrb[0].mxu0
        %697 = vdwg.mxu0
        %v698 = vmul.f32 %v690, 0.17677669
        %v699 = vmul.f32 %v695, 0.17677669
        %v700 = vadd.f32 %v698, %v499
        %v701 = vadd.f32 %v699, %v499
        %v702 = vsel %vm503, %v700, -inf
        %703 = vmax.xlane.f32.xlu0 %v702
        %v704 = vpop.xlane.xlu0 %703
        %v705 = vsel %vm503, %v701, -inf
        %706 = vmax.xlane.f32.xlu0 %v705
        %v707 = vpop.xlane.xlu0 %706
        %v708 = vsub.f32 %v700, %v704
        %v709 = vsub.f32 %v701, %v707
        %v710 = vmul.f32 %v708, 1.442695
        %v711 = vpow.pop %v710
        %v712 = vmul.f32 %v709, 1.442695
        %v713 = vpow.pop %v712
        %v714 = vsel %vm503, %v711, 0.0
        %715 = vadd.xlane.f32.xlu0 %v714
        %v716 = vpop.xlane.xlu0 %715
        %v717 = vsel %vm503, %v713, 0.0
        %718 = vadd.xlane.f32.xlu0 %v717
        %v719 = vpop.xlane.xlu0 %718
        %v720 = vrcp.pop %v716
        %v721 = vmul.f32 %v711, %v720
        %v722 = vrcp.pop %v719
        %v723 = vmul.f32 %v713, %v722
        %726 = vrot.lane.b32.xlu0 %v403, 96
        %v727 = vpop.permute.xlu0 %726
        %728 = vrot.lane.b32.xlu0 %v404, 96
        %v729 = vpop.permute.xlu0 %728
        %v733 = vsel %vm503, %v721, 0
        %v736 = vsel %vm503, %v723, 0
        %738 = vmatprep.subr.mxu0 0.0
        %739 = vmatpush1.msra.mxu0 %v727
        %740 = vmatprep.subr.mxu0 0.0
        %741 = vmatpush1.msra.mxu0 %v729
        %742 = vmatprep.subr.mxu0 0.0
        %743 = vmatpush1.msra.mxu0 0.0
        %744 = vmatprep.subr.mxu0 0.0
        %745 = vmatpush1.msra.mxu0 0.0
        %746 = vmatprep.subr.mxu0 0.0
        %747 = vmatpush1.msra.mxu0 0.0
        %748 = vmatprep.subr.mxu0 0.0
        %749 = vmatpush1.msra.mxu0 0.0
        %750 = vmatprep.subr.mxu0 0.0
        %751 = vmatpush1.msra.mxu0 0.0
        %752 = vmatprep.subr.mxu0 0.0
        %753 = vmatpush1.msra.mxu0 0.0
        %754 = vmatprep.subr.mxu0 0.0
        %755 = vmatpush1.msra.mxu0 0.0
        %756 = vmatprep.subr.mxu0 0.0
        %757 = vmatpush1.msra.mxu0 0.0
        %758 = vmatprep.subr.mxu0 0.0
        %759 = vmatpush1.msra.mxu0 0.0
        %760 = vmatprep.subr.mxu0 0.0
        %761 = vmatpush1.msra.mxu0 0.0
        %762 = vmatprep.subr.mxu0 0.0
        %763 = vmatpush1.msra.mxu0 0.0
        %764 = vmatprep.subr.mxu0 0.0
        %765 = vmatpush1.msra.mxu0 0.0
        %766 = vmatprep.subr.mxu0 0.0
        %767 = vmatpush1.msra.mxu0 0.0
        %768 = vmatprep.subr.mxu0 0.0
        %769 = vmatpush1.msra.mxu0 0.0
        %770 = vmatprep.subr.mxu0 0.0
        %771 = vmatpush1.msra.mxu0 0.0
        %772 = vmatprep.subr.mxu0 0.0
        %773 = vmatpush1.msra.mxu0 0.0
        %774 = vmatprep.subr.mxu0 0.0
        %775 = vmatpush1.msra.mxu0 0.0
        %776 = vmatprep.subr.mxu0 0.0
        %777 = vmatpush1.msra.mxu0 0.0
        %778 = vmatprep.subr.mxu0 0.0
        %779 = vmatpush1.msra.mxu0 0.0
        %780 = vmatprep.subr.mxu0 0.0
        %781 = vmatpush1.msra.mxu0 0.0
        %782 = vmatprep.subr.mxu0 0.0
        %783 = vmatpush1.msra.mxu0 0.0
        %784 = vmatprep.subr.mxu0 0.0
        %785 = vmatpush1.msra.mxu0 0.0
        %786 = vmatprep.subr.mxu0 0.0
        %787 = vmatpush1.msra.mxu0 0.0
        %788 = vmatprep.subr.mxu0 0.0
        %789 = vmatpush1.msra.mxu0 0.0
        %790 = vmatprep.subr.mxu0 0.0
        %791 = vmatpush1.msra.mxu0 0.0
        %792 = vmatprep.subr.mxu0 0.0
        %793 = vmatpush1.msra.mxu0 0.0
        %794 = vmatprep.subr.mxu0 0.0
        %795 = vmatpush1.msra.mxu0 0.0
        %796 = vmatprep.subr.mxu0 0.0
        %797 = vmatpush1.msra.mxu0 0.0
        %798 = vmatprep.subr.mxu0 0.0
        %799 = vmatpush1.msra.mxu0 0.0
        %800 = vmatprep.subr.mxu0 0.0
        %801 = vmatpush1.msra.mxu0 0.0
        %802 = vmatprep.mubr.f32.mxu0 0.0
        %803 = vmatmul.mubr.f32.gmra.mrb[0].mxu0 %v733
        %v804 = vpop.f32.mrb[0].mxu0
        %v805 = vadd.f32 0.0, %v804
        %v806 = vpop.f32.mrb[0].mxu0
        %807 = vmatprep.mubr.f32.mxu0 0.0
        %808 = vmatmul.mubr.f32.gmra.mrb[0].mxu0 %v736
        %v809 = vpop.f32.mrb[0].mxu0
        %v810 = vadd.f32 0.0, %v809
        %v811 = vpop.f32.mrb[0].mxu0
        %812 = vdwg.mxu0
        %813 = vrot.lane.b32.xlu0 %v395, 64
        %v814 = vpop.permute.xlu0 %813
        %815 = vrot.lane.b32.xlu0 %v396, 64
        %v816 = vpop.permute.xlu0 %815
        %817 = vrot.lane.b32.xlu0 %v399, 64
        %v818 = vpop.permute.xlu0 %817
        %819 = vrot.lane.b32.xlu0 %v400, 64
        %v820 = vpop.permute.xlu0 %819
        %v821 = vsel %vm405, %v814, 0
        %v823 = vsel %vm405, %v816, 0
        %v825 = vsel %vm405, %v818, 0
        %v827 = vsel %vm405, %v820, 0
        %829 = vmatprep.subr.mxu0 0.0
        %830 = vmatpush1.xpose.msra.mxu0 %v825
        %831 = vmatprep.subr.mxu0 0.0
        %832 = vmatpush1.xpose.msra.mxu0 %v827
        %833 = vmatprep.subr.mxu0 0.0
        %834 = vmatpush1.xpose.msra.mxu0 0.0
        %835 = vmatprep.subr.mxu0 0.0
        %836 = vmatpush1.xpose.msra.mxu0 0.0
        %837 = vmatprep.subr.mxu0 0.0
        %838 = vmatpush1.xpose.msra.mxu0 0.0
        %839 = vmatprep.subr.mxu0 0.0
        %840 = vmatpush1.xpose.msra.mxu0 0.0
        %841 = vmatprep.subr.mxu0 0.0
        %842 = vmatpush1.xpose.msra.mxu0 0.0
        %843 = vmatprep.subr.mxu0 0.0
        %844 = vmatpush1.xpose.msra.mxu0 0.0
        %845 = vmatprep.subr.mxu0 0.0
        %846 = vmatpush1.xpose.msra.mxu0 0.0
        %847 = vmatprep.subr.mxu0 0.0
        %848 = vmatpush1.xpose.msra.mxu0 0.0
        %849 = vmatprep.subr.mxu0 0.0
        %850 = vmatpush1.xpose.msra.mxu0 0.0
        %851 = vmatprep.subr.mxu0 0.0
        %852 = vmatpush1.xpose.msra.mxu0 0.0
        %853 = vmatprep.subr.mxu0 0.0
        %854 = vmatpush1.xpose.msra.mxu0 0.0
        %855 = vmatprep.subr.mxu0 0.0
        %856 = vmatpush1.xpose.msra.mxu0 0.0
        %857 = vmatprep.subr.mxu0 0.0
        %858 = vmatpush1.xpose.msra.mxu0 0.0
        %859 = vmatprep.subr.mxu0 0.0
        %860 = vmatpush1.xpose.msra.mxu0 0.0
        %861 = vmatprep.subr.mxu0 0.0
        %862 = vmatpush1.xpose.msra.mxu0 0.0
        %863 = vmatprep.subr.mxu0 0.0
        %864 = vmatpush1.xpose.msra.mxu0 0.0
        %865 = vmatprep.subr.mxu0 0.0
        %866 = vmatpush1.xpose.msra.mxu0 0.0
        %867 = vmatprep.subr.mxu0 0.0
        %868 = vmatpush1.xpose.msra.mxu0 0.0
        %869 = vmatprep.subr.mxu0 0.0
        %870 = vmatpush1.xpose.msra.mxu0 0.0
        %871 = vmatprep.subr.mxu0 0.0
        %872 = vmatpush1.xpose.msra.mxu0 0.0
        %873 = vmatprep.subr.mxu0 0.0
        %874 = vmatpush1.xpose.msra.mxu0 0.0
        %875 = vmatprep.subr.mxu0 0.0
        %876 = vmatpush1.xpose.msra.mxu0 0.0
        %877 = vmatprep.subr.mxu0 0.0
        %878 = vmatpush1.xpose.msra.mxu0 0.0
        %879 = vmatprep.subr.mxu0 0.0
        %880 = vmatpush1.xpose.msra.mxu0 0.0
        %881 = vmatprep.subr.mxu0 0.0
        %882 = vmatpush1.xpose.msra.mxu0 0.0
        %883 = vmatprep.subr.mxu0 0.0
        %884 = vmatpush1.xpose.msra.mxu0 0.0
        %885 = vmatprep.subr.mxu0 0.0
        %886 = vmatpush1.xpose.msra.mxu0 0.0
        %887 = vmatprep.subr.mxu0 0.0
        %888 = vmatpush1.xpose.msra.mxu0 0.0
        %889 = vmatprep.subr.mxu0 0.0
        %890 = vmatpush1.xpose.msra.mxu0 0.0
        %891 = vmatprep.subr.mxu0 0.0
        %892 = vmatpush1.xpose.msra.mxu0 0.0
        %893 = vmatprep.mubr.f32.mxu0 0.0
        %894 = vmatmul.mubr.f32.gmra.mrb[0].mxu0 %v821
        %v895 = vpop.f32.mrb[0].mxu0
        %v896 = vadd.f32 0.0, %v895
        %v897 = vpop.f32.mrb[0].mxu0
        %898 = vmatprep.mubr.f32.mxu0 0.0
        %899 = vmatmul.mubr.f32.gmra.mrb[0].mxu0 %v823
        %v900 = vpop.f32.mrb[0].mxu0
        %v901 = vadd.f32 0.0, %v900
        %v902 = vpop.f32.mrb[0].mxu0
        %903 = vdwg.mxu0
        %v904 = vmul.f32 %v896, 0.17677669
        %v905 = vmul.f32 %v901, 0.17677669
        %v906 = vadd.f32 %v904, %v499
        %v907 = vadd.f32 %v905, %v499
        %v908 = vsel %vm503, %v906, -inf
        %909 = vmax.xlane.f32.xlu0 %v908
        %v910 = vpop.xlane.xlu0 %909
        %v911 = vsel %vm503, %v907, -inf
        %912 = vmax.xlane.f32.xlu0 %v911
        %v913 = vpop.xlane.xlu0 %912
        %v914 = vsub.f32 %v906, %v910
        %v915 = vsub.f32 %v907, %v913
        %v916 = vmul.f32 %v914, 1.442695
        %v917 = vpow.pop %v916
        %v918 = vmul.f32 %v915, 1.442695
        %v919 = vpow.pop %v918
        %v920 = vsel %vm503, %v917, 0.0
        %921 = vadd.xlane.f32.xlu0 %v920
        %v922 = vpop.xlane.xlu0 %921
        %v923 = vsel %vm503, %v919, 0.0
        %924 = vadd.xlane.f32.xlu0 %v923
        %v925 = vpop.xlane.xlu0 %924
        %v926 = vrcp.pop %v922
        %v927 = vmul.f32 %v917, %v926
        %v928 = vrcp.pop %v925
        %v929 = vmul.f32 %v919, %v928
        %930 = vrot.lane.b32.xlu0 %v403, 64
        %v931 = vpop.permute.xlu0 %930
        %932 = vrot.lane.b32.xlu0 %v404, 64
        %v933 = vpop.permute.xlu0 %932
        %v937 = vsel %vm503, %v927, 0
        %v940 = vsel %vm503, %v929, 0
        %942 = vmatprep.subr.mxu0 0.0
        %943 = vmatpush1.msra.mxu0 %v931
        %944 = vmatprep.subr.mxu0 0.0
        %945 = vmatpush1.msra.mxu0 %v933
        %946 = vmatprep.subr.mxu0 0.0
        %947 = vmatpush1.msra.mxu0 0.0
        %948 = vmatprep.subr.mxu0 0.0
        %949 = vmatpush1.msra.mxu0 0.0
        %950 = vmatprep.subr.mxu0 0.0
        %951 = vmatpush1.msra.mxu0 0.0
        %952 = vmatprep.subr.mxu0 0.0
        %953 = vmatpush1.msra.mxu0 0.0
        %954 = vmatprep.subr.mxu0 0.0
        %955 = vmatpush1.msra.mxu0 0.0
        %956 = vmatprep.subr.mxu0 0.0
        %957 = vmatpush1.msra.mxu0 0.0
        %958 = vmatprep.subr.mxu0 0.0
        %959 = vmatpush1.msra.mxu0 0.0
        %960 = vmatprep.subr.mxu0 0.0
        %961 = vmatpush1.msra.mxu0 0.0
        %962 = vmatprep.subr.mxu0 0.0
        %963 = vmatpush1.msra.mxu0 0.0
        %964 = vmatprep.subr.mxu0 0.0
        %965 = vmatpush1.msra.mxu0 0.0
        %966 = vmatprep.subr.mxu0 0.0
        %967 = vmatpush1.msra.mxu0 0.0
        %968 = vmatprep.subr.mxu0 0.0
        %969 = vmatpush1.msra.mxu0 0.0
        %970 = vmatprep.subr.mxu0 0.0
        %971 = vmatpush1.msra.mxu0 0.0
        %972 = vmatprep.subr.mxu0 0.0
        %973 = vmatpush1.msra.mxu0 0.0
        %974 = vmatprep.subr.mxu0 0.0
        %975 = vmatpush1.msra.mxu0 0.0
        %976 = vmatprep.subr.mxu0 0.0
        %977 = vmatpush1.msra.mxu0 0.0
        %978 = vmatprep.subr.mxu0 0.0
        %979 = vmatpush1.msra.mxu0 0.0
        %980 = vmatprep.subr.mxu0 0.0
        %981 = vmatpush1.msra.mxu0 0.0
        %982 = vmatprep.subr.mxu0 0.0
        %983 = vmatpush1.msra.mxu0 0.0
        %984 = vmatprep.subr.mxu0 0.0
        %985 = vmatpush1.msra.mxu0 0.0
        %986 = vmatprep.subr.mxu0 0.0
        %987 = vmatpush1.msra.mxu0 0.0
        %988 = vmatprep.subr.mxu0 0.0
        %989 = vmatpush1.msra.mxu0 0.0
        %990 = vmatprep.subr.mxu0 0.0
        %991 = vmatpush1.msra.mxu0 0.0
        %992 = vmatprep.subr.mxu0 0.0
        %993 = vmatpush1.msra.mxu0 0.0
        %994 = vmatprep.subr.mxu0 0.0
        %995 = vmatpush1.msra.mxu0 0.0
        %996 = vmatprep.subr.mxu0 0.0
        %997 = vmatpush1.msra.mxu0 0.0
        %998 = vmatprep.subr.mxu0 0.0
        %999 = vmatpush1.msra.mxu0 0.0
        %1000 = vmatprep.subr.mxu0 0.0
        %1001 = vmatpush1.msra.mxu0 0.0
        %1002 = vmatprep.subr.mxu0 0.0
        %1003 = vmatpush1.msra.mxu0 0.0
        %1004 = vmatprep.subr.mxu0 0.0
        %1005 = vmatpush1.msra.mxu0 0.0
        %1006 = vmatprep.mubr.f32.mxu0 0.0
        %1007 = vmatmul.mubr.f32.gmra.mrb[0].mxu0 %v937
        %v1008 = vpop.f32.mrb[0].mxu0
        %v1009 = vadd.f32 0.0, %v1008
        %v1010 = vpop.f32.mrb[0].mxu0
        %1011 = vmatprep.mubr.f32.mxu0 0.0
        %1012 = vmatmul.mubr.f32.gmra.mrb[0].mxu0 %v940
        %v1013 = vpop.f32.mrb[0].mxu0
        %v1014 = vadd.f32 0.0, %v1013
        %v1015 = vpop.f32.mrb[0].mxu0
        %1016 = vdwg.mxu0
        %1017 = vrot.lane.b32.xlu0 %v395, 32
        %v1018 = vpop.permute.xlu0 %1017
        %1019 = vrot.lane.b32.xlu0 %v396, 32
        %v1020 = vpop.permute.xlu0 %1019
        %1021 = vrot.lane.b32.xlu0 %v399, 32
        %v1022 = vpop.permute.xlu0 %1021
        %1023 = vrot.lane.b32.xlu0 %v400, 32
        %v1024 = vpop.permute.xlu0 %1023
        %v1025 = vsel %vm405, %v1018, 0
        %v1027 = vsel %vm405, %v1020, 0
        %v1029 = vsel %vm405, %v1022, 0
        %v1031 = vsel %vm405, %v1024, 0
        %1033 = vmatprep.subr.mxu0 0.0
        %1034 = vmatpush1.xpose.msra.mxu0 %v1029
        %1035 = vmatprep.subr.mxu0 0.0
        %1036 = vmatpush1.xpose.msra.mxu0 %v1031
        %1037 = vmatprep.subr.mxu0 0.0
        %1038 = vmatpush1.xpose.msra.mxu0 0.0
        %1039 = vmatprep.subr.mxu0 0.0
        %1040 = vmatpush1.xpose.msra.mxu0 0.0
        %1041 = vmatprep.subr.mxu0 0.0
        %1042 = vmatpush1.xpose.msra.mxu0 0.0
        %1043 = vmatprep.subr.mxu0 0.0
        %1044 = vmatpush1.xpose.msra.mxu0 0.0
        %1045 = vmatprep.subr.mxu0 0.0
        %1046 = vmatpush1.xpose.msra.mxu0 0.0
        %1047 = vmatprep.subr.mxu0 0.0
        %1048 = vmatpush1.xpose.msra.mxu0 0.0
        %1049 = vmatprep.subr.mxu0 0.0
        %1050 = vmatpush1.xpose.msra.mxu0 0.0
        %1051 = vmatprep.subr.mxu0 0.0
        %1052 = vmatpush1.xpose.msra.mxu0 0.0
        %1053 = vmatprep.subr.mxu0 0.0
        %1054 = vmatpush1.xpose.msra.mxu0 0.0
        %1055 = vmatprep.subr.mxu0 0.0
        %1056 = vmatpush1.xpose.msra.mxu0 0.0
        %1057 = vmatprep.subr.mxu0 0.0
        %1058 = vmatpush1.xpose.msra.mxu0 0.0
        %1059 = vmatprep.subr.mxu0 0.0
        %1060 = vmatpush1.xpose.msra.mxu0 0.0
        %1061 = vmatprep.subr.mxu0 0.0
        %1062 = vmatpush1.xpose.msra.mxu0 0.0
        %1063 = vmatprep.subr.mxu0 0.0
        %1064 = vmatpush1.xpose.msra.mxu0 0.0
        %1065 = vmatprep.subr.mxu0 0.0
        %1066 = vmatpush1.xpose.msra.mxu0 0.0
        %1067 = vmatprep.subr.mxu0 0.0
        %1068 = vmatpush1.xpose.msra.mxu0 0.0
        %1069 = vmatprep.subr.mxu0 0.0
        %1070 = vmatpush1.xpose.msra.mxu0 0.0
        %1071 = vmatprep.subr.mxu0 0.0
        %1072 = vmatpush1.xpose.msra.mxu0 0.0
        %1073 = vmatprep.subr.mxu0 0.0
        %1074 = vmatpush1.xpose.msra.mxu0 0.0
        %1075 = vmatprep.subr.mxu0 0.0
        %1076 = vmatpush1.xpose.msra.mxu0 0.0
        %1077 = vmatprep.subr.mxu0 0.0
        %1078 = vmatpush1.xpose.msra.mxu0 0.0
        %1079 = vmatprep.subr.mxu0 0.0
        %1080 = vmatpush1.xpose.msra.mxu0 0.0
        %1081 = vmatprep.subr.mxu0 0.0
        %1082 = vmatpush1.xpose.msra.mxu0 0.0
        %1083 = vmatprep.subr.mxu0 0.0
        %1084 = vmatpush1.xpose.msra.mxu0 0.0
        %1085 = vmatprep.subr.mxu0 0.0
        %1086 = vmatpush1.xpose.msra.mxu0 0.0
        %1087 = vmatprep.subr.mxu0 0.0
        %1088 = vmatpush1.xpose.msra.mxu0 0.0
        %1089 = vmatprep.subr.mxu0 0.0
        %1090 = vmatpush1.xpose.msra.mxu0 0.0
        %1091 = vmatprep.subr.mxu0 0.0
        %1092 = vmatpush1.xpose.msra.mxu0 0.0
        %1093 = vmatprep.subr.mxu0 0.0
        %1094 = vmatpush1.xpose.msra.mxu0 0.0
        %1095 = vmatprep.subr.mxu0 0.0
        %1096 = vmatpush1.xpose.msra.mxu0 0.0
        %1097 = vmatprep.mubr.f32.mxu0 0.0
        %1098 = vmatmul.mubr.f32.gmra.mrb[0].mxu0 %v1025
        %v1099 = vpop.f32.mrb[0].mxu0
        %v1100 = vadd.f32 0.0, %v1099
        %v1101 = vpop.f32.mrb[0].mxu0
        %1102 = vmatprep.mubr.f32.mxu0 0.0
        %1103 = vmatmul.mubr.f32.gmra.mrb[0].mxu0 %v1027
        %v1104 = vpop.f32.mrb[0].mxu0
        %v1105 = vadd.f32 0.0, %v1104
        %v1106 = vpop.f32.mrb[0].mxu0
        %1107 = vdwg.mxu0
        %v1108 = vmul.f32 %v1100, 0.17677669
        %v1109 = vmul.f32 %v1105, 0.17677669
        %v1110 = vadd.f32 %v1108, %v499
        %v1111 = vadd.f32 %v1109, %v499
        %v1112 = vsel %vm503, %v1110, -inf
        %1113 = vmax.xlane.f32.xlu0 %v1112
        %v1114 = vpop.xlane.xlu0 %1113
        %v1115 = vsel %vm503, %v1111, -inf
        %1116 = vmax.xlane.f32.xlu0 %v1115
        %v1117 = vpop.xlane.xlu0 %1116
        %v1118 = vsub.f32 %v1110, %v1114
        %v1119 = vsub.f32 %v1111, %v1117
        %v1120 = vmul.f32 %v1118, 1.442695
        %v1121 = vpow.pop %v1120
        %v1122 = vmul.f32 %v1119, 1.442695
        %v1123 = vpow.pop %v1122
        %v1124 = vsel %vm503, %v1121, 0.0
        %1125 = vadd.xlane.f32.xlu0 %v1124
        %v1126 = vpop.xlane.xlu0 %1125
        %v1127 = vsel %vm503, %v1123, 0.0
        %1128 = vadd.xlane.f32.xlu0 %v1127
        %v1129 = vpop.xlane.xlu0 %1128
        %v1130 = vrcp.pop %v1126
        %v1131 = vmul.f32 %v1121, %v1130
        %v1132 = vrcp.pop %v1129
        %v1133 = vmul.f32 %v1123, %v1132
        %1134 = vrot.lane.b32.xlu0 %v403, 32
        %v1135 = vpop.permute.xlu0 %1134
        %1136 = vrot.lane.b32.xlu0 %v404, 32
        %v1137 = vpop.permute.xlu0 %1136
        %v1141 = vsel %vm503, %v1131, 0
        %v1144 = vsel %vm503, %v1133, 0
        %1146 = vmatprep.subr.mxu0 0.0
        %1147 = vmatpush1.msra.mxu0 %v1135
        %1148 = vmatprep.subr.mxu0 0.0
        %1149 = vmatpush1.msra.mxu0 %v1137
        %1150 = vmatprep.subr.mxu0 0.0
        %1151 = vmatpush1.msra.mxu0 0.0
        %1152 = vmatprep.subr.mxu0 0.0
        %1153 = vmatpush1.msra.mxu0 0.0
        %1154 = vmatprep.subr.mxu0 0.0
        %1155 = vmatpush1.msra.mxu0 0.0
        %1156 = vmatprep.subr.mxu0 0.0
        %1157 = vmatpush1.msra.mxu0 0.0
        %1158 = vmatprep.subr.mxu0 0.0
        %1159 = vmatpush1.msra.mxu0 0.0
        %1160 = vmatprep.subr.mxu0 0.0
        %1161 = vmatpush1.msra.mxu0 0.0
        %1162 = vmatprep.subr.mxu0 0.0
        %1163 = vmatpush1.msra.mxu0 0.0
        %1164 = vmatprep.subr.mxu0 0.0
        %1165 = vmatpush1.msra.mxu0 0.0
        %1166 = vmatprep.subr.mxu0 0.0
        %1167 = vmatpush1.msra.mxu0 0.0
        %1168 = vmatprep.subr.mxu0 0.0
        %1169 = vmatpush1.msra.mxu0 0.0
        %1170 = vmatprep.subr.mxu0 0.0
        %1171 = vmatpush1.msra.mxu0 0.0
        %1172 = vmatprep.subr.mxu0 0.0
        %1173 = vmatpush1.msra.mxu0 0.0
        %1174 = vmatprep.subr.mxu0 0.0
        %1175 = vmatpush1.msra.mxu0 0.0
        %1176 = vmatprep.subr.mxu0 0.0
        %1177 = vmatpush1.msra.mxu0 0.0
        %1178 = vmatprep.subr.mxu0 0.0
        %1179 = vmatpush1.msra.mxu0 0.0
        %1180 = vmatprep.subr.mxu0 0.0
        %1181 = vmatpush1.msra.mxu0 0.0
        %1182 = vmatprep.subr.mxu0 0.0
        %1183 = vmatpush1.msra.mxu0 0.0
        %1184 = vmatprep.subr.mxu0 0.0
        %1185 = vmatpush1.msra.mxu0 0.0
        %1186 = vmatprep.subr.mxu0 0.0
        %1187 = vmatpush1.msra.mxu0 0.0
        %1188 = vmatprep.subr.mxu0 0.0
        %1189 = vmatpush1.msra.mxu0 0.0
        %1190 = vmatprep.subr.mxu0 0.0
        %1191 = vmatpush1.msra.mxu0 0.0
        %1192 = vmatprep.subr.mxu0 0.0
        %1193 = vmatpush1.msra.mxu0 0.0
        %1194 = vmatprep.subr.mxu0 0.0
        %1195 = vmatpush1.msra.mxu0 0.0
        %1196 = vmatprep.subr.mxu0 0.0
        %1197 = vmatpush1.msra.mxu0 0.0
        %1198 = vmatprep.subr.mxu0 0.0
        %1199 = vmatpush1.msra.mxu0 0.0
        %1200 = vmatprep.subr.mxu0 0.0
        %1201 = vmatpush1.msra.mxu0 0.0
        %1202 = vmatprep.subr.mxu0 0.0
        %1203 = vmatpush1.msra.mxu0 0.0
        %1204 = vmatprep.subr.mxu0 0.0
        %1205 = vmatpush1.msra.mxu0 0.0
        %1206 = vmatprep.subr.mxu0 0.0
        %1207 = vmatpush1.msra.mxu0 0.0
        %1208 = vmatprep.subr.mxu0 0.0
        %1209 = vmatpush1.msra.mxu0 0.0
        %1210 = vmatprep.mubr.f32.mxu0 0.0
        %1211 = vmatmul.mubr.f32.gmra.mrb[0].mxu0 %v1141
        %v1212 = vpop.f32.mrb[0].mxu0
        %v1213 = vadd.f32 0.0, %v1212
        %v1214 = vpop.f32.mrb[0].mxu0
        %1215 = vmatprep.mubr.f32.mxu0 0.0
        %1216 = vmatmul.mubr.f32.gmra.mrb[0].mxu0 %v1144
        %v1217 = vpop.f32.mrb[0].mxu0
        %v1218 = vadd.f32 0.0, %v1217
        %v1219 = vpop.f32.mrb[0].mxu0
        %1220 = vdwg.mxu0
        %1223 = vrot.lane.b32.xlu0 %v805, 32
        %v1224 = vpop.permute.xlu0 %1223
        %1225 = vrot.lane.b32.xlu0 %v810, 32
        %v1226 = vpop.permute.xlu0 %1225
        %1231 = vrot.lane.b32.xlu0 %v1009, 64
        %v1232 = vpop.permute.xlu0 %1231
        %1233 = vrot.lane.b32.xlu0 %v1014, 64
        %v1234 = vpop.permute.xlu0 %1233
        %1239 = vrot.lane.b32.xlu0 %v1213, 96
        %v1240 = vpop.permute.xlu0 %1239
        %1241 = vrot.lane.b32.xlu0 %v1218, 96
        %v1242 = vpop.permute.xlu0 %1241
        %v1245 = vsel %vm405, %v599, %v1224
        %v1246 = vsel %vm405, %v604, %v1226
        %vm1247 = vcmask 523264
        %v1248 = vsel %vm1247, %v1245, %v1232
        %v1249 = vsel %vm1247, %v1246, %v1234
        %vm1250 = vcmask 785408
        %v1251 = vsel %vm1250, %v1248, %v1240
        %v1252 = vsel %vm1250, %v1249, %v1242
        %v1253 = vpack.c.bf16 %v1252, %v1251
        %v1255 = vunpack.c.l.b16 %v1253
        %v1256 = vunpack.c.h.b16 %v1253
        %v1257 = vpack.c.b16 %v1255, %v1255
        %v1258 = vpack.c.b16 %v1256, %v1256
        %1261 = vst [vmem:[%s391] sm:$0xf] %v1257
        %1262 = vst [vmem:[%s391 + $0x4] sm:$0xf] %v1258
        %p1263 = scmp.lt.s32.totalorder %s15, 1
        %s1264 = scalar_select %p1263, %s15, 1
        %s1265 = smul.addr %s1264, 2
        %s1266 = smul.addr %s1265, 4
        %s1267 = scalar_lea.vmem %s4, %s1266
        // Predicated region
        $region160: #{distilbert_classifier.17} parent=146 // pred_check
          %p1268 = pneg %p137
        $region161: #{distilbert_classifier.17} parent=146 // pred_check_branch
          %1270 = sbr.rel (%p1268) target = $region163
        $region162: #{distilbert_classifier.17} parent=146 // pred_region
          _
        $region163: #{distilbert_classifier.17} parent=146 // pred_fallthru
          _
      $region147: #{distilbert_classifier.17} parent=5 // pred_fallthru
        _
      %p1271 = scmp.le.s32.totalorder 2, %s10
      // Predicated region
      $region164: #{distilbert_classifier.17} parent=5 // pred_check
        %p1272 = pneg %p1271
      $region165: #{distilbert_classifier.17} parent=5 // pred_check_branch
        %1274 = sbr.rel (%p1272) target = $region167
      $region166: #{distilbert_classifier.17} parent=5 // pred_region
        %s1275 = ssub.s32 %s10, 2
        // Predicated region
        $region168: #{distilbert_classifier.17} parent=166 // pred_check
          %p1276 = pneg %p143
        $region169: #{distilbert_classifier.17} parent=166 // pred_check_branch
          %1278 = sbr.rel (%p1276) target = $region171
        $region170: #{distilbert_classifier.17} parent=166 // pred_region
          %p1279 = scmp.lt.s32.totalorder %s16, 1
          %s1280 = scalar_select %p1279, %s16, 1
          %s1281 = smul.addr %s1280, 2
          %s1282 = smul.addr %s1281, 4
          %s1283 = scalar_lea.vmem %s4, %s1282
        $region171: #{distilbert_classifier.17} parent=166 // pred_fallthru
          _
      $region167: #{distilbert_classifier.17} parent=5 // pred_fallthru
        _
    $region6: #{distilbert_classifier.17} parent=1 // loop_footer
      %s14 = sadd.s32 1, %s10
    $region7: #{distilbert_classifier.17} parent=1 // loop_footer_branch
      %9 = sbr.rel target = $region3
    $region8: #{distilbert_classifier.17} parent=1 // loop_exit
      _

// kernel: distilbert_classifier.19
$region0: #{distilbert_classifier.19}
  #allocation0 [shape = 'u32[]', space=smem, size = 0x4, offset = 0x4, fixed_abs, tag = 'smem constant byte address 0x4 - core index']
  #allocation1 [shape = 'u32[144,128]{1,0:T(1,128)}', space=vmem, size = 0x12000, scoped, tag = 'internal scratch']
  %s0 = inlined_call_operand.vmem [shape: bf16[32,128], index: 0, kind: input, shape index: {}]
  %s1 = inlined_call_operand.vmem [shape: bf16[32,128], index: 1, kind: input, shape index: {}]
  %s2 = inlined_call_operand.vmem [shape: f32[1,128], index: 2, kind: input, shape index: {}]
  %s3 = inlined_call_operand.vmem [shape: f32[1,128], index: 3, kind: input, shape index: {}]
  %s4 = inlined_call_operand.vmem [shape: bf16[32,128], index: 4, kind: output, shape index: {}]
  %s5 = sld [smem:[#allocation0]]
  $region49: #{distilbert_classifier.19} parent=0
    _
  %s7 = ssub.s32 1, %s5
  %s8 = scalar_select 0, %s7, %s5
  loop: start=0, step=1, limit=4
  $region2: #{distilbert_classifier.19} parent=0 // loop_pre_header
    _
  $region3: #{distilbert_classifier.19} parent=0 // loop_header
    %s10 = sphi 0, %s14
    %p11 = scmp.ge.s32.totalorder %s10, 4
    %s20 = sphi 0, %s22
    %s23 = sphi 0, %s20
    %s24 = sphi 0, %s23
    %s40 = sphi 0, %s24
    %s46 = sphi 0, %s48
    %s49 = sphi 0, %s46
    %s50 = sphi 0, %s49
    %s66 = sphi 0, %s50
    %s70 = sphi 0, %s70
    %s72 = sphi 0, %s70
    %s73 = sphi 0, %s72
    %s87 = sphi 0, %s73
    %s91 = sphi 0, %s91
    %s93 = sphi 0, %s91
    %s94 = sphi 0, %s93
    %s108 = sphi 0, %s94
    %s114 = sphi 0, %s116
    %s117 = sphi 0, %s114
    %s118 = sphi 0, %s117
    %s134 = sphi 0, %s118
  $region4: #{distilbert_classifier.19} parent=0 // loop_header_branch
    %13 = sbr.rel (%p11) target = $region8
  $region5: #{distilbert_classifier.19} parent=0 // loop_body
    %s15 = ssub.s32 %s10, 1
    %s16 = ssub.s32 %s10, 2
    %s17 = sadd.s32 %s10, 1
    %s18 = ssub.s32 %s10, %s17
    %p19 = scmp.eq.s32.totalorder %s18, 0
    %s21 = sadd.s32 %s20, 1
    %s22 = scalar_select %p19, %s20, %s21
    %p25 = pneg %p19
    %p26 = scmp.eq.s32.totalorder %s10, 1
    %p27 = por %p25, %p26
    %p28 = scmp.ne.s32.totalorder %s20, %s23
    %p29 = scmp.eq.s32.totalorder %s10, 0
    %p30 = por %p28, %p29
    %p31 = scmp.ne.s32.totalorder %s20, %s23
    %p32 = scmp.eq.s32.totalorder %s15, 1
    %p33 = por %p31, %p32
    %p34 = scmp.ne.s32.totalorder %s23, %s24
    %p35 = scmp.eq.s32.totalorder %s15, 0
    %p36 = por %p34, %p35
    %p37 = scmp.ne.s32.totalorder %s23, %s24
    %p38 = scmp.eq.s32.totalorder %s16, 1
    %p39 = por %p37, %p38
    %p41 = scmp.ne.s32.totalorder %s24, %s40
    %p42 = scmp.eq.s32.totalorder %s16, 0
    %p43 = por %p41, %p42
    %s44 = ssub.s32 %s10, %s17
    %p45 = scmp.eq.s32.totalorder %s44, 0
    %s47 = sadd.s32 %s46, 1
    %s48 = scalar_select %p45, %s46, %s47
    %p51 = pneg %p45
    %p52 = scmp.eq.s32.totalorder %s10, 1
    %p53 = por %p51, %p52
    %p54 = scmp.ne.s32.totalorder %s46, %s49
    %p55 = scmp.eq.s32.totalorder %s10, 0
    %p56 = por %p54, %p55
    %p57 = scmp.ne.s32.totalorder %s46, %s49
    %p58 = scmp.eq.s32.totalorder %s15, 1
    %p59 = por %p57, %p58
    %p60 = scmp.ne.s32.totalorder %s49, %s50
    %p61 = scmp.eq.s32.totalorder %s15, 0
    %p62 = por %p60, %p61
    %p63 = scmp.ne.s32.totalorder %s49, %s50
    %p64 = scmp.eq.s32.totalorder %s16, 1
    %p65 = por %p63, %p64
    %p67 = scmp.ne.s32.totalorder %s50, %s66
    %p68 = scmp.eq.s32.totalorder %s16, 0
    %p69 = por %p67, %p68
    %s71 = sadd.s32 %s70, 1
    %p74 = scmp.eq.s32.totalorder %s10, 1
    %p75 = scmp.ne.s32.totalorder %s70, %s72
    %p76 = scmp.eq.s32.totalorder %s10, 0
    %p77 = por %p75, %p76
    %p78 = scmp.ne.s32.totalorder %s70, %s72
    %p79 = scmp.eq.s32.totalorder %s15, 1
    %p80 = por %p78, %p79
    %p81 = scmp.ne.s32.totalorder %s72, %s73
    %p82 = scmp.eq.s32.totalorder %s15, 0
    %p83 = por %p81, %p82
    %p84 = scmp.ne.s32.totalorder %s72, %s73
    %p85 = scmp.eq.s32.totalorder %s16, 1
    %p86 = por %p84, %p85
    %p88 = scmp.ne.s32.totalorder %s73, %s87
    %p89 = scmp.eq.s32.totalorder %s16, 0
    %p90 = por %p88, %p89
    %s92 = sadd.s32 %s91, 1
    %p95 = scmp.eq.s32.totalorder %s10, 1
    %p96 = scmp.ne.s32.totalorder %s91, %s93
    %p97 = scmp.eq.s32.totalorder %s10, 0
    %p98 = por %p96, %p97
    %p99 = scmp.ne.s32.totalorder %s91, %s93
    %p100 = scmp.eq.s32.totalorder %s15, 1
    %p101 = por %p99, %p100
    %p102 = scmp.ne.s32.totalorder %s93, %s94
    %p103 = scmp.eq.s32.totalorder %s15, 0
    %p104 = por %p102, %p103
    %p105 = scmp.ne.s32.totalorder %s93, %s94
    %p106 = scmp.eq.s32.totalorder %s16, 1
    %p107 = por %p105, %p106
    %p109 = scmp.ne.s32.totalorder %s94, %s108
    %p110 = scmp.eq.s32.totalorder %s16, 0
    %p111 = por %p109, %p110
    %s112 = ssub.s32 %s10, %s17
    %p113 = scmp.eq.s32.totalorder %s112, 0
    %s115 = sadd.s32 %s114, 1
    %s116 = scalar_select %p113, %s114, %s115
    %p119 = pneg %p113
    %p120 = scmp.eq.s32.totalorder %s10, 1
    %p121 = por %p119, %p120
    %p122 = scmp.ne.s32.totalorder %s114, %s117
    %p123 = scmp.eq.s32.totalorder %s10, 0
    %p124 = por %p122, %p123
    %p125 = scmp.ne.s32.totalorder %s114, %s117
    %p126 = scmp.eq.s32.totalorder %s15, 1
    %p127 = por %p125, %p126
    %p128 = scmp.ne.s32.totalorder %s117, %s118
    %p129 = scmp.eq.s32.totalorder %s15, 0
    %p130 = por %p128, %p129
    %p131 = scmp.ne.s32.totalorder %s117, %s118
    %p132 = scmp.eq.s32.totalorder %s16, 1
    %p133 = por %p131, %p132
    %p135 = scmp.ne.s32.totalorder %s118, %s134
    %p136 = scmp.eq.s32.totalorder %s16, 0
    %p137 = por %p135, %p136
    %p138 = scmp.le.s32.totalorder 1, %s10
    %p139 = scmp.lt.s32.totalorder %s10, 3
    %p140 = pnand %p138, %p139
    %p141 = pneg %p140
    // Predicated region
    $region9: #{distilbert_classifier.19} parent=5 // pred_check
      _
    $region10: #{distilbert_classifier.19} parent=5 // pred_check_branch
      %143 = sbr.rel (%p140) target = $region12
    $region11: #{distilbert_classifier.19} parent=5 // pred_region
      %s144 = ssub.s32 %s10, 1
      // Predicated region
      $region13: #{distilbert_classifier.19} parent=11 // pred_check
        %p145 = pneg %p83
      $region14: #{distilbert_classifier.19} parent=11 // pred_check_branch
        %147 = sbr.rel (%p145) target = $region16
      $region15: #{distilbert_classifier.19} parent=11 // pred_region
        _
      $region16: #{distilbert_classifier.19} parent=11 // pred_fallthru
        _
      // Predicated region
      $region17: #{distilbert_classifier.19} parent=11 // pred_check
        %p148 = pneg %p104
      $region18: #{distilbert_classifier.19} parent=11 // pred_check_branch
        %150 = sbr.rel (%p148) target = $region20
      $region19: #{distilbert_classifier.19} parent=11 // pred_region
        _
      $region20: #{distilbert_classifier.19} parent=11 // pred_fallthru
        _
    $region12: #{distilbert_classifier.19} parent=5 // pred_fallthru
      _
    %p151 = scmp.lt.s32.totalorder %s10, 2
    // Predicated region
    $region21: #{distilbert_classifier.19} parent=5 // pred_check
      %p152 = pneg %p151
    $region22: #{distilbert_classifier.19} parent=5 // pred_check_branch
      %154 = sbr.rel (%p152) target = $region24
    $region23: #{distilbert_classifier.19} parent=5 // pred_region
      // Predicated region
      $region25: #{distilbert_classifier.19} parent=23 // pred_check
        %p155 = pneg %p30
      $region26: #{distilbert_classifier.19} parent=23 // pred_check_branch
        %157 = sbr.rel (%p155) target = $region28
      $region27: #{distilbert_classifier.19} parent=23 // pred_region
        %s158 = smul.u32 2, %s10
        %p159 = scmp.lt.s32.totalorder %s158, 3
        %s160 = scalar_select %p159, %s158, 3
        %s161 = smul.addr %s160, 4
        %s162 = scalar_lea.vmem %s0, %s161
        %s163 = smul.u32 2, %s10
      $region28: #{distilbert_classifier.19} parent=23 // pred_fallthru
        _
      // Predicated region
      $region29: #{distilbert_classifier.19} parent=23 // pred_check
        %p164 = pneg %p56
      $region30: #{distilbert_classifier.19} parent=23 // pred_check_branch
        %166 = sbr.rel (%p164) target = $region32
      $region31: #{distilbert_classifier.19} parent=23 // pred_region
        %s167 = smul.u32 2, %s10
        %p168 = scmp.lt.s32.totalorder %s167, 3
        %s169 = scalar_select %p168, %s167, 3
        %s170 = smul.addr %s169, 4
        %s171 = scalar_lea.vmem %s1, %s170
        %s172 = smul.u32 2, %s10
      $region32: #{distilbert_classifier.19} parent=23 // pred_fallthru
        _
    $region24: #{distilbert_classifier.19} parent=5 // pred_fallthru
      _
    %p173 = scmp.le.s32.totalorder 1, %s10
    %p174 = scmp.lt.s32.totalorder %s10, 3
    %p175 = pnand %p173, %p174
    %p176 = pneg %p175
    // Predicated region
    $region33: #{distilbert_classifier.19} parent=5 // pred_check
      _
    $region34: #{distilbert_classifier.19} parent=5 // pred_check_branch
      %178 = sbr.rel (%p175) target = $region36
    $region35: #{distilbert_classifier.19} parent=5 // pred_region
      %s179 = ssub.s32 %s10, 1
      %s180 = smul.u32 2, %s15
      %p181 = scmp.lt.s32.totalorder %s180, 3
      %s182 = scalar_select %p181, %s180, 3
      %s183 = smul.addr %s182, 4
      %s184 = scalar_lea.vmem %s0, %s183
      %p185 = pneg %p36
      %p186 = pneg %p33
      %s187 = smul.u32 2, %s15
      %p188 = scmp.lt.s32.totalorder %s187, 3
      %s189 = scalar_select %p188, %s187, 3
      %s190 = smul.addr %s189, 4
      %s191 = scalar_lea.vmem %s1, %s190
      %p192 = pneg %p62
      %p193 = pneg %p59
      %p194 = pneg %p83
      %p195 = pneg %p80
      %p196 = pneg %p104
      %p197 = pneg %p101
      %p198 = pneg %p130
      %p199 = pneg %p127
      %s200 = smul.u32 2, %s15
      %p201 = scmp.lt.s32.totalorder %s200, 3
      %s202 = scalar_select %p201, %s200, 3
      %s203 = smul.addr %s202, 4
      %s204 = scalar_lea.vmem %s4, %s203
      %s205 = smul.u32 2, %s15
      %p206 = scmp.lt.s32.totalorder %s205, 3
      %s207 = scalar_select %p206, %s205, 3
      %s208 = smul.addr %s207, 4
      %s209 = scalar_lea.vmem %s0, %s208
      %s210 = smul.u32 2, %s15
      %s211 = smul.u32 2, %s15
      %p212 = scmp.lt.s32.totalorder %s211, 3
      %s213 = scalar_select %p212, %s211, 3
      %s214 = smul.addr %s213, 4
      %s215 = scalar_lea.vmem %s1, %s214
      %s216 = smul.u32 2, %s15
      %s217 = smul.u32 2, %s15
      %p218 = scmp.lt.s32.totalorder %s217, 3
      %s219 = scalar_select %p218, %s217, 3
      %s220 = smul.addr %s219, 4
      %s221 = scalar_lea.vmem %s4, %s220
      %s222 = smul.u32 2, %s15
      %v223 = vld [vmem:[%s209] sm:$0xf]
      %v224 = vld [vmem:[%s209 + $0x4] sm:$0xf]
      %v225 = vunpack.c.l.bf16 %v223
      %v226 = vunpack.c.l.bf16 %v224
      %v227 = vld [vmem:[%s215] sm:$0xf]
      %v228 = vld [vmem:[%s215 + $0x4] sm:$0xf]
      %v229 = vunpack.c.l.bf16 %v227
      %v230 = vunpack.c.l.bf16 %v228
      %v231 = vadd.f32 %v225, %v229
      %v232 = vadd.f32 %v226, %v230
      %233 = vadd.xlane.f32.xlu0 %v231
      %v234 = vpop.xlane.xlu0 %233
      %235 = vadd.xlane.f32.xlu0 %v232
      %v236 = vpop.xlane.xlu0 %235
      %v237 = vrcp.pop 128.0
      %v238 = vmul.f32 %v234, %v237
      %v239 = vmul.f32 %v236, %v237
      %v240 = vsub.f32 %v231, %v238
      %v241 = vsub.f32 %v232, %v239
      %v242 = vmul.f32 %v240, %v240
      %v243 = vmul.f32 %v241, %v241
      %244 = vadd.xlane.f32.xlu0 %v242
      %v245 = vpop.xlane.xlu0 %244
      %246 = vadd.xlane.f32.xlu0 %v243
      %v247 = vpop.xlane.xlu0 %246
      %v248 = vmul.f32 %v245, %v237
      %v249 = vmul.f32 %v247, %v237
      %v250 = vadd.f32 %v248, 1e-12
      %v251 = vadd.f32 %v249, 1e-12
      %v252 = vrsqrt.pop %v250
      %v253 = vrsqrt.pop %v251
      %v254 = vmul.f32 %v240, %v252
      %v255 = vmul.f32 %v241, %v253
      %v256 = vld [vmem:[%s2] sm:$0x1]
      %v258 = vlaneseq
      %v259 = vshrl.u32 %v258, 7
      %v260 = vsub.s32 0, %v259
      %v261 = vrot.slane %v256, %v260
      %v263 = vmul.f32 %v254, %v261
      %v264 = vmul.f32 %v255, %v261
      %v265 = vld [vmem:[%s3] sm:$0x1]
      %v267 = vlaneseq
      %v268 = vshrl.u32 %v267, 7
      %v269 = vsub.s32 0, %v268
      %v270 = vrot.slane %v265, %v269
      %v272 = vadd.f32 %v263, %v270
      %v273 = vadd.f32 %v264, %v270
      %v274 = vpack.c.bf16 %v273, %v272
      %v276 = vunpack.c.l.b16 %v274
      %v277 = vunpack.c.h.b16 %v274
      %v278 = vpack.c.b16 %v276, %v276
      %v279 = vpack.c.b16 %v277, %v277
      %282 = vst [vmem:[%s221] sm:$0xf] %v278
      %283 = vst [vmem:[%s221 + $0x4] sm:$0xf] %v279
      %s284 = smul.u32 2, %s15
      %p285 = scmp.lt.s32.totalorder %s284, 3
      %s286 = scalar_select %p285, %s284, 3
      %s287 = smul.addr %s286, 4
      %s288 = scalar_lea.vmem %s4, %s287
      // Predicated region
      $region37: #{distilbert_classifier.19} parent=35 // pred_check
        %p289 = pneg %p127
      $region38: #{distilbert_classifier.19} parent=35 // pred_check_branch
        %291 = sbr.rel (%p289) target = $region40
      $region39: #{distilbert_classifier.19} parent=35 // pred_region
        %s292 = smul.u32 2, %s15
      $region40: #{distilbert_classifier.19} parent=35 // pred_fallthru
        _
    $region36: #{distilbert_classifier.19} parent=5 // pred_fallthru
      _
    %p293 = scmp.le.s32.totalorder 2, %s10
    // Predicated region
    $region41: #{distilbert_classifier.19} parent=5 // pred_check
      %p294 = pneg %p293
    $region42: #{distilbert_classifier.19} parent=5 // pred_check_branch
      %296 = sbr.rel (%p294) target = $region44
    $region43: #{distilbert_classifier.19} parent=5 // pred_region
      %s297 = ssub.s32 %s10, 2
      // Predicated region
      $region45: #{distilbert_classifier.19} parent=43 // pred_check
        %p298 = pneg %p133
      $region46: #{distilbert_classifier.19} parent=43 // pred_check_branch
        %300 = sbr.rel (%p298) target = $region48
      $region47: #{distilbert_classifier.19} parent=43 // pred_region
        %s301 = smul.u32 2, %s16
        %p302 = scmp.lt.s32.totalorder %s301, 3
        %s303 = scalar_select %p302, %s301, 3
        %s304 = smul.addr %s303, 4
        %s305 = scalar_lea.vmem %s4, %s304
      $region48: #{distilbert_classifier.19} parent=43 // pred_fallthru
        _
    $region44: #{distilbert_classifier.19} parent=5 // pred_fallthru
      _
  $region6: #{distilbert_classifier.19} parent=0 // loop_footer
    %s14 = sadd.s32 1, %s10
  $region7: #{distilbert_classifier.19} parent=0 // loop_footer_branch
    %9 = sbr.rel target = $region3
  $region8: #{distilbert_classifier.19} parent=0 // loop_exit
    _

// kernel: distilbert_classifier.20
$region0: #{distilbert_classifier.20}
  #allocation0 [shape = 'u32[]', space=smem, size = 0x4, offset = 0x4, fixed_abs, tag = 'smem constant byte address 0x4 - core index']
  #allocation1 [shape = 'u32[144,128]{1,0:T(1,128)}', space=vmem, size = 0x12000, scoped, tag = 'internal scratch']
  #allocation2 [shape = 'f32[16,256]{1,0:T(8,128)}', space=vmem, size = 0x4000, scoped, tag = 'scratch operand']
  %s0 = inlined_call_operand.vmem [shape: bf16[32,128], index: 0, kind: input, shape index: {}]
  %s1 = inlined_call_operand.vmem [shape: bf16[128,256], index: 1, kind: input, shape index: {}]
  %s2 = inlined_call_operand.vmem [shape: f32[1,256], index: 2, kind: input, shape index: {}]
  %s3 = inlined_call_operand.vmem [shape: bf16[32,256], index: 3, kind: output, shape index: {}]
  %s4 = sld [smem:[#allocation0]]
  $region53: #{distilbert_classifier.20} parent=0
    _
  %s6 = ssub.s32 1, %s4
  %s7 = scalar_select 0, %s6, %s4
  loop: start=0, step=1, limit=4
  $region2: #{distilbert_classifier.20} parent=0 // loop_pre_header
    _
  $region3: #{distilbert_classifier.20} parent=0 // loop_header
    %s9 = sphi 0, %s13
    %p10 = scmp.ge.s32.totalorder %s9, 4
    %s16 = sphi 0, %s35
    %s17 = sphi 0, %s31
    %s18 = sphi 0, %s27
    %s19 = sphi 0, %s16
    %s20 = sphi 0, %s17
    %s21 = sphi 0, %s18
    %s22 = sphi 0, %s19
    %s23 = sphi 0, %s20
    %s24 = sphi 0, %s21
    %s40 = sphi 0, %s42
    %s43 = sphi 0, %s40
    %s44 = sphi 0, %s43
    %s60 = sphi 0, %s44
    %s68 = sphi 0, %s70
    %s71 = sphi 0, %s68
    %s72 = sphi 0, %s71
    %s88 = sphi 0, %s72
    %s94 = sphi 0, %s96
    %s97 = sphi 0, %s94
    %s98 = sphi 0, %s97
    %s114 = sphi 0, %s98
    %s122 = sphi 0, %s124
    %s125 = sphi 0, %s122
    %s126 = sphi 0, %s125
    %s142 = sphi 0, %s126
  $region4: #{distilbert_classifier.20} parent=0 // loop_header_branch
    %12 = sbr.rel (%p10) target = $region8
  $region5: #{distilbert_classifier.20} parent=0 // loop_body
    %s14 = ssub.s32 %s9, 1
    %s15 = ssub.s32 %s9, 2
    %s25 = sadd.s32 1, %s18
    %p26 = scmp.ge.s32.totalorder %s25, 1
    %s27 = scalar_select %p26, 0, %s25
    %s28 = sadd.s32 1, %s17
    %s29 = scalar_select %p26, %s28, %s17
    %p30 = scmp.ge.s32.totalorder %s29, 1
    %s31 = scalar_select %p30, 0, %s29
    %s32 = sadd.s32 1, %s16
    %s33 = scalar_select %p30, %s32, %s16
    %p34 = scmp.ge.s32.totalorder %s33, 2
    %s35 = scalar_select %p34, 0, %s33
    %s36 = ssub.s32 %s16, %s35
    %s37 = ssub.s32 %s18, %s27
    %s38 = sor.u32 %s36, %s37
    %p39 = scmp.eq.s32.totalorder %s38, 0
    %s41 = sadd.s32 %s40, 1
    %s42 = scalar_select %p39, %s40, %s41
    %p45 = pneg %p39
    %p46 = scmp.eq.s32.totalorder %s9, 1
    %p47 = por %p45, %p46
    %p48 = scmp.ne.s32.totalorder %s40, %s43
    %p49 = scmp.eq.s32.totalorder %s9, 0
    %p50 = por %p48, %p49
    %p51 = scmp.ne.s32.totalorder %s40, %s43
    %p52 = scmp.eq.s32.totalorder %s14, 1
    %p53 = por %p51, %p52
    %p54 = scmp.ne.s32.totalorder %s43, %s44
    %p55 = scmp.eq.s32.totalorder %s14, 0
    %p56 = por %p54, %p55
    %p57 = scmp.ne.s32.totalorder %s43, %s44
    %p58 = scmp.eq.s32.totalorder %s15, 1
    %p59 = por %p57, %p58
    %p61 = scmp.ne.s32.totalorder %s44, %s60
    %p62 = scmp.eq.s32.totalorder %s15, 0
    %p63 = por %p61, %p62
    %s64 = ssub.s32 %s18, %s27
    %s65 = ssub.s32 %s17, %s31
    %s66 = sor.u32 %s64, %s65
    %p67 = scmp.eq.s32.totalorder %s66, 0
    %s69 = sadd.s32 %s68, 1
    %s70 = scalar_select %p67, %s68, %s69
    %p73 = pneg %p67
    %p74 = scmp.eq.s32.totalorder %s9, 1
    %p75 = por %p73, %p74
    %p76 = scmp.ne.s32.totalorder %s68, %s71
    %p77 = scmp.eq.s32.totalorder %s9, 0
    %p78 = por %p76, %p77
    %p79 = scmp.ne.s32.totalorder %s68, %s71
    %p80 = scmp.eq.s32.totalorder %s14, 1
    %p81 = por %p79, %p80
    %p82 = scmp.ne.s32.totalorder %s71, %s72
    %p83 = scmp.eq.s32.totalorder %s14, 0
    %p84 = por %p82, %p83
    %p85 = scmp.ne.s32.totalorder %s71, %s72
    %p86 = scmp.eq.s32.totalorder %s15, 1
    %p87 = por %p85, %p86
    %p89 = scmp.ne.s32.totalorder %s72, %s88
    %p90 = scmp.eq.s32.totalorder %s15, 0
    %p91 = por %p89, %p90
    %s92 = ssub.s32 %s17, %s31
    %p93 = scmp.eq.s32.totalorder %s92, 0
    %s95 = sadd.s32 %s94, 1
    %s96 = scalar_select %p93, %s94, %s95
    %p99 = pneg %p93
    %p100 = scmp.eq.s32.totalorder %s9, 1
    %p101 = por %p99, %p100
    %p102 = scmp.ne.s32.totalorder %s94, %s97
    %p103 = scmp.eq.s32.totalorder %s9, 0
    %p104 = por %p102, %p103
    %p105 = scmp.ne.s32.totalorder %s94, %s97
    %p106 = scmp.eq.s32.totalorder %s14, 1
    %p107 = por %p105, %p106
    %p108 = scmp.ne.s32.totalorder %s97, %s98
    %p109 = scmp.eq.s32.totalorder %s14, 0
    %p110 = por %p108, %p109
    %p111 = scmp.ne.s32.totalorder %s97, %s98
    %p112 = scmp.eq.s32.totalorder %s15, 1
    %p113 = por %p111, %p112
    %p115 = scmp.ne.s32.totalorder %s98, %s114
    %p116 = scmp.eq.s32.totalorder %s15, 0
    %p117 = por %p115, %p116
    %s118 = ssub.s32 %s16, %s35
    %s119 = ssub.s32 %s17, %s31
    %s120 = sor.u32 %s118, %s119
    %p121 = scmp.eq.s32.totalorder %s120, 0
    %s123 = sadd.s32 %s122, 1
    %s124 = scalar_select %p121, %s122, %s123
    %p127 = pneg %p121
    %p128 = scmp.eq.s32.totalorder %s9, 1
    %p129 = por %p127, %p128
    %p130 = scmp.ne.s32.totalorder %s122, %s125
    %p131 = scmp.eq.s32.totalorder %s9, 0
    %p132 = por %p130, %p131
    %p133 = scmp.ne.s32.totalorder %s122, %s125
    %p134 = scmp.eq.s32.totalorder %s14, 1
    %p135 = por %p133, %p134
    %p136 = scmp.ne.s32.totalorder %s125, %s126
    %p137 = scmp.eq.s32.totalorder %s14, 0
    %p138 = por %p136, %p137
    %p139 = scmp.ne.s32.totalorder %s125, %s126
    %p140 = scmp.eq.s32.totalorder %s15, 1
    %p141 = por %p139, %p140
    %p143 = scmp.ne.s32.totalorder %s126, %s142
    %p144 = scmp.eq.s32.totalorder %s15, 0
    %p145 = por %p143, %p144
    %p146 = scmp.le.s32.totalorder 1, %s9
    %p147 = scmp.lt.s32.totalorder %s9, 3
    %p148 = pnand %p146, %p147
    %p149 = pneg %p148
    // Predicated region
    $region9: #{distilbert_classifier.20} parent=5 // pred_check
      _
    $region10: #{distilbert_classifier.20} parent=5 // pred_check_branch
      %151 = sbr.rel (%p148) target = $region12
    $region11: #{distilbert_classifier.20} parent=5 // pred_region
      %s152 = ssub.s32 %s9, 1
      // Predicated region
      $region13: #{distilbert_classifier.20} parent=11 // pred_check
        %p153 = pneg %p84
      $region14: #{distilbert_classifier.20} parent=11 // pred_check_branch
        %155 = sbr.rel (%p153) target = $region16
      $region15: #{distilbert_classifier.20} parent=11 // pred_region
        %s156 = smul.u32 16, %s21
        %s157 = smul.u32 2, %s20
        %p158 = scmp.lt.s32.totalorder %s156, 15
        %s159 = scalar_select %p158, %s156, 15
        %p160 = scmp.lt.s32.totalorder %s157, 1
        %s161 = scalar_select %p160, %s157, 1
        %s162 = smul.addr %s159, 2
        %s163 = sadd.s32 %s161, %s162
        %s164 = smul.addr %s163, 4
        %s165 = scalar_lea.vmem %s1, %s164
        %s166 = smul.u32 16, %s21
        %s167 = smul.u32 2, %s20
      $region16: #{distilbert_classifier.20} parent=11 // pred_fallthru
        _
      // Predicated region
      $region17: #{distilbert_classifier.20} parent=11 // pred_check
        %p168 = pneg %p110
      $region18: #{distilbert_classifier.20} parent=11 // pred_check_branch
        %170 = sbr.rel (%p168) target = $region20
      $region19: #{distilbert_classifier.20} parent=11 // pred_region
        %s171 = smul.u32 2, %s20
        %p172 = scmp.lt.s32.totalorder %s171, 1
        %s173 = scalar_select %p172, %s171, 1
        %s174 = scalar_lea.vmem %s2, %s173
        %s175 = smul.u32 2, %s20
      $region20: #{distilbert_classifier.20} parent=11 // pred_fallthru
        _
    $region12: #{distilbert_classifier.20} parent=5 // pred_fallthru
      _
    %p176 = scmp.lt.s32.totalorder %s9, 2
    // Predicated region
    $region21: #{distilbert_classifier.20} parent=5 // pred_check
      %p177 = pneg %p176
    $region22: #{distilbert_classifier.20} parent=5 // pred_check_branch
      %179 = sbr.rel (%p177) target = $region24
    $region23: #{distilbert_classifier.20} parent=5 // pred_region
      // Predicated region
      $region25: #{distilbert_classifier.20} parent=23 // pred_check
        %p180 = pneg %p50
      $region26: #{distilbert_classifier.20} parent=23 // pred_check_branch
        %182 = sbr.rel (%p180) target = $region28
      $region27: #{distilbert_classifier.20} parent=23 // pred_region
        %s183 = smul.u32 2, %s16
        %p184 = scmp.lt.s32.totalorder %s183, 3
        %s185 = scalar_select %p184, %s183, 3
        %p186 = scmp.lt.s32.totalorder %s18, 0
        %s187 = scalar_select %p186, %s18, 0
        %s188 = sadd.s32 %s187, %s185
        %s189 = smul.addr %s188, 4
        %s190 = scalar_lea.vmem %s0, %s189
        %s191 = smul.u32 2, %s16
      $region28: #{distilbert_classifier.20} parent=23 // pred_fallthru
        _
    $region24: #{distilbert_classifier.20} parent=5 // pred_fallthru
      _
    %p192 = scmp.le.s32.totalorder 1, %s9
    %p193 = scmp.lt.s32.totalorder %s9, 3
    %p194 = pnand %p192, %p193
    %p195 = pneg %p194
    // Predicated region
    $region29: #{distilbert_classifier.20} parent=5 // pred_check
      _
    $region30: #{distilbert_classifier.20} parent=5 // pred_check_branch
      %197 = sbr.rel (%p194) target = $region32
    $region31: #{distilbert_classifier.20} parent=5 // pred_region
      %s198 = ssub.s32 %s9, 1
      %s199 = smul.u32 2, %s19
      %p200 = scmp.lt.s32.totalorder %s199, 3
      %s201 = scalar_select %p200, %s199, 3
      %p202 = scmp.lt.s32.totalorder %s21, 0
      %s203 = scalar_select %p202, %s21, 0
      %s204 = sadd.s32 %s203, %s201
      %s205 = smul.addr %s204, 4
      %s206 = scalar_lea.vmem %s0, %s205
      %p207 = pneg %p56
      %p208 = pneg %p53
      %s209 = smul.u32 16, %s21
      %s210 = smul.u32 2, %s20
      %p211 = scmp.lt.s32.totalorder %s209, 15
      %s212 = scalar_select %p211, %s209, 15
      %p213 = scmp.lt.s32.totalorder %s210, 1
      %s214 = scalar_select %p213, %s210, 1
      %s215 = smul.addr %s212, 2
      %s216 = sadd.s32 %s214, %s215
      %s217 = smul.addr %s216, 4
      %s218 = scalar_lea.vmem %s1, %s217
      %p219 = pneg %p84
      %p220 = pneg %p81
      %s221 = smul.u32 2, %s20
      %p222 = scmp.lt.s32.totalorder %s221, 1
      %s223 = scalar_select %p222, %s221, 1
      %s224 = scalar_lea.vmem %s2, %s223
      %p225 = pneg %p110
      %p226 = pneg %p107
      %p227 = pneg %p138
      %p228 = pneg %p135
      %s229 = smul.u32 2, %s19
      %s230 = smul.u32 2, %s20
      %p231 = scmp.lt.s32.totalorder %s229, 3
      %s232 = scalar_select %p231, %s229, 3
      %p233 = scmp.lt.s32.totalorder %s230, 1
      %s234 = scalar_select %p233, %s230, 1
      %s235 = smul.addr %s232, 2
      %s236 = sadd.s32 %s234, %s235
      %s237 = smul.addr %s236, 4
      %s238 = scalar_lea.vmem %s3, %s237
      %s239 = smul.u32 2, %s19
      %p240 = scmp.lt.s32.totalorder %s239, 3
      %s241 = scalar_select %p240, %s239, 3
      %p242 = scmp.lt.s32.totalorder %s21, 0
      %s243 = scalar_select %p242, %s21, 0
      %s244 = sadd.s32 %s243, %s241
      %s245 = smul.addr %s244, 4
      %s246 = scalar_lea.vmem %s0, %s245
      %s247 = smul.u32 2, %s19
      %s248 = smul.u32 16, %s21
      %s249 = smul.u32 2, %s20
      %p250 = scmp.lt.s32.totalorder %s248, 15
      %s251 = scalar_select %p250, %s248, 15
      %p252 = scmp.lt.s32.totalorder %s249, 1
      %s253 = scalar_select %p252, %s249, 1
      %s254 = smul.addr %s251, 2
      %s255 = sadd.s32 %s253, %s254
      %s256 = smul.addr %s255, 4
      %s257 = scalar_lea.vmem %s1, %s256
      %s258 = smul.u32 16, %s21
      %s259 = smul.u32 2, %s20
      %s260 = smul.u32 2, %s20
      %p261 = scmp.lt.s32.totalorder %s260, 1
      %s262 = scalar_select %p261, %s260, 1
      %s263 = scalar_lea.vmem %s2, %s262
      %s264 = smul.u32 2, %s20
      %s265 = smul.u32 2, %s19
      %s266 = smul.u32 2, %s20
      %p267 = scmp.lt.s32.totalorder %s265, 3
      %s268 = scalar_select %p267, %s265, 3
      %p269 = scmp.lt.s32.totalorder %s266, 1
      %s270 = scalar_select %p269, %s266, 1
      %s271 = smul.addr %s268, 2
      %s272 = sadd.s32 %s270, %s271
      %s273 = smul.addr %s272, 4
      %s274 = scalar_lea.vmem %s3, %s273
      %s275 = smul.u32 2, %s19
      %s276 = smul.u32 2, %s20
      %p278 = scmp.eq.s32.totalorder %s21, 0
      // Predicated region
      $region33: #{distilbert_classifier.20} parent=31 // pred_check
        %p279 = pneg %p278
      $region34: #{distilbert_classifier.20} parent=31 // pred_check_branch
        %281 = sbr.rel (%p279) target = $region36
      $region35: #{distilbert_classifier.20} parent=31 // pred_region
        %282 = vst [vmem:[#allocation2] sm:$0xff] 0.0
        %283 = vst [vmem:[#allocation2 + $0x8] sm:$0xff] 0.0
        %284 = vst [vmem:[#allocation2 + $0x10] sm:$0xff] 0.0
        %285 = vst [vmem:[#allocation2 + $0x18] sm:$0xff] 0.0
      $region36: #{distilbert_classifier.20} parent=31 // pred_fallthru
        _
      %v286 = vld [vmem:[#allocation2] sm:$0xff]
      %v287 = vld [vmem:[#allocation2 + $0x8] sm:$0xff]
      %v288 = vld [vmem:[#allocation2 + $0x10] sm:$0xff]
      %v289 = vld [vmem:[#allocation2 + $0x18] sm:$0xff]
      %v290 = vld [vmem:[%s246] sm:$0xf]
      %v291 = vld [vmem:[%s246 + $0x4] sm:$0xf]
      %v292 = vld [vmem:[%s257] sm:$0xff]
      %v293 = vld [vmem:[%s257 + $0x8] sm:$0xff]
      %v294 = vld [vmem:[%s257 + $0x10] sm:$0xff]
      %v295 = vld [vmem:[%s257 + $0x18] sm:$0xff]
      %v296 = vld [vmem:[%s257 + $0x20] sm:$0xff]
      %v297 = vld [vmem:[%s257 + $0x28] sm:$0xff]
      %v298 = vld [vmem:[%s257 + $0x30] sm:$0xff]
      %v299 = vld [vmem:[%s257 + $0x38] sm:$0xff]
      %v300 = vld [vmem:[%s257 + $0x40] sm:$0xff]
      %v301 = vld [vmem:[%s257 + $0x48] sm:$0xff]
      %v302 = vld [vmem:[%s257 + $0x50] sm:$0xff]
      %v303 = vld [vmem:[%s257 + $0x58] sm:$0xff]
      %v304 = vld [vmem:[%s257 + $0x60] sm:$0xff]
      %v305 = vld [vmem:[%s257 + $0x68] sm:$0xff]
      %v306 = vld [vmem:[%s257 + $0x70] sm:$0xff]
      %v307 = vld [vmem:[%s257 + $0x78] sm:$0xff]
      %v310 = vunpack.c.l.b16 %v290
      %v311 = vunpack.c.l.b16 %v291
      %v312 = vpack.c.b16 %v311, %v310
      %v330 = vunpack.c.l.b16 %v292
      %v331 = vunpack.c.h.b16 %v292
      %v332 = vunpack.c.l.b16 %v293
      %v333 = vunpack.c.h.b16 %v293
      %v334 = vunpack.c.l.b16 %v294
      %v335 = vunpack.c.h.b16 %v294
      %v336 = vunpack.c.l.b16 %v295
      %v337 = vunpack.c.h.b16 %v295
      %v338 = vunpack.c.l.b16 %v296
      %v339 = vunpack.c.h.b16 %v296
      %v340 = vunpack.c.l.b16 %v297
      %v341 = vunpack.c.h.b16 %v297
      %v342 = vunpack.c.l.b16 %v298
      %v343 = vunpack.c.h.b16 %v298
      %v344 = vunpack.c.l.b16 %v299
      %v345 = vunpack.c.h.b16 %v299
      %v346 = vunpack.c.l.b16 %v300
      %v347 = vunpack.c.h.b16 %v300
      %v348 = vunpack.c.l.b16 %v301
      %v349 = vunpack.c.h.b16 %v301
      %v350 = vunpack.c.l.b16 %v302
      %v351 = vunpack.c.h.b16 %v302
      %v352 = vunpack.c.l.b16 %v303
      %v353 = vunpack.c.h.b16 %v303
      %v354 = vunpack.c.l.b16 %v304
      %v355 = vunpack.c.h.b16 %v304
      %v356 = vunpack.c.l.b16 %v305
      %v357 = vunpack.c.h.b16 %v305
      %v358 = vunpack.c.l.b16 %v306
      %v359 = vunpack.c.h.b16 %v306
      %v360 = vunpack.c.l.b16 %v307
      %v361 = vunpack.c.h.b16 %v307
      %v362 = vpack.c.b16 %v332, %v330
      %v363 = vpack.c.b16 %v333, %v331
      %v364 = vpack.c.b16 %v336, %v334
      %v365 = vpack.c.b16 %v337, %v335
      %v366 = vpack.c.b16 %v340, %v338
      %v367 = vpack.c.b16 %v341, %v339
      %v368 = vpack.c.b16 %v344, %v342
      %v369 = vpack.c.b16 %v345, %v343
      %v370 = vpack.c.b16 %v348, %v346
      %v371 = vpack.c.b16 %v349, %v347
      %v372 = vpack.c.b16 %v352, %v350
      %v373 = vpack.c.b16 %v353, %v351
      %v374 = vpack.c.b16 %v356, %v354
      %v375 = vpack.c.b16 %v357, %v355
      %v376 = vpack.c.b16 %v360, %v358
      %v377 = vpack.c.b16 %v361, %v359
      %394 = vmatprep.subr.bf16.mxu0 %v363
      %395 = vmatpush1.bf16.msra.mxu0 %v362
      %396 = vmatprep.subr.bf16.mxu0 %v365
      %397 = vmatpush1.bf16.msra.mxu0 %v364
      %398 = vmatprep.subr.bf16.mxu0 %v367
      %399 = vmatpush1.bf16.msra.mxu0 %v366
      %400 = vmatprep.subr.bf16.mxu0 %v369
      %401 = vmatpush1.bf16.msra.mxu0 %v368
      %402 = vmatprep.subr.bf16.mxu0 %v371
      %403 = vmatpush1.bf16.msra.mxu0 %v370
      %404 = vmatprep.subr.bf16.mxu0 %v373
      %405 = vmatpush1.bf16.msra.mxu0 %v372
      %406 = vmatprep.subr.bf16.mxu0 %v375
      %407 = vmatpush1.bf16.msra.mxu0 %v374
      %408 = vmatprep.subr.bf16.mxu0 %v377
      %409 = vmatpush1.bf16.msra.mxu0 %v376
      %410 = vmatprep.subr.bf16.mxu0 0
      %411 = vmatpush1.bf16.msra.mxu0 0
      %412 = vmatprep.subr.bf16.mxu0 0
      %413 = vmatpush1.bf16.msra.mxu0 0
      %414 = vmatprep.subr.bf16.mxu0 0
      %415 = vmatpush1.bf16.msra.mxu0 0
      %416 = vmatprep.subr.bf16.mxu0 0
      %417 = vmatpush1.bf16.msra.mxu0 0
      %418 = vmatprep.subr.bf16.mxu0 0
      %419 = vmatpush1.bf16.msra.mxu0 0
      %420 = vmatprep.subr.bf16.mxu0 0
      %421 = vmatpush1.bf16.msra.mxu0 0
      %422 = vmatprep.subr.bf16.mxu0 0
      %423 = vmatpush1.bf16.msra.mxu0 0
      %424 = vmatprep.subr.bf16.mxu0 0
      %425 = vmatpush1.bf16.msra.mxu0 0
      %426 = vmatprep.mubr.bf16.mxu0 0
      %427 = vmatmul.mubr.bf16.gmra.mrb[0].mxu0 %v312
      %v428 = vpop.f32.mrb[0].mxu0
      %v429 = vadd.f32 0.0, %v428
      %v430 = vpop.f32.mrb[0].mxu0
      %v431 = vadd.f32 0.0, %v430
      %v432 = vpop.f32.mrb[0].mxu0
      %v433 = vadd.f32 0.0, %v432
      %v434 = vpop.f32.mrb[0].mxu0
      %v435 = vadd.f32 0.0, %v434
      %436 = vdwg.mxu0
      %v437 = vadd.f32 %v286, %v429
      %v438 = vadd.f32 %v287, %v431
      %v439 = vadd.f32 %v288, %v433
      %v440 = vadd.f32 %v289, %v435
      %441 = vst [vmem:[#allocation2] sm:$0xff] %v437
      %442 = vst [vmem:[#allocation2 + $0x8] sm:$0xff] %v438
      %443 = vst [vmem:[#allocation2 + $0x10] sm:$0xff] %v439
      %444 = vst [vmem:[#allocation2 + $0x18] sm:$0xff] %v440
      // Predicated region
      $region37: #{distilbert_classifier.20} parent=31 // pred_check
        %p445 = pneg %p278
      $region38: #{distilbert_classifier.20} parent=31 // pred_check_branch
        %447 = sbr.rel (%p445) target = $region40
      $region39: #{distilbert_classifier.20} parent=31 // pred_region
        %v448 = vld [vmem:[#allocation2] sm:$0xff]
        %v449 = vld [vmem:[#allocation2 + $0x8] sm:$0xff]
        %v450 = vld [vmem:[#allocation2 + $0x10] sm:$0xff]
        %v451 = vld [vmem:[#allocation2 + $0x18] sm:$0xff]
        %v452 = vld [vmem:[%s263] sm:$0x3]
        %v454 = vlaneseq
        %v455 = vshrl.u32 %v454, 7
        %v456 = vsub.s32 0, %v455
        %v457 = vrot.slane %v452, %v456
        %v458 = vlaneseq
        %v459 = vshrl.u32 %v458, 7
        %v460 = vsub.s32 1, %v459
        %v461 = vrot.slane %v452, %v460
        %v464 = vadd.f32 %v448, %v457
        %v465 = vadd.f32 %v449, %v461
        %v466 = vadd.f32 %v450, %v457
        %v467 = vadd.f32 %v451, %v461
        %v468 = vmul.f32 %v464, %v464
        %v469 = vmul.f32 %v465, %v465
        %v470 = vmul.f32 %v466, %v466
        %v471 = vmul.f32 %v467, %v467
        %v472 = vmul.f32 %v464, %v468
        %v473 = vmul.f32 %v465, %v469
        %v474 = vmul.f32 %v466, %v470
        %v475 = vmul.f32 %v467, %v471
        %v476 = vmul.f32 %v472, 0.044715
        %v477 = vmul.f32 %v473, 0.044715
        %v478 = vmul.f32 %v474, 0.044715
        %v479 = vmul.f32 %v475, 0.044715
        %v480 = vadd.f32 %v464, %v476
        %v481 = vadd.f32 %v465, %v477
        %v482 = vadd.f32 %v466, %v478
        %v483 = vadd.f32 %v467, %v479
        %v484 = vmul.f32 %v480, 0.7978846
        %v485 = vmul.f32 %v481, 0.7978846
        %v486 = vmul.f32 %v482, 0.7978846
        %v487 = vmul.f32 %v483, 0.7978846
        %v488 = vtanh.pop %v484
        %v489 = vtanh.pop %v485
        %v490 = vtanh.pop %v486
        %v491 = vtanh.pop %v487
        %v492 = vadd.f32 %v488, 1.0
        %v493 = vadd.f32 %v489, 1.0
        %v494 = vadd.f32 %v490, 1.0
        %v495 = vadd.f32 %v491, 1.0
        %v496 = vmul.f32 %v492, 0.5
        %v497 = vmul.f32 %v493, 0.5
        %v498 = vmul.f32 %v494, 0.5
        %v499 = vmul.f32 %v495, 0.5
        %v500 = vmul.f32 %v464, %v496
        %v501 = vmul.f32 %v465, %v497
        %v502 = vmul.f32 %v466, %v498
        %v503 = vmul.f32 %v467, %v499
        %v504 = vpack.c.bf16 %v502, %v500
        %v505 = vpack.c.bf16 %v503, %v501
        %v508 = vunpack.c.l.b16 %v504
        %v509 = vunpack.c.l.b16 %v505
        %v510 = vunpack.c.h.b16 %v504
        %v511 = vunpack.c.h.b16 %v505
        %v512 = vpack.c.b16 %v509, %v508
        %v513 = vpack.c.b16 %v511, %v510
        %516 = vst [vmem:[%s274] sm:$0xff] %v512
        %517 = vst [vmem:[%s274 + $0x8] sm:$0xff] %v513
      $region40: #{distilbert_classifier.20} parent=31 // pred_fallthru
        _
      %s518 = smul.u32 2, %s19
      %s519 = smul.u32 2, %s20
      %p520 = scmp.lt.s32.totalorder %s518, 3
      %s521 = scalar_select %p520, %s518, 3
      %p522 = scmp.lt.s32.totalorder %s519, 1
      %s523 = scalar_select %p522, %s519, 1
      %s524 = smul.addr %s521, 2
      %s525 = sadd.s32 %s523, %s524
      %s526 = smul.addr %s525, 4
      %s527 = scalar_lea.vmem %s3, %s526
      // Predicated region
      $region41: #{distilbert_classifier.20} parent=31 // pred_check
        %p528 = pneg %p135
      $region42: #{distilbert_classifier.20} parent=31 // pred_check_branch
        %530 = sbr.rel (%p528) target = $region44
      $region43: #{distilbert_classifier.20} parent=31 // pred_region
        %s531 = smul.u32 2, %s19
        %s532 = smul.u32 2, %s20
      $region44: #{distilbert_classifier.20} parent=31 // pred_fallthru
        _
    $region32: #{distilbert_classifier.20} parent=5 // pred_fallthru
      _
    %p533 = scmp.le.s32.totalorder 2, %s9
    // Predicated region
    $region45: #{distilbert_classifier.20} parent=5 // pred_check
      %p534 = pneg %p533
    $region46: #{distilbert_classifier.20} parent=5 // pred_check_branch
      %536 = sbr.rel (%p534) target = $region48
    $region47: #{distilbert_classifier.20} parent=5 // pred_region
      %s537 = ssub.s32 %s9, 2
      // Predicated region
      $region49: #{distilbert_classifier.20} parent=47 // pred_check
        %p538 = pneg %p141
      $region50: #{distilbert_classifier.20} parent=47 // pred_check_branch
        %540 = sbr.rel (%p538) target = $region52
      $region51: #{distilbert_classifier.20} parent=47 // pred_region
        %s541 = smul.u32 2, %s22
        %s542 = smul.u32 2, %s23
        %p543 = scmp.lt.s32.totalorder %s541, 3
        %s544 = scalar_select %p543, %s541, 3
        %p545 = scmp.lt.s32.totalorder %s542, 1
        %s546 = scalar_select %p545, %s542, 1
        %s547 = smul.addr %s544, 2
        %s548 = sadd.s32 %s546, %s547
        %s549 = smul.addr %s548, 4
        %s550 = scalar_lea.vmem %s3, %s549
      $region52: #{distilbert_classifier.20} parent=47 // pred_fallthru
        _
    $region48: #{distilbert_classifier.20} parent=5 // pred_fallthru
      _
  $region6: #{distilbert_classifier.20} parent=0 // loop_footer
    %s13 = sadd.s32 1, %s9
  $region7: #{distilbert_classifier.20} parent=0 // loop_footer_branch
    %8 = sbr.rel target = $region3
  $region8: #{distilbert_classifier.20} parent=0 // loop_exit
    _

// kernel: distilbert_classifier.21
$region0: #{distilbert_classifier.21}
  #allocation0 [shape = 'u32[]', space=smem, size = 0x4, offset = 0x4, fixed_abs, tag = 'smem constant byte address 0x4 - core index']
  #allocation1 [shape = 'u32[144,128]{1,0:T(1,128)}', space=vmem, size = 0x12000, scoped, tag = 'internal scratch']
  #allocation2 [shape = 'f32[16,128]{1,0:T(8,128)}', space=vmem, size = 0x2000, scoped, tag = 'scratch operand']
  %s0 = inlined_call_operand.vmem [shape: bf16[32,256], index: 0, kind: input, shape index: {}]
  %s1 = inlined_call_operand.vmem [shape: bf16[256,128], index: 1, kind: input, shape index: {}]
  %s2 = inlined_call_operand.vmem [shape: f32[1,128], index: 2, kind: input, shape index: {}]
  %s3 = inlined_call_operand.vmem [shape: bf16[32,128], index: 3, kind: output, shape index: {}]
  %s4 = sld [smem:[#allocation0]]
  $region53: #{distilbert_classifier.21} parent=0
    _
  %s6 = ssub.s32 1, %s4
  %s7 = scalar_select 0, %s6, %s4
  loop: start=0, step=1, limit=4
  $region2: #{distilbert_classifier.21} parent=0 // loop_pre_header
    _
  $region3: #{distilbert_classifier.21} parent=0 // loop_header
    %s9 = sphi 0, %s13
    %p10 = scmp.ge.s32.totalorder %s9, 4
    %s16 = sphi 0, %s35
    %s17 = sphi 0, %s31
    %s18 = sphi 0, %s27
    %s19 = sphi 0, %s16
    %s20 = sphi 0, %s17
    %s21 = sphi 0, %s18
    %s22 = sphi 0, %s19
    %s23 = sphi 0, %s20
    %s24 = sphi 0, %s21
    %s40 = sphi 0, %s42
    %s43 = sphi 0, %s40
    %s44 = sphi 0, %s43
    %s60 = sphi 0, %s44
    %s68 = sphi 0, %s70
    %s71 = sphi 0, %s68
    %s72 = sphi 0, %s71
    %s88 = sphi 0, %s72
    %s94 = sphi 0, %s96
    %s97 = sphi 0, %s94
    %s98 = sphi 0, %s97
    %s114 = sphi 0, %s98
    %s122 = sphi 0, %s124
    %s125 = sphi 0, %s122
    %s126 = sphi 0, %s125
    %s142 = sphi 0, %s126
  $region4: #{distilbert_classifier.21} parent=0 // loop_header_branch
    %12 = sbr.rel (%p10) target = $region8
  $region5: #{distilbert_classifier.21} parent=0 // loop_body
    %s14 = ssub.s32 %s9, 1
    %s15 = ssub.s32 %s9, 2
    %s25 = sadd.s32 1, %s18
    %p26 = scmp.ge.s32.totalorder %s25, 1
    %s27 = scalar_select %p26, 0, %s25
    %s28 = sadd.s32 1, %s17
    %s29 = scalar_select %p26, %s28, %s17
    %p30 = scmp.ge.s32.totalorder %s29, 1
    %s31 = scalar_select %p30, 0, %s29
    %s32 = sadd.s32 1, %s16
    %s33 = scalar_select %p30, %s32, %s16
    %p34 = scmp.ge.s32.totalorder %s33, 2
    %s35 = scalar_select %p34, 0, %s33
    %s36 = ssub.s32 %s16, %s35
    %s37 = ssub.s32 %s18, %s27
    %s38 = sor.u32 %s36, %s37
    %p39 = scmp.eq.s32.totalorder %s38, 0
    %s41 = sadd.s32 %s40, 1
    %s42 = scalar_select %p39, %s40, %s41
    %p45 = pneg %p39
    %p46 = scmp.eq.s32.totalorder %s9, 1
    %p47 = por %p45, %p46
    %p48 = scmp.ne.s32.totalorder %s40, %s43
    %p49 = scmp.eq.s32.totalorder %s9, 0
    %p50 = por %p48, %p49
    %p51 = scmp.ne.s32.totalorder %s40, %s43
    %p52 = scmp.eq.s32.totalorder %s14, 1
    %p53 = por %p51, %p52
    %p54 = scmp.ne.s32.totalorder %s43, %s44
    %p55 = scmp.eq.s32.totalorder %s14, 0
    %p56 = por %p54, %p55
    %p57 = scmp.ne.s32.totalorder %s43, %s44
    %p58 = scmp.eq.s32.totalorder %s15, 1
    %p59 = por %p57, %p58
    %p61 = scmp.ne.s32.totalorder %s44, %s60
    %p62 = scmp.eq.s32.totalorder %s15, 0
    %p63 = por %p61, %p62
    %s64 = ssub.s32 %s18, %s27
    %s65 = ssub.s32 %s17, %s31
    %s66 = sor.u32 %s64, %s65
    %p67 = scmp.eq.s32.totalorder %s66, 0
    %s69 = sadd.s32 %s68, 1
    %s70 = scalar_select %p67, %s68, %s69
    %p73 = pneg %p67
    %p74 = scmp.eq.s32.totalorder %s9, 1
    %p75 = por %p73, %p74
    %p76 = scmp.ne.s32.totalorder %s68, %s71
    %p77 = scmp.eq.s32.totalorder %s9, 0
    %p78 = por %p76, %p77
    %p79 = scmp.ne.s32.totalorder %s68, %s71
    %p80 = scmp.eq.s32.totalorder %s14, 1
    %p81 = por %p79, %p80
    %p82 = scmp.ne.s32.totalorder %s71, %s72
    %p83 = scmp.eq.s32.totalorder %s14, 0
    %p84 = por %p82, %p83
    %p85 = scmp.ne.s32.totalorder %s71, %s72
    %p86 = scmp.eq.s32.totalorder %s15, 1
    %p87 = por %p85, %p86
    %p89 = scmp.ne.s32.totalorder %s72, %s88
    %p90 = scmp.eq.s32.totalorder %s15, 0
    %p91 = por %p89, %p90
    %s92 = ssub.s32 %s17, %s31
    %p93 = scmp.eq.s32.totalorder %s92, 0
    %s95 = sadd.s32 %s94, 1
    %s96 = scalar_select %p93, %s94, %s95
    %p99 = pneg %p93
    %p100 = scmp.eq.s32.totalorder %s9, 1
    %p101 = por %p99, %p100
    %p102 = scmp.ne.s32.totalorder %s94, %s97
    %p103 = scmp.eq.s32.totalorder %s9, 0
    %p104 = por %p102, %p103
    %p105 = scmp.ne.s32.totalorder %s94, %s97
    %p106 = scmp.eq.s32.totalorder %s14, 1
    %p107 = por %p105, %p106
    %p108 = scmp.ne.s32.totalorder %s97, %s98
    %p109 = scmp.eq.s32.totalorder %s14, 0
    %p110 = por %p108, %p109
    %p111 = scmp.ne.s32.totalorder %s97, %s98
    %p112 = scmp.eq.s32.totalorder %s15, 1
    %p113 = por %p111, %p112
    %p115 = scmp.ne.s32.totalorder %s98, %s114
    %p116 = scmp.eq.s32.totalorder %s15, 0
    %p117 = por %p115, %p116
    %s118 = ssub.s32 %s16, %s35
    %s119 = ssub.s32 %s17, %s31
    %s120 = sor.u32 %s118, %s119
    %p121 = scmp.eq.s32.totalorder %s120, 0
    %s123 = sadd.s32 %s122, 1
    %s124 = scalar_select %p121, %s122, %s123
    %p127 = pneg %p121
    %p128 = scmp.eq.s32.totalorder %s9, 1
    %p129 = por %p127, %p128
    %p130 = scmp.ne.s32.totalorder %s122, %s125
    %p131 = scmp.eq.s32.totalorder %s9, 0
    %p132 = por %p130, %p131
    %p133 = scmp.ne.s32.totalorder %s122, %s125
    %p134 = scmp.eq.s32.totalorder %s14, 1
    %p135 = por %p133, %p134
    %p136 = scmp.ne.s32.totalorder %s125, %s126
    %p137 = scmp.eq.s32.totalorder %s14, 0
    %p138 = por %p136, %p137
    %p139 = scmp.ne.s32.totalorder %s125, %s126
    %p140 = scmp.eq.s32.totalorder %s15, 1
    %p141 = por %p139, %p140
    %p143 = scmp.ne.s32.totalorder %s126, %s142
    %p144 = scmp.eq.s32.totalorder %s15, 0
    %p145 = por %p143, %p144
    %p146 = scmp.le.s32.totalorder 1, %s9
    %p147 = scmp.lt.s32.totalorder %s9, 3
    %p148 = pnand %p146, %p147
    %p149 = pneg %p148
    // Predicated region
    $region9: #{distilbert_classifier.21} parent=5 // pred_check
      _
    $region10: #{distilbert_classifier.21} parent=5 // pred_check_branch
      %151 = sbr.rel (%p148) target = $region12
    $region11: #{distilbert_classifier.21} parent=5 // pred_region
      %s152 = ssub.s32 %s9, 1
      // Predicated region
      $region13: #{distilbert_classifier.21} parent=11 // pred_check
        %p153 = pneg %p84
      $region14: #{distilbert_classifier.21} parent=11 // pred_check_branch
        %155 = sbr.rel (%p153) target = $region16
      $region15: #{distilbert_classifier.21} parent=11 // pred_region
        %s156 = smul.u32 32, %s21
        %p157 = scmp.lt.s32.totalorder %s156, 31
        %s158 = scalar_select %p157, %s156, 31
        %p159 = scmp.lt.s32.totalorder %s20, 0
        %s160 = scalar_select %p159, %s20, 0
        %s161 = sadd.s32 %s160, %s158
        %s162 = smul.addr %s161, 4
        %s163 = scalar_lea.vmem %s1, %s162
        %s164 = smul.u32 32, %s21
      $region16: #{distilbert_classifier.21} parent=11 // pred_fallthru
        _
      // Predicated region
      $region17: #{distilbert_classifier.21} parent=11 // pred_check
        %p165 = pneg %p110
      $region18: #{distilbert_classifier.21} parent=11 // pred_check_branch
        %167 = sbr.rel (%p165) target = $region20
      $region19: #{distilbert_classifier.21} parent=11 // pred_region
        %p168 = scmp.lt.s32.totalorder %s20, 0
        %s169 = scalar_select %p168, %s20, 0
        %s170 = scalar_lea.vmem %s2, %s169
      $region20: #{distilbert_classifier.21} parent=11 // pred_fallthru
        _
    $region12: #{distilbert_classifier.21} parent=5 // pred_fallthru
      _
    %p171 = scmp.lt.s32.totalorder %s9, 2
    // Predicated region
    $region21: #{distilbert_classifier.21} parent=5 // pred_check
      %p172 = pneg %p171
    $region22: #{distilbert_classifier.21} parent=5 // pred_check_branch
      %174 = sbr.rel (%p172) target = $region24
    $region23: #{distilbert_classifier.21} parent=5 // pred_region
      // Predicated region
      $region25: #{distilbert_classifier.21} parent=23 // pred_check
        %p175 = pneg %p50
      $region26: #{distilbert_classifier.21} parent=23 // pred_check_branch
        %177 = sbr.rel (%p175) target = $region28
      $region27: #{distilbert_classifier.21} parent=23 // pred_region
        %s178 = smul.u32 2, %s16
        %s179 = smul.u32 2, %s18
        %p180 = scmp.lt.s32.totalorder %s178, 3
        %s181 = scalar_select %p180, %s178, 3
        %p182 = scmp.lt.s32.totalorder %s179, 1
        %s183 = scalar_select %p182, %s179, 1
        %s184 = smul.addr %s181, 2
        %s185 = sadd.s32 %s183, %s184
        %s186 = smul.addr %s185, 4
        %s187 = scalar_lea.vmem %s0, %s186
        %s188 = smul.u32 2, %s16
        %s189 = smul.u32 2, %s18
      $region28: #{distilbert_classifier.21} parent=23 // pred_fallthru
        _
    $region24: #{distilbert_classifier.21} parent=5 // pred_fallthru
      _
    %p190 = scmp.le.s32.totalorder 1, %s9
    %p191 = scmp.lt.s32.totalorder %s9, 3
    %p192 = pnand %p190, %p191
    %p193 = pneg %p192
    // Predicated region
    $region29: #{distilbert_classifier.21} parent=5 // pred_check
      _
    $region30: #{distilbert_classifier.21} parent=5 // pred_check_branch
      %195 = sbr.rel (%p192) target = $region32
    $region31: #{distilbert_classifier.21} parent=5 // pred_region
      %s196 = ssub.s32 %s9, 1
      %s197 = smul.u32 2, %s19
      %s198 = smul.u32 2, %s21
      %p199 = scmp.lt.s32.totalorder %s197, 3
      %s200 = scalar_select %p199, %s197, 3
      %p201 = scmp.lt.s32.totalorder %s198, 1
      %s202 = scalar_select %p201, %s198, 1
      %s203 = smul.addr %s200, 2
      %s204 = sadd.s32 %s202, %s203
      %s205 = smul.addr %s204, 4
      %s206 = scalar_lea.vmem %s0, %s205
      %p207 = pneg %p56
      %p208 = pneg %p53
      %s209 = smul.u32 32, %s21
      %p210 = scmp.lt.s32.totalorder %s209, 31
      %s211 = scalar_select %p210, %s209, 31
      %p212 = scmp.lt.s32.totalorder %s20, 0
      %s213 = scalar_select %p212, %s20, 0
      %s214 = sadd.s32 %s213, %s211
      %s215 = smul.addr %s214, 4
      %s216 = scalar_lea.vmem %s1, %s215
      %p217 = pneg %p84
      %p218 = pneg %p81
      %p219 = scmp.lt.s32.totalorder %s20, 0
      %s220 = scalar_select %p219, %s20, 0
      %s221 = scalar_lea.vmem %s2, %s220
      %p222 = pneg %p110
      %p223 = pneg %p107
      %p224 = pneg %p138
      %p225 = pneg %p135
      %s226 = smul.u32 2, %s19
      %p227 = scmp.lt.s32.totalorder %s226, 3
      %s228 = scalar_select %p227, %s226, 3
      %p229 = scmp.lt.s32.totalorder %s20, 0
      %s230 = scalar_select %p229, %s20, 0
      %s231 = sadd.s32 %s230, %s228
      %s232 = smul.addr %s231, 4
      %s233 = scalar_lea.vmem %s3, %s232
      %s234 = smul.u32 2, %s19
      %s235 = smul.u32 2, %s21
      %p236 = scmp.lt.s32.totalorder %s234, 3
      %s237 = scalar_select %p236, %s234, 3
      %p238 = scmp.lt.s32.totalorder %s235, 1
      %s239 = scalar_select %p238, %s235, 1
      %s240 = smul.addr %s237, 2
      %s241 = sadd.s32 %s239, %s240
      %s242 = smul.addr %s241, 4
      %s243 = scalar_lea.vmem %s0, %s242
      %s244 = smul.u32 2, %s19
      %s245 = smul.u32 2, %s21
      %s246 = smul.u32 32, %s21
      %p247 = scmp.lt.s32.totalorder %s246, 31
      %s248 = scalar_select %p247, %s246, 31
      %p249 = scmp.lt.s32.totalorder %s20, 0
      %s250 = scalar_select %p249, %s20, 0
      %s251 = sadd.s32 %s250, %s248
      %s252 = smul.addr %s251, 4
      %s253 = scalar_lea.vmem %s1, %s252
      %s254 = smul.u32 32, %s21
      %p255 = scmp.lt.s32.totalorder %s20, 0
      %s256 = scalar_select %p255, %s20, 0
      %s257 = scalar_lea.vmem %s2, %s256
      %s258 = smul.u32 2, %s19
      %p259 = scmp.lt.s32.totalorder %s258, 3
      %s260 = scalar_select %p259, %s258, 3
      %p261 = scmp.lt.s32.totalorder %s20, 0
      %s262 = scalar_select %p261, %s20, 0
      %s263 = sadd.s32 %s262, %s260
      %s264 = smul.addr %s263, 4
      %s265 = scalar_lea.vmem %s3, %s264
      %s266 = smul.u32 2, %s19
      %p268 = scmp.eq.s32.totalorder %s21, 0
      // Predicated region
      $region33: #{distilbert_classifier.21} parent=31 // pred_check
        %p269 = pneg %p268
      $region34: #{distilbert_classifier.21} parent=31 // pred_check_branch
        %271 = sbr.rel (%p269) target = $region36
      $region35: #{distilbert_classifier.21} parent=31 // pred_region
        %272 = vst [vmem:[#allocation2] sm:$0xff] 0.0
        %273 = vst [vmem:[#allocation2 + $0x8] sm:$0xff] 0.0
      $region36: #{distilbert_classifier.21} parent=31 // pred_fallthru
        _
      %v274 = vld [vmem:[#allocation2] sm:$0xff]
      %v275 = vld [vmem:[#allocation2 + $0x8] sm:$0xff]
      %v276 = vld [vmem:[%s243] sm:$0xff]
      %v277 = vld [vmem:[%s243 + $0x8] sm:$0xff]
      %v278 = vld [vmem:[%s253] sm:$0xf]
      %v279 = vld [vmem:[%s253 + $0x4] sm:$0xf]
      %v280 = vld [vmem:[%s253 + $0x8] sm:$0xf]
      %v281 = vld [vmem:[%s253 + $0xc] sm:$0xf]
      %v282 = vld [vmem:[%s253 + $0x10] sm:$0xf]
      %v283 = vld [vmem:[%s253 + $0x14] sm:$0xf]
      %v284 = vld [vmem:[%s253 + $0x18] sm:$0xf]
      %v285 = vld [vmem:[%s253 + $0x1c] sm:$0xf]
      %v286 = vld [vmem:[%s253 + $0x20] sm:$0xf]
      %v287 = vld [vmem:[%s253 + $0x24] sm:$0xf]
      %v288 = vld [vmem:[%s253 + $0x28] sm:$0xf]
      %v289 = vld [vmem:[%s253 + $0x2c] sm:$0xf]
      %v290 = vld [vmem:[%s253 + $0x30] sm:$0xf]
      %v291 = vld [vmem:[%s253 + $0x34] sm:$0xf]
      %v292 = vld [vmem:[%s253 + $0x38] sm:$0xf]
      %v293 = vld [vmem:[%s253 + $0x3c] sm:$0xf]
      %v294 = vld [vmem:[%s253 + $0x40] sm:$0xf]
      %v295 = vld [vmem:[%s253 + $0x44] sm:$0xf]
      %v296 = vld [vmem:[%s253 + $0x48] sm:$0xf]
      %v297 = vld [vmem:[%s253 + $0x4c] sm:$0xf]
      %v298 = vld [vmem:[%s253 + $0x50] sm:$0xf]
      %v299 = vld [vmem:[%s253 + $0x54] sm:$0xf]
      %v300 = vld [vmem:[%s253 + $0x58] sm:$0xf]
      %v301 = vld [vmem:[%s253 + $0x5c] sm:$0xf]
      %v302 = vld [vmem:[%s253 + $0x60] sm:$0xf]
      %v303 = vld [vmem:[%s253 + $0x64] sm:$0xf]
      %v304 = vld [vmem:[%s253 + $0x68] sm:$0xf]
      %v305 = vld [vmem:[%s253 + $0x6c] sm:$0xf]
      %v306 = vld [vmem:[%s253 + $0x70] sm:$0xf]
      %v307 = vld [vmem:[%s253 + $0x74] sm:$0xf]
      %v308 = vld [vmem:[%s253 + $0x78] sm:$0xf]
      %v309 = vld [vmem:[%s253 + $0x7c] sm:$0xf]
      %v312 = vunpack.c.l.b16 %v276
      %v313 = vunpack.c.h.b16 %v276
      %v314 = vunpack.c.l.b16 %v277
      %v315 = vunpack.c.h.b16 %v277
      %v316 = vpack.c.b16 %v314, %v312
      %v317 = vpack.c.b16 %v315, %v313
      %v352 = vunpack.c.l.b16 %v278
      %v353 = vunpack.c.l.b16 %v279
      %v354 = vunpack.c.l.b16 %v280
      %v355 = vunpack.c.l.b16 %v281
      %v356 = vunpack.c.l.b16 %v282
      %v357 = vunpack.c.l.b16 %v283
      %v358 = vunpack.c.l.b16 %v284
      %v359 = vunpack.c.l.b16 %v285
      %v360 = vunpack.c.l.b16 %v286
      %v361 = vunpack.c.l.b16 %v287
      %v362 = vunpack.c.l.b16 %v288
      %v363 = vunpack.c.l.b16 %v289
      %v364 = vunpack.c.l.b16 %v290
      %v365 = vunpack.c.l.b16 %v291
      %v366 = vunpack.c.l.b16 %v292
      %v367 = vunpack.c.l.b16 %v293
      %v368 = vunpack.c.l.b16 %v294
      %v369 = vunpack.c.l.b16 %v295
      %v370 = vunpack.c.l.b16 %v296
      %v371 = vunpack.c.l.b16 %v297
      %v372 = vunpack.c.l.b16 %v298
      %v373 = vunpack.c.l.b16 %v299
      %v374 = vunpack.c.l.b16 %v300
      %v375 = vunpack.c.l.b16 %v301
      %v376 = vunpack.c.l.b16 %v302
      %v377 = vunpack.c.l.b16 %v303
      %v378 = vunpack.c.l.b16 %v304
      %v379 = vunpack.c.l.b16 %v305
      %v380 = vunpack.c.l.b16 %v306
      %v381 = vunpack.c.l.b16 %v307
      %v382 = vunpack.c.l.b16 %v308
      %v383 = vunpack.c.l.b16 %v309
      %v384 = vpack.c.b16 %v353, %v352
      %v385 = vpack.c.b16 %v355, %v354
      %v386 = vpack.c.b16 %v357, %v356
      %v387 = vpack.c.b16 %v359, %v358
      %v388 = vpack.c.b16 %v361, %v360
      %v389 = vpack.c.b16 %v363, %v362
      %v390 = vpack.c.b16 %v365, %v364
      %v391 = vpack.c.b16 %v367, %v366
      %v392 = vpack.c.b16 %v369, %v368
      %v393 = vpack.c.b16 %v371, %v370
      %v394 = vpack.c.b16 %v373, %v372
      %v395 = vpack.c.b16 %v375, %v374
      %v396 = vpack.c.b16 %v377, %v376
      %v397 = vpack.c.b16 %v379, %v378
      %v398 = vpack.c.b16 %v381, %v380
      %v399 = vpack.c.b16 %v383, %v382
      %416 = vmatprep.subr.bf16.mxu0 0
      %417 = vmatpush1.bf16.msra.mxu0 %v384
      %418 = vmatprep.subr.bf16.mxu0 0
      %419 = vmatpush1.bf16.msra.mxu0 %v385
      %420 = vmatprep.subr.bf16.mxu0 0
      %421 = vmatpush1.bf16.msra.mxu0 %v386
      %422 = vmatprep.subr.bf16.mxu0 0
      %423 = vmatpush1.bf16.msra.mxu0 %v387
      %424 = vmatprep.subr.bf16.mxu0 0
      %425 = vmatpush1.bf16.msra.mxu0 %v388
      %426 = vmatprep.subr.bf16.mxu0 0
      %427 = vmatpush1.bf16.msra.mxu0 %v389
      %428 = vmatprep.subr.bf16.mxu0 0
      %429 = vmatpush1.bf16.msra.mxu0 %v390
      %430 = vmatprep.subr.bf16.mxu0 0
      %431 = vmatpush1.bf16.msra.mxu0 %v391
      %432 = vmatprep.subr.bf16.mxu0 0
      %433 = vmatpush1.bf16.msra.mxu0 %v392
      %434 = vmatprep.subr.bf16.mxu0 0
      %435 = vmatpush1.bf16.msra.mxu0 %v393
      %436 = vmatprep.subr.bf16.mxu0 0
      %437 = vmatpush1.bf16.msra.mxu0 %v394
      %438 = vmatprep.subr.bf16.mxu0 0
      %439 = vmatpush1.bf16.msra.mxu0 %v395
      %440 = vmatprep.subr.bf16.mxu0 0
      %441 = vmatpush1.bf16.msra.mxu0 %v396
      %442 = vmatprep.subr.bf16.mxu0 0
      %443 = vmatpush1.bf16.msra.mxu0 %v397
      %444 = vmatprep.subr.bf16.mxu0 0
      %445 = vmatpush1.bf16.msra.mxu0 %v398
      %446 = vmatprep.subr.bf16.mxu0 0
      %447 = vmatpush1.bf16.msra.mxu0 %v399
      %448 = vmatprep.mubr.bf16.mxu0 %v317
      %449 = vmatmul.mubr.bf16.gmra.mrb[0].mxu0 %v316
      %v450 = vpop.f32.mrb[0].mxu0
      %v451 = vadd.f32 0.0, %v450
      %v452 = vpop.f32.mrb[0].mxu0
      %v453 = vpop.f32.mrb[0].mxu0
      %v454 = vadd.f32 0.0, %v453
      %v455 = vpop.f32.mrb[0].mxu0
      %456 = vdwg.mxu0
      %v457 = vadd.f32 %v274, %v451
      %v458 = vadd.f32 %v275, %v454
      %459 = vst [vmem:[#allocation2] sm:$0xff] %v457
      %460 = vst [vmem:[#allocation2 + $0x8] sm:$0xff] %v458
      // Predicated region
      $region37: #{distilbert_classifier.21} parent=31 // pred_check
        %p461 = pneg %p268
      $region38: #{distilbert_classifier.21} parent=31 // pred_check_branch
        %463 = sbr.rel (%p461) target = $region40
      $region39: #{distilbert_classifier.21} parent=31 // pred_region
        %v464 = vld [vmem:[#allocation2] sm:$0xff]
        %v465 = vld [vmem:[#allocation2 + $0x8] sm:$0xff]
        %v466 = vld [vmem:[%s257] sm:$0x1]
        %v468 = vlaneseq
        %v469 = vshrl.u32 %v468, 7
        %v470 = vsub.s32 0, %v469
        %v471 = vrot.slane %v466, %v470
        %v473 = vadd.f32 %v464, %v471
        %v474 = vadd.f32 %v465, %v471
        %v475 = vpack.c.bf16 %v474, %v473
        %v477 = vunpack.c.l.b16 %v475
        %v478 = vunpack.c.h.b16 %v475
        %v479 = vpack.c.b16 %v477, %v477
        %v480 = vpack.c.b16 %v478, %v478
        %483 = vst [vmem:[%s265] sm:$0xf] %v479
        %484 = vst [vmem:[%s265 + $0x4] sm:$0xf] %v480
      $region40: #{distilbert_classifier.21} parent=31 // pred_fallthru
        _
      %s485 = smul.u32 2, %s19
      %p486 = scmp.lt.s32.totalorder %s485, 3
      %s487 = scalar_select %p486, %s485, 3
      %p488 = scmp.lt.s32.totalorder %s20, 0
      %s489 = scalar_select %p488, %s20, 0
      %s490 = sadd.s32 %s489, %s487
      %s491 = smul.addr %s490, 4
      %s492 = scalar_lea.vmem %s3, %s491
      // Predicated region
      $region41: #{distilbert_classifier.21} parent=31 // pred_check
        %p493 = pneg %p135
      $region42: #{distilbert_classifier.21} parent=31 // pred_check_branch
        %495 = sbr.rel (%p493) target = $region44
      $region43: #{distilbert_classifier.21} parent=31 // pred_region
        %s496 = smul.u32 2, %s19
      $region44: #{distilbert_classifier.21} parent=31 // pred_fallthru
        _
    $region32: #{distilbert_classifier.21} parent=5 // pred_fallthru
      _
    %p497 = scmp.le.s32.totalorder 2, %s9
    // Predicated region
    $region45: #{distilbert_classifier.21} parent=5 // pred_check
      %p498 = pneg %p497
    $region46: #{distilbert_classifier.21} parent=5 // pred_check_branch
      %500 = sbr.rel (%p498) target = $region48
    $region47: #{distilbert_classifier.21} parent=5 // pred_region
      %s501 = ssub.s32 %s9, 2
      // Predicated region
      $region49: #{distilbert_classifier.21} parent=47 // pred_check
        %p502 = pneg %p141
      $region50: #{distilbert_classifier.21} parent=47 // pred_check_branch
        %504 = sbr.rel (%p502) target = $region52
      $region51: #{distilbert_classifier.21} parent=47 // pred_region
        %s505 = smul.u32 2, %s22
        %p506 = scmp.lt.s32.totalorder %s505, 3
        %s507 = scalar_select %p506, %s505, 3
        %p508 = scmp.lt.s32.totalorder %s23, 0
        %s509 = scalar_select %p508, %s23, 0
        %s510 = sadd.s32 %s509, %s507
        %s511 = smul.addr %s510, 4
        %s512 = scalar_lea.vmem %s3, %s511
      $region52: #{distilbert_classifier.21} parent=47 // pred_fallthru
        _
    $region48: #{distilbert_classifier.21} parent=5 // pred_fallthru
      _
  $region6: #{distilbert_classifier.21} parent=0 // loop_footer
    %s13 = sadd.s32 1, %s9
  $region7: #{distilbert_classifier.21} parent=0 // loop_footer_branch
    %8 = sbr.rel target = $region3
  $region8: #{distilbert_classifier.21} parent=0 // loop_exit
    _

</llo_original>
